<compile_context>
chip_gen: v6e
topology: v6e:2x2x1
jax: 0.10.0
libtpu: 0.0.40
codegen_flags: <defaults>
</compile_context>

<pallas_src>
import functools

import jax
import jax.numpy as jnp
import numpy as np
from jax import lax
from jax.experimental import pallas as pl
from jax.experimental.pallas import tpu as pltpu

# TODO(synk): at production sizes re-derive this per generation (v7x: 64 MiB VMEM/TC) from the
# row-strip tiling budget; 32 MiB is ample for the whole-image-per-step blocks used here.
_VMEM_LIMIT = 32 * 1024 * 1024


# --------------------------------------------------------------------------------------
# Kernel helpers
# --------------------------------------------------------------------------------------
def _interleave_cols(p_even, p_odd):
    """(H, W, C) x 2 -> (H, 2W, C) with columns alternating p_even / p_odd.

    Built from broadcast + iota + select only (no strided stores, no lane-dim reshapes),
    so it lowers cleanly on Mosaic even at tiny channel counts.
    """
    H, W, C = p_even.shape
    Wo = 2 * W
    pe = jnp.broadcast_to(p_even[:, :, None, :], (H, W, 2, C)).reshape(H, Wo, C)
    po = jnp.broadcast_to(p_odd[:, :, None, :], (H, W, 2, C)).reshape(H, Wo, C)
    col = lax.broadcasted_iota(jnp.int32, (H, Wo, C), 1)
    return jnp.where(col % 2 == 0, pe, po)


def _decoder_block_kernel(x_ref, wd_ref, bd_ref, w1_ref, b1_ref, w2_ref, b2_ref,
                          o_ref, pad_ref, *, H, W, Cin, C):
    """Fused deconv(k=2,s=2) -> conv3x3+ReLU -> conv3x3+ReLU for one batch element.

    pad_ref: persistent VMEM scratch holding the zero-padded activation, laid out as
    (H+1, 2, Wo+2, C) so padded row r lives at [r // 2, r % 2, :, :].  This turns the 2x
    row interleave (deconv output and conv1->conv2 handoff) into unit-stride block stores.
    """
    Ho, Wo = 2 * H, 2 * W
    Hpad, Wpad = Ho + 2, Wo + 2

    # ---- zero only the 1-pixel border of the scratch (interior is fully overwritten below).
    # Done every step (not under @pl.when(step == 0)) so each TensorCore's private scratch is
    # initialised even when the parallel grid axis is partitioned across cores (v7x megacore).
    zrow = jnp.zeros((Wpad, C), jnp.float32)
    pad_ref[0, 0, :, :] = zrow                      # padded row 0
    pad_ref[H, 1, :, :] = zrow                      # padded row Hpad-1
    zcol = jnp.zeros((H + 1, 2, 1, C), jnp.float32)
    pad_ref[:, :, 0:1, :] = zcol                    # padded col 0
    pad_ref[:, :, Wpad - 1:Wpad, :] = zcol          # padded col Wpad-1

    # ---- stage 1: ConvTranspose2d(kernel=2, stride=2) as a single MXU matmul --------------
    # out[2h+kh, 2w+kw, co] = sum_ci x[h, w, ci] * wd[ci, co, kh, kw] + bd[co]
    x = x_ref[0].reshape(H * W, Cin)
    y = jnp.dot(x, wd_ref[...], preferred_element_type=jnp.float32) + bd_ref[...]
    # y columns are packed as q = kh*2 + kw (sub-pixel planes).
    planes = [y[:, q * C:(q + 1) * C].reshape(H, W, C) for q in range(4)]
    row_even = _interleave_cols(planes[0], planes[1])   # output rows 2h   -> padded rows 2h+1
    row_odd = _interleave_cols(planes[2], planes[3])    # output rows 2h+1 -> padded rows 2h+2
    pad_ref[0:H, 1, 1:Wo + 1, :] = row_even
    pad_ref[1:H + 1, 0, 1:Wo + 1, :] = row_odd

    # ---- 3x3 'same' conv + ReLU with the dx taps folded into the contraction (K = 3C) -----
    def conv3x3_relu(w_ref, b_ref):
        padded = pad_ref[...].reshape(Hpad, Wpad, C)    # free merge of the (i, j) parity dims
        w = w_ref[...]                                  # (3, 3C, C), rows ordered (dx, ci)
        acc = jnp.zeros((Ho * Wo, C), jnp.float32)
        for dy in range(3):
            rows = padded[dy:dy + Ho]                   # (Ho, Wpad, C)
            # TODO(synk): at production C, the dx windows / lane layout should be made
            # lane-dense (C >= 128 or W folded onto lanes with pltpu.roll shifts).
            strip = jnp.concatenate(
                [rows[:, dx:dx + Wo, :].reshape(Ho * Wo, C) for dx in range(3)],
                axis=1)                                 # (Ho*Wo, 3C)
            acc = acc + jnp.dot(strip, w[dy], preferred_element_type=jnp.float32)
        return jnp.maximum(acc + b_ref[...], 0.0)

    # stage 2: conv1 + ReLU; h1 goes straight back into the SAME scratch (never leaves VMEM).
    h1 = conv3x3_relu(w1_ref, b1_ref).reshape(H, 2, Wo, C)
    pad_ref[0:H, 1, 1:Wo + 1, :] = h1[:, 0]             # even output rows
    pad_ref[1:H + 1, 0, 1:Wo + 1, :] = h1[:, 1]         # odd output rows

    # stage 3: conv2 + ReLU -> output tile.
    h2 = conv3x3_relu(w2_ref, b2_ref)
    o_ref[0] = h2.reshape(Ho, Wo, C).astype(o_ref.dtype)


# --------------------------------------------------------------------------------------
# Forward pass
# --------------------------------------------------------------------------------------
def decoder_block_forward(x_nchw, params):
    """DecoderBlock.forward: deconv(k=2,s=2) -> Conv3x3+ReLU -> Conv3x3+ReLU (NCHW in/out)."""
    # TODO(synk): ingest NCHW (or emit a channel-major output) to drop these two XLA transposes;
    # at C=4 the in-kernel alternative costs more than it saves, so they are kept here.
    x = jnp.transpose(x_nchw, (0, 2, 3, 1)).astype(jnp.float32)   # NCHW -> NHWC
    N, H, W, Cin = x.shape
    wd = params["deconv_w"]                 # (Cin, Cout, 2, 2) PyTorch ConvTranspose2d layout
    bd = params["deconv_b"]                 # (Cout,)
    Cout = bd.shape[0]
    Ho, Wo = 2 * H, 2 * W

    # Deconv weights packed so one matmul emits all four (kh, kw) sub-pixel planes:
    # column index = (kh*2 + kw)*Cout + co.  Bias tiled to match.
    wd_pack = wd.transpose(0, 2, 3, 1).reshape(Cin, 4 * Cout)
    bd_pack = jnp.tile(bd, 4).reshape(1, 4 * Cout)
    # Conv weights (HWIO) folded over dx so each dy is a single K=3*C matmul: row = dx*C + ci.
    w1 = params["conv1_w"].reshape(3, 3 * Cout, Cout)
    w2 = params["conv2_w"].reshape(3, 3 * Cout, Cout)
    b1 = params["conv1_b"].reshape(1, Cout)
    b2 = params["conv2_b"].reshape(1, Cout)
    # TODO(synk): on v6e/v7x cast activations/weights to bf16 for the MXU (f32 accumulation);
    # kept f32 here so the 1e-4 check against the f32 reference holds.

    cost = pl.CostEstimate(
        flops=2 * N * H * W * Cin * 4 * Cout                 # deconv
        + 2 * (2 * 9 * N * Ho * Wo * Cout * Cout),           # two 3x3 convs
        transcendentals=0,
        bytes_accessed=4 * (N * H * W * Cin + Cin * 4 * Cout + 2 * 9 * Cout * Cout
                            + 6 * Cout + N * Ho * Wo * Cout))

    out = pl.pallas_call(
        functools.partial(_decoder_block_kernel, H=H, W=W, Cin=Cin, C=Cout),
        out_shape=jax.ShapeDtypeStruct((N, Ho, Wo, Cout), jnp.float32),
        grid=(N,),   # N >= 2 keeps two parallel steps available for v7x's 2 TensorCores
        in_specs=[
            pl.BlockSpec((1, H, W, Cin), lambda n: (n, 0, 0, 0)),
            # TODO(synk): at production C, give the weight specs pipeline_mode=pl.Buffered(1)
            # (constant index_map) to halve their VMEM footprint under v7x's 64 MiB budget.
            pl.BlockSpec((Cin, 4 * Cout), lambda n: (0, 0)),
            pl.BlockSpec((1, 4 * Cout), lambda n: (0, 0)),
            pl.BlockSpec((3, 3 * Cout, Cout), lambda n: (0, 0, 0)),
            pl.BlockSpec((1, Cout), lambda n: (0, 0)),
            pl.BlockSpec((3, 3 * Cout, Cout), lambda n: (0, 0, 0)),
            pl.BlockSpec((1, Cout), lambda n: (0, 0)),
        ],
        out_specs=pl.BlockSpec((1, Ho, Wo, Cout), lambda n: (n, 0, 0, 0)),
        scratch_shapes=[
            # single padded-activation scratch, (i, j) row-parity layout: row r -> [r//2, r%2]
            pltpu.VMEM((H + 1, 2, Wo + 2, Cout), jnp.float32),
        ],
        compiler_params=pltpu.CompilerParams(
            dimension_semantics=("parallel",),
            vmem_limit_bytes=_VMEM_LIMIT),
        cost_estimate=cost,
    )(x, wd_pack, bd_pack, w1, b1, w2, b2)

    # TODO(synk): before scaling H/W/C, tile spatially (row strips with a 1-row halo) so the
    # per-step VMEM footprint fits v7x's 64 MiB; whole-image steps are fine at these toy sizes.
    return jnp.transpose(out, (0, 3, 1, 2))   # NHWC -> NCHW


# --------------------------------------------------------------------------------------
# Deterministic parameter init (PyTorch-style uniform(-1/sqrt(fan_in), +1/sqrt(fan_in)))
# --------------------------------------------------------------------------------------
def init_params(key, in_channels, out_channels):
    ks = jax.random.split(key, 6)

    def u(k, shape, fan_in):
        bound = 1.0 / np.sqrt(fan_in)
        return jax.random.uniform(k, shape, jnp.float32, -bound, bound)

    return {
        # ConvTranspose2d weight layout: (Cin, Cout, kH, kW)
        "deconv_w": u(ks[0], (in_channels, out_channels, 2, 2), in_channels * 2 * 2),
        "deconv_b": u(ks[1], (out_channels,), in_channels * 2 * 2),
        # Conv2d weights stored as HWIO
        "conv1_w": u(ks[2], (3, 3, out_channels, out_channels), out_channels * 9),
        "conv1_b": u(ks[3], (out_channels,), out_channels * 9),
        "conv2_w": u(ks[4], (3, 3, out_channels, out_channels), out_channels * 9),
        "conv2_b": u(ks[5], (out_channels,), out_channels * 9),
    }


# --------------------------------------------------------------------------------------
# Pure-JAX reference (independent code path: lax.conv_general_dilated)
# --------------------------------------------------------------------------------------
def reference_forward(x_nchw, params):
    dn = ("NHWC", "HWIO", "NHWC")
    x = jnp.transpose(x_nchw, (0, 2, 3, 1))
    wd = params["deconv_w"]  # (Cin, Cout, 2, 2)
    # ConvTranspose(k=2, s=2, p=0) == conv(lhs_dilation=2, pad=k-1, flipped kernel)
    wflip = wd[:, :, ::-1, ::-1].transpose(2, 3, 0, 1)  # (2, 2, Cin, Cout) HWIO
    y = lax.conv_general_dilated(
        x, wflip, window_strides=(1, 1), padding=((1, 1), (1, 1)),
        lhs_dilation=(2, 2), dimension_numbers=dn) + params["deconv_b"]
    for wk, bk in (("conv1_w", "conv1_b"), ("conv2_w", "conv2_b")):
        y = lax.conv_general_dilated(
            y, params[wk], (1, 1), "SAME", dimension_numbers=dn) + params[bk]
        y = jnp.maximum(y, 0.0)
    return jnp.transpose(y, (0, 3, 1, 2))


# --------------------------------------------------------------------------------------
if __name__ == "__main__":
    key = jax.random.PRNGKey(0)
    kx, kp = jax.random.split(key)

    N, Cin, Cout, H, W = 2, 8, 4, 8, 8           # input NCHW: (2, 8, 8, 8)
    x = jax.random.normal(kx, (N, Cin, H, W), jnp.float32)
    params = init_params(kp, Cin, Cout)

    out = jax.block_until_ready(decoder_block_forward(x, params))
    ref = jax.block_until_ready(reference_forward(x, params))

    assert out.shape == (N, Cout, 2 * H, 2 * W), out.shape
    np.testing.assert_allclose(np.asarray(out), np.asarray(ref), rtol=1e-4, atol=1e-4)
    print("KERNEL_OK")
</pallas_src>

<mosaic_0001>
module attributes {stable_mosaic.version = 11 : i64} {
  func.func @_decoder_block_kernel(%arg0: i32, %arg1: memref<1x8x8x8xf32, #tpu.memory_space<vmem>>, %arg2: memref<8x16xf32, #tpu.memory_space<vmem>>, %arg3: memref<1x16xf32, #tpu.memory_space<vmem>>, %arg4: memref<3x12x4xf32, #tpu.memory_space<vmem>>, %arg5: memref<1x4xf32, #tpu.memory_space<vmem>>, %arg6: memref<3x12x4xf32, #tpu.memory_space<vmem>>, %arg7: memref<1x4xf32, #tpu.memory_space<vmem>>, %arg8: memref<1x16x16x4xf32, #tpu.memory_space<vmem>>, %arg9: memref<9x2x18x4xf32, #tpu.memory_space<vmem>>) attributes {dimension_semantics = [#tpu.dimension_semantics<parallel>], iteration_bounds = array<i64: 2>, scalar_prefetch = 0 : i64, scratch_operands = 1 : i64, tpu.core_type = #tpu.core_type<tc>, window_params = [{transform_indices = @transform_0, window_bounds = array<i64: 1, 8, 8, 8>}, {pipeline_mode = #tpu.pipeline_mode<synchronous>, transform_indices = @transform_1, window_bounds = array<i64: 8, 16>}, {pipeline_mode = #tpu.pipeline_mode<synchronous>, transform_indices = @transform_2, window_bounds = array<i64: 1, 16>}, {pipeline_mode = #tpu.pipeline_mode<synchronous>, transform_indices = @transform_3, window_bounds = array<i64: 3, 12, 4>}, {pipeline_mode = #tpu.pipeline_mode<synchronous>, transform_indices = @transform_4, window_bounds = array<i64: 1, 4>}, {pipeline_mode = #tpu.pipeline_mode<synchronous>, transform_indices = @transform_5, window_bounds = array<i64: 3, 12, 4>}, {pipeline_mode = #tpu.pipeline_mode<synchronous>, transform_indices = @transform_6, window_bounds = array<i64: 1, 4>}, {transform_indices = @transform_7, window_bounds = array<i64: 1, 16, 16, 4>}]} {
    %cst = arith.constant 0.000000e+00 : f32
    %0 = vector.broadcast %cst : f32 to vector<18x4xf32>
    %c0 = arith.constant 0 : index
    %c0_0 = arith.constant 0 : index
    %c0_1 = arith.constant 0 : index
    %c0_2 = arith.constant 0 : index
    %1 = vector.load %arg9[%c0, %c0_0, %c0_1, %c0_2] : memref<9x2x18x4xf32, #tpu.memory_space<vmem>>, vector<1x1x18x4xf32>
    %2 = vector.shape_cast %1 : vector<1x1x18x4xf32> to vector<18x4xf32>
    %3 = vector.shape_cast %0 : vector<18x4xf32> to vector<1x1x18x4xf32>
    tpu.vector_store %arg9[%c0, %c0_0, %c0_1, %c0_2], %3 {strides = array<i32>} : memref<9x2x18x4xf32, #tpu.memory_space<vmem>>, vector<1x1x18x4xf32>,
    %c8 = arith.constant 8 : index
    %c1 = arith.constant 1 : index
    %c0_3 = arith.constant 0 : index
    %c0_4 = arith.constant 0 : index
    %4 = vector.load %arg9[%c8, %c1, %c0_3, %c0_4] : memref<9x2x18x4xf32, #tpu.memory_space<vmem>>, vector<1x1x18x4xf32>
    %5 = vector.shape_cast %4 : vector<1x1x18x4xf32> to vector<18x4xf32>
    %6 = vector.shape_cast %0 : vector<18x4xf32> to vector<1x1x18x4xf32>
    tpu.vector_store %arg9[%c8, %c1, %c0_3, %c0_4], %6 {strides = array<i32>} : memref<9x2x18x4xf32, #tpu.memory_space<vmem>>, vector<1x1x18x4xf32>,
    %cst_5 = arith.constant 0.000000e+00 : f32
    %7 = vector.broadcast %cst_5 : f32 to vector<9x2x1x4xf32>
    %c0_6 = arith.constant 0 : index
    %c0_7 = arith.constant 0 : index
    %c0_8 = arith.constant 0 : index
    %c0_9 = arith.constant 0 : index
    %8 = vector.load %arg9[%c0_6, %c0_7, %c0_8, %c0_9] : memref<9x2x18x4xf32, #tpu.memory_space<vmem>>, vector<9x2x1x4xf32>
    tpu.vector_store %arg9[%c0_6, %c0_7, %c0_8, %c0_9], %7 {strides = array<i32>} : memref<9x2x18x4xf32, #tpu.memory_space<vmem>>, vector<9x2x1x4xf32>,
    %c0_10 = arith.constant 0 : index
    %c0_11 = arith.constant 0 : index
    %c17 = arith.constant 17 : index
    %c0_12 = arith.constant 0 : index
    %9 = vector.load %arg9[%c0_10, %c0_11, %c17, %c0_12] : memref<9x2x18x4xf32, #tpu.memory_space<vmem>>, vector<9x2x1x4xf32>
    tpu.vector_store %arg9[%c0_10, %c0_11, %c17, %c0_12], %7 {strides = array<i32>} : memref<9x2x18x4xf32, #tpu.memory_space<vmem>>, vector<9x2x1x4xf32>,
    %c0_13 = arith.constant 0 : index
    %c0_14 = arith.constant 0 : index
    %c0_15 = arith.constant 0 : index
    %c0_16 = arith.constant 0 : index
    %10 = vector.load %arg1[%c0_13, %c0_14, %c0_15, %c0_16] : memref<1x8x8x8xf32, #tpu.memory_space<vmem>>, vector<1x8x8x8xf32>
    %11 = vector.shape_cast %10 : vector<1x8x8x8xf32> to vector<8x8x8xf32>
    %12 = vector.shape_cast %11 : vector<8x8x8xf32> to vector<64x8xf32>
    %c0_17 = arith.constant 0 : index
    %c0_18 = arith.constant 0 : index
    %13 = vector.load %arg2[%c0_17, %c0_18] : memref<8x16xf32, #tpu.memory_space<vmem>>, vector<8x16xf32>
    %cst_19 = arith.constant dense<0.000000e+00> : vector<64x16xf32>
    %14 = tpu.matmul %12, %13, %cst_19 {dimension_numbers = #tpu.dot_dimension_numbers<[1], [0], [0], [1], [0, 0, 1, 1], [], []>} : vector<64x8xf32>, vector<8x16xf32>, vector<64x16xf32> -> vector<64x16xf32>
    %c0_20 = arith.constant 0 : index
    %c0_21 = arith.constant 0 : index
    %15 = vector.load %arg3[%c0_20, %c0_21] : memref<1x16xf32, #tpu.memory_space<vmem>>, vector<1x16xf32>
    %16 = vector.broadcast %15 : vector<1x16xf32> to vector<64x16xf32>
    %17 = arith.addf %14, %16 : vector<64x16xf32>
    %18 = vector.extract_strided_slice %17 {offsets = [0, 0], sizes = [64, 4], strides = [1, 1]} : vector<64x16xf32> to vector<64x4xf32>
    %19 = vector.shape_cast %18 : vector<64x4xf32> to vector<8x8x4xf32>
    %20 = vector.extract_strided_slice %17 {offsets = [0, 4], sizes = [64, 4], strides = [1, 1]} : vector<64x16xf32> to vector<64x4xf32>
    %21 = vector.shape_cast %20 : vector<64x4xf32> to vector<8x8x4xf32>
    %22 = vector.extract_strided_slice %17 {offsets = [0, 8], sizes = [64, 4], strides = [1, 1]} : vector<64x16xf32> to vector<64x4xf32>
    %23 = vector.shape_cast %22 : vector<64x4xf32> to vector<8x8x4xf32>
    %24 = vector.extract_strided_slice %17 {offsets = [0, 12], sizes = [64, 4], strides = [1, 1]} : vector<64x16xf32> to vector<64x4xf32>
    %25 = vector.shape_cast %24 : vector<64x4xf32> to vector<8x8x4xf32>
    %26 = vector.shape_cast %19 : vector<8x8x4xf32> to vector<8x8x1x4xf32>
    %27 = vector.shape_cast %26 : vector<8x8x1x4xf32> to vector<8x8x1x4xf32>
    %28 = vector.broadcast %27 : vector<8x8x1x4xf32> to vector<8x8x2x4xf32>
    %29 = vector.shape_cast %28 : vector<8x8x2x4xf32> to vector<8x16x4xf32>
    %30 = vector.shape_cast %21 : vector<8x8x4xf32> to vector<8x8x1x4xf32>
    %31 = vector.shape_cast %30 : vector<8x8x1x4xf32> to vector<8x8x1x4xf32>
    %32 = vector.broadcast %31 : vector<8x8x1x4xf32> to vector<8x8x2x4xf32>
    %33 = vector.shape_cast %32 : vector<8x8x2x4xf32> to vector<8x16x4xf32>
    %34 = tpu.iota {dimensions = array<i32: 1>} : vector<8x16x4xi32>
    %c2_i32 = arith.constant 2 : i32
    %c0_i32 = arith.constant 0 : i32
    %35 = arith.cmpi eq, %c2_i32, %c0_i32 : i32
    %c1_i32 = arith.constant 1 : i32
    %36 = arith.select %35, %c1_i32, %c2_i32 : i32
    %37 = vector.broadcast %36 : i32 to vector<8x16x4xi32>
    %38 = arith.remsi %34, %37 : vector<8x16x4xi32>
    %c0_i32_22 = arith.constant 0 : i32
    %39 = vector.broadcast %c0_i32_22 : i32 to vector<8x16x4xi32>
    %40 = arith.cmpi ne, %38, %39 : vector<8x16x4xi32>
    %c0_i32_23 = arith.constant 0 : i32
    %41 = vector.broadcast %c0_i32_23 : i32 to vector<8x16x4xi32>
    %42 = arith.cmpi slt, %38, %41 : vector<8x16x4xi32>
    %c0_i32_24 = arith.constant 0 : i32
    %43 = arith.cmpi slt, %36, %c0_i32_24 : i32
    %44 = vector.broadcast %43 : i1 to vector<8x16x4xi1>
    %45 = vector.broadcast %44 : vector<8x16x4xi1> to vector<8x16x4xi1>
    %46 = arith.xori %42, %45 : vector<8x16x4xi1>
    %47 = arith.andi %46, %40 : vector<8x16x4xi1>
    %48 = vector.broadcast %36 : i32 to vector<8x16x4xi32>
    %49 = arith.addi %38, %48 : vector<8x16x4xi32>
    %50 = arith.select %47, %49, %38 : vector<8x16x4xi1>, vector<8x16x4xi32>
    %c0_i32_25 = arith.constant 0 : i32
    %51 = vector.broadcast %c0_i32_25 : i32 to vector<8x16x4xi32>
    %52 = arith.cmpi eq, %50, %51 : vector<8x16x4xi32>
    %53 = arith.select %52, %29, %33 : vector<8x16x4xi1>, vector<8x16x4xf32>
    %54 = vector.shape_cast %23 : vector<8x8x4xf32> to vector<8x8x1x4xf32>
    %55 = vector.shape_cast %54 : vector<8x8x1x4xf32> to vector<8x8x1x4xf32>
    %56 = vector.broadcast %55 : vector<8x8x1x4xf32> to vector<8x8x2x4xf32>
    %57 = vector.shape_cast %56 : vector<8x8x2x4xf32> to vector<8x16x4xf32>
    %58 = vector.shape_cast %25 : vector<8x8x4xf32> to vector<8x8x1x4xf32>
    %59 = vector.shape_cast %58 : vector<8x8x1x4xf32> to vector<8x8x1x4xf32>
    %60 = vector.broadcast %59 : vector<8x8x1x4xf32> to vector<8x8x2x4xf32>
    %61 = vector.shape_cast %60 : vector<8x8x2x4xf32> to vector<8x16x4xf32>
    %62 = tpu.iota {dimensions = array<i32: 1>} : vector<8x16x4xi32>
    %c2_i32_26 = arith.constant 2 : i32
    %c0_i32_27 = arith.constant 0 : i32
    %63 = arith.cmpi eq, %c2_i32_26, %c0_i32_27 : i32
    %c1_i32_28 = arith.constant 1 : i32
    %64 = arith.select %63, %c1_i32_28, %c2_i32_26 : i32
    %65 = vector.broadcast %64 : i32 to vector<8x16x4xi32>
    %66 = arith.remsi %62, %65 : vector<8x16x4xi32>
    %c0_i32_29 = arith.constant 0 : i32
    %67 = vector.broadcast %c0_i32_29 : i32 to vector<8x16x4xi32>
    %68 = arith.cmpi ne, %66, %67 : vector<8x16x4xi32>
    %c0_i32_30 = arith.constant 0 : i32
    %69 = vector.broadcast %c0_i32_30 : i32 to vector<8x16x4xi32>
    %70 = arith.cmpi slt, %66, %69 : vector<8x16x4xi32>
    %c0_i32_31 = arith.constant 0 : i32
    %71 = arith.cmpi slt, %64, %c0_i32_31 : i32
    %72 = vector.broadcast %71 : i1 to vector<8x16x4xi1>
    %73 = vector.broadcast %72 : vector<8x16x4xi1> to vector<8x16x4xi1>
    %74 = arith.xori %70, %73 : vector<8x16x4xi1>
    %75 = arith.andi %74, %68 : vector<8x16x4xi1>
    %76 = vector.broadcast %64 : i32 to vector<8x16x4xi32>
    %77 = arith.addi %66, %76 : vector<8x16x4xi32>
    %78 = arith.select %75, %77, %66 : vector<8x16x4xi1>, vector<8x16x4xi32>
    %c0_i32_32 = arith.constant 0 : i32
    %79 = vector.broadcast %c0_i32_32 : i32 to vector<8x16x4xi32>
    %80 = arith.cmpi eq, %78, %79 : vector<8x16x4xi32>
    %81 = arith.select %80, %57, %61 : vector<8x16x4xi1>, vector<8x16x4xf32>
    %c0_33 = arith.constant 0 : index
    %c1_34 = arith.constant 1 : index
    %c1_35 = arith.constant 1 : index
    %c0_36 = arith.constant 0 : index
    %82 = vector.load %arg9[%c0_33, %c1_34, %c1_35, %c0_36] : memref<9x2x18x4xf32, #tpu.memory_space<vmem>>, vector<8x1x16x4xf32>
    %83 = vector.shape_cast %82 : vector<8x1x16x4xf32> to vector<8x16x4xf32>
    %84 = vector.shape_cast %53 : vector<8x16x4xf32> to vector<8x1x16x4xf32>
    tpu.vector_store %arg9[%c0_33, %c1_34, %c1_35, %c0_36], %84 {strides = array<i32>} : memref<9x2x18x4xf32, #tpu.memory_space<vmem>>, vector<8x1x16x4xf32>,
    %c1_37 = arith.constant 1 : index
    %c0_38 = arith.constant 0 : index
    %c1_39 = arith.constant 1 : index
    %c0_40 = arith.constant 0 : index
    %85 = vector.load %arg9[%c1_37, %c0_38, %c1_39, %c0_40] : memref<9x2x18x4xf32, #tpu.memory_space<vmem>>, vector<8x1x16x4xf32>
    %86 = vector.shape_cast %85 : vector<8x1x16x4xf32> to vector<8x16x4xf32>
    %87 = vector.shape_cast %81 : vector<8x16x4xf32> to vector<8x1x16x4xf32>
    tpu.vector_store %arg9[%c1_37, %c0_38, %c1_39, %c0_40], %87 {strides = array<i32>} : memref<9x2x18x4xf32, #tpu.memory_space<vmem>>, vector<8x1x16x4xf32>,
    %c0_41 = arith.constant 0 : index
    %c0_42 = arith.constant 0 : index
    %c0_43 = arith.constant 0 : index
    %c0_44 = arith.constant 0 : index
    %88 = vector.load %arg9[%c0_41, %c0_42, %c0_43, %c0_44] : memref<9x2x18x4xf32, #tpu.memory_space<vmem>>, vector<9x2x18x4xf32>
    %89 = vector.shape_cast %88 : vector<9x2x18x4xf32> to vector<18x18x4xf32>
    %c0_45 = arith.constant 0 : index
    %c0_46 = arith.constant 0 : index
    %c0_47 = arith.constant 0 : index
    %90 = vector.load %arg4[%c0_45, %c0_46, %c0_47] : memref<3x12x4xf32, #tpu.memory_space<vmem>>, vector<3x12x4xf32>
    %cst_48 = arith.constant 0.000000e+00 : f32
    %91 = vector.broadcast %cst_48 : f32 to vector<256x4xf32>
    %92 = vector.extract_strided_slice %89 {offsets = [0, 0, 0], sizes = [16, 18, 4], strides = [1, 1, 1]} : vector<18x18x4xf32> to vector<16x18x4xf32>
    %93 = vector.extract_strided_slice %92 {offsets = [0, 0, 0], sizes = [16, 16, 4], strides = [1, 1, 1]} : vector<16x18x4xf32> to vector<16x16x4xf32>
    %94 = vector.shape_cast %93 : vector<16x16x4xf32> to vector<256x4xf32>
    %95 = vector.extract_strided_slice %92 {offsets = [0, 1, 0], sizes = [16, 16, 4], strides = [1, 1, 1]} : vector<16x18x4xf32> to vector<16x16x4xf32>
    %96 = vector.shape_cast %95 : vector<16x16x4xf32> to vector<256x4xf32>
    %97 = vector.extract_strided_slice %92 {offsets = [0, 2, 0], sizes = [16, 16, 4], strides = [1, 1, 1]} : vector<16x18x4xf32> to vector<16x16x4xf32>
    %98 = vector.shape_cast %97 : vector<16x16x4xf32> to vector<256x4xf32>
    %99 = tpu.concatenate %94, %96, %98 in 1 : vector<256x4xf32>, vector<256x4xf32>, vector<256x4xf32> -> vector<256x12xf32>
    %100 = vector.extract_strided_slice %90 {offsets = [0, 0, 0], sizes = [1, 12, 4], strides = [1, 1, 1]} : vector<3x12x4xf32> to vector<1x12x4xf32>
    %101 = vector.shape_cast %100 : vector<1x12x4xf32> to vector<12x4xf32>
    %cst_49 = arith.constant dense<0.000000e+00> : vector<256x4xf32>
    %102 = tpu.matmul %99, %101, %cst_49 {dimension_numbers = #tpu.dot_dimension_numbers<[1], [0], [0], [1], [0, 0, 1, 1], [], []>} : vector<256x12xf32>, vector<12x4xf32>, vector<256x4xf32> -> vector<256x4xf32>
    %103 = arith.addf %91, %102 : vector<256x4xf32>
    %104 = vector.extract_strided_slice %89 {offsets = [1, 0, 0], sizes = [16, 18, 4], strides = [1, 1, 1]} : vector<18x18x4xf32> to vector<16x18x4xf32>
    %105 = vector.extract_strided_slice %104 {offsets = [0, 0, 0], sizes = [16, 16, 4], strides = [1, 1, 1]} : vector<16x18x4xf32> to vector<16x16x4xf32>
    %106 = vector.shape_cast %105 : vector<16x16x4xf32> to vector<256x4xf32>
    %107 = vector.extract_strided_slice %104 {offsets = [0, 1, 0], sizes = [16, 16, 4], strides = [1, 1, 1]} : vector<16x18x4xf32> to vector<16x16x4xf32>
    %108 = vector.shape_cast %107 : vector<16x16x4xf32> to vector<256x4xf32>
    %109 = vector.extract_strided_slice %104 {offsets = [0, 2, 0], sizes = [16, 16, 4], strides = [1, 1, 1]} : vector<16x18x4xf32> to vector<16x16x4xf32>
    %110 = vector.shape_cast %109 : vector<16x16x4xf32> to vector<256x4xf32>
    %111 = tpu.concatenate %106, %108, %110 in 1 : vector<256x4xf32>, vector<256x4xf32>, vector<256x4xf32> -> vector<256x12xf32>
    %112 = vector.extract_strided_slice %90 {offsets = [1, 0, 0], sizes = [1, 12, 4], strides = [1, 1, 1]} : vector<3x12x4xf32> to vector<1x12x4xf32>
    %113 = vector.shape_cast %112 : vector<1x12x4xf32> to vector<12x4xf32>
    %cst_50 = arith.constant dense<0.000000e+00> : vector<256x4xf32>
    %114 = tpu.matmul %111, %113, %cst_50 {dimension_numbers = #tpu.dot_dimension_numbers<[1], [0], [0], [1], [0, 0, 1, 1], [], []>} : vector<256x12xf32>, vector<12x4xf32>, vector<256x4xf32> -> vector<256x4xf32>
    %115 = arith.addf %103, %114 : vector<256x4xf32>
    %116 = vector.extract_strided_slice %89 {offsets = [2, 0, 0], sizes = [16, 18, 4], strides = [1, 1, 1]} : vector<18x18x4xf32> to vector<16x18x4xf32>
    %117 = vector.extract_strided_slice %116 {offsets = [0, 0, 0], sizes = [16, 16, 4], strides = [1, 1, 1]} : vector<16x18x4xf32> to vector<16x16x4xf32>
    %118 = vector.shape_cast %117 : vector<16x16x4xf32> to vector<256x4xf32>
    %119 = vector.extract_strided_slice %116 {offsets = [0, 1, 0], sizes = [16, 16, 4], strides = [1, 1, 1]} : vector<16x18x4xf32> to vector<16x16x4xf32>
    %120 = vector.shape_cast %119 : vector<16x16x4xf32> to vector<256x4xf32>
    %121 = vector.extract_strided_slice %116 {offsets = [0, 2, 0], sizes = [16, 16, 4], strides = [1, 1, 1]} : vector<16x18x4xf32> to vector<16x16x4xf32>
    %122 = vector.shape_cast %121 : vector<16x16x4xf32> to vector<256x4xf32>
    %123 = tpu.concatenate %118, %120, %122 in 1 : vector<256x4xf32>, vector<256x4xf32>, vector<256x4xf32> -> vector<256x12xf32>
    %124 = vector.extract_strided_slice %90 {offsets = [2, 0, 0], sizes = [1, 12, 4], strides = [1, 1, 1]} : vector<3x12x4xf32> to vector<1x12x4xf32>
    %125 = vector.shape_cast %124 : vector<1x12x4xf32> to vector<12x4xf32>
    %cst_51 = arith.constant dense<0.000000e+00> : vector<256x4xf32>
    %126 = tpu.matmul %123, %125, %cst_51 {dimension_numbers = #tpu.dot_dimension_numbers<[1], [0], [0], [1], [0, 0, 1, 1], [], []>} : vector<256x12xf32>, vector<12x4xf32>, vector<256x4xf32> -> vector<256x4xf32>
    %127 = arith.addf %115, %126 : vector<256x4xf32>
    %c0_52 = arith.constant 0 : index
    %c0_53 = arith.constant 0 : index
    %128 = vector.load %arg5[%c0_52, %c0_53] : memref<1x4xf32, #tpu.memory_space<vmem>>, vector<1x4xf32>
    %129 = vector.broadcast %128 : vector<1x4xf32> to vector<256x4xf32>
    %130 = arith.addf %127, %129 : vector<256x4xf32>
    %cst_54 = arith.constant 0.000000e+00 : f32
    %131 = vector.broadcast %cst_54 : f32 to vector<256x4xf32>
    %132 = arith.maximumf %130, %131 : vector<256x4xf32>
    %133 = vector.shape_cast %132 : vector<256x4xf32> to vector<8x2x16x4xf32>
    %134 = vector.extract_strided_slice %133 {offsets = [0, 0, 0, 0], sizes = [8, 1, 16, 4], strides = [1, 1, 1, 1]} : vector<8x2x16x4xf32> to vector<8x1x16x4xf32>
    %135 = vector.shape_cast %134 : vector<8x1x16x4xf32> to vector<8x16x4xf32>
    %c0_55 = arith.constant 0 : index
    %c1_56 = arith.constant 1 : index
    %c1_57 = arith.constant 1 : index
    %c0_58 = arith.constant 0 : index
    %136 = vector.load %arg9[%c0_55, %c1_56, %c1_57, %c0_58] : memref<9x2x18x4xf32, #tpu.memory_space<vmem>>, vector<8x1x16x4xf32>
    %137 = vector.shape_cast %136 : vector<8x1x16x4xf32> to vector<8x16x4xf32>
    %138 = vector.shape_cast %135 : vector<8x16x4xf32> to vector<8x1x16x4xf32>
    tpu.vector_store %arg9[%c0_55, %c1_56, %c1_57, %c0_58], %138 {strides = array<i32>} : memref<9x2x18x4xf32, #tpu.memory_space<vmem>>, vector<8x1x16x4xf32>,
    %139 = vector.extract_strided_slice %133 {offsets = [0, 1, 0, 0], sizes = [8, 1, 16, 4], strides = [1, 1, 1, 1]} : vector<8x2x16x4xf32> to vector<8x1x16x4xf32>
    %140 = vector.shape_cast %139 : vector<8x1x16x4xf32> to vector<8x16x4xf32>
    %c1_59 = arith.constant 1 : index
    %c0_60 = arith.constant 0 : index
    %c1_61 = arith.constant 1 : index
    %c0_62 = arith.constant 0 : index
    %141 = vector.load %arg9[%c1_59, %c0_60, %c1_61, %c0_62] : memref<9x2x18x4xf32, #tpu.memory_space<vmem>>, vector<8x1x16x4xf32>
    %142 = vector.shape_cast %141 : vector<8x1x16x4xf32> to vector<8x16x4xf32>
    %143 = vector.shape_cast %140 : vector<8x16x4xf32> to vector<8x1x16x4xf32>
    tpu.vector_store %arg9[%c1_59, %c0_60, %c1_61, %c0_62], %143 {strides = array<i32>} : memref<9x2x18x4xf32, #tpu.memory_space<vmem>>, vector<8x1x16x4xf32>,
    %c0_63 = arith.constant 0 : index
    %c0_64 = arith.constant 0 : index
    %c0_65 = arith.constant 0 : index
    %c0_66 = arith.constant 0 : index
    %144 = vector.load %arg9[%c0_63, %c0_64, %c0_65, %c0_66] : memref<9x2x18x4xf32, #tpu.memory_space<vmem>>, vector<9x2x18x4xf32>
    %145 = vector.shape_cast %144 : vector<9x2x18x4xf32> to vector<18x18x4xf32>
    %c0_67 = arith.constant 0 : index
    %c0_68 = arith.constant 0 : index
    %c0_69 = arith.constant 0 : index
    %146 = vector.load %arg6[%c0_67, %c0_68, %c0_69] : memref<3x12x4xf32, #tpu.memory_space<vmem>>, vector<3x12x4xf32>
    %cst_70 = arith.constant 0.000000e+00 : f32
    %147 = vector.broadcast %cst_70 : f32 to vector<256x4xf32>
    %148 = vector.extract_strided_slice %145 {offsets = [0, 0, 0], sizes = [16, 18, 4], strides = [1, 1, 1]} : vector<18x18x4xf32> to vector<16x18x4xf32>
    %149 = vector.extract_strided_slice %148 {offsets = [0, 0, 0], sizes = [16, 16, 4], strides = [1, 1, 1]} : vector<16x18x4xf32> to vector<16x16x4xf32>
    %150 = vector.shape_cast %149 : vector<16x16x4xf32> to vector<256x4xf32>
    %151 = vector.extract_strided_slice %148 {offsets = [0, 1, 0], sizes = [16, 16, 4], strides = [1, 1, 1]} : vector<16x18x4xf32> to vector<16x16x4xf32>
    %152 = vector.shape_cast %151 : vector<16x16x4xf32> to vector<256x4xf32>
    %153 = vector.extract_strided_slice %148 {offsets = [0, 2, 0], sizes = [16, 16, 4], strides = [1, 1, 1]} : vector<16x18x4xf32> to vector<16x16x4xf32>
    %154 = vector.shape_cast %153 : vector<16x16x4xf32> to vector<256x4xf32>
    %155 = tpu.concatenate %150, %152, %154 in 1 : vector<256x4xf32>, vector<256x4xf32>, vector<256x4xf32> -> vector<256x12xf32>
    %156 = vector.extract_strided_slice %146 {offsets = [0, 0, 0], sizes = [1, 12, 4], strides = [1, 1, 1]} : vector<3x12x4xf32> to vector<1x12x4xf32>
    %157 = vector.shape_cast %156 : vector<1x12x4xf32> to vector<12x4xf32>
    %cst_71 = arith.constant dense<0.000000e+00> : vector<256x4xf32>
    %158 = tpu.matmul %155, %157, %cst_71 {dimension_numbers = #tpu.dot_dimension_numbers<[1], [0], [0], [1], [0, 0, 1, 1], [], []>} : vector<256x12xf32>, vector<12x4xf32>, vector<256x4xf32> -> vector<256x4xf32>
    %159 = arith.addf %147, %158 : vector<256x4xf32>
    %160 = vector.extract_strided_slice %145 {offsets = [1, 0, 0], sizes = [16, 18, 4], strides = [1, 1, 1]} : vector<18x18x4xf32> to vector<16x18x4xf32>
    %161 = vector.extract_strided_slice %160 {offsets = [0, 0, 0], sizes = [16, 16, 4], strides = [1, 1, 1]} : vector<16x18x4xf32> to vector<16x16x4xf32>
    %162 = vector.shape_cast %161 : vector<16x16x4xf32> to vector<256x4xf32>
    %163 = vector.extract_strided_slice %160 {offsets = [0, 1, 0], sizes = [16, 16, 4], strides = [1, 1, 1]} : vector<16x18x4xf32> to vector<16x16x4xf32>
    %164 = vector.shape_cast %163 : vector<16x16x4xf32> to vector<256x4xf32>
    %165 = vector.extract_strided_slice %160 {offsets = [0, 2, 0], sizes = [16, 16, 4], strides = [1, 1, 1]} : vector<16x18x4xf32> to vector<16x16x4xf32>
    %166 = vector.shape_cast %165 : vector<16x16x4xf32> to vector<256x4xf32>
    %167 = tpu.concatenate %162, %164, %166 in 1 : vector<256x4xf32>, vector<256x4xf32>, vector<256x4xf32> -> vector<256x12xf32>
    %168 = vector.extract_strided_slice %146 {offsets = [1, 0, 0], sizes = [1, 12, 4], strides = [1, 1, 1]} : vector<3x12x4xf32> to vector<1x12x4xf32>
    %169 = vector.shape_cast %168 : vector<1x12x4xf32> to vector<12x4xf32>
    %cst_72 = arith.constant dense<0.000000e+00> : vector<256x4xf32>
    %170 = tpu.matmul %167, %169, %cst_72 {dimension_numbers = #tpu.dot_dimension_numbers<[1], [0], [0], [1], [0, 0, 1, 1], [], []>} : vector<256x12xf32>, vector<12x4xf32>, vector<256x4xf32> -> vector<256x4xf32>
    %171 = arith.addf %159, %170 : vector<256x4xf32>
    %172 = vector.extract_strided_slice %145 {offsets = [2, 0, 0], sizes = [16, 18, 4], strides = [1, 1, 1]} : vector<18x18x4xf32> to vector<16x18x4xf32>
    %173 = vector.extract_strided_slice %172 {offsets = [0, 0, 0], sizes = [16, 16, 4], strides = [1, 1, 1]} : vector<16x18x4xf32> to vector<16x16x4xf32>
    %174 = vector.shape_cast %173 : vector<16x16x4xf32> to vector<256x4xf32>
    %175 = vector.extract_strided_slice %172 {offsets = [0, 1, 0], sizes = [16, 16, 4], strides = [1, 1, 1]} : vector<16x18x4xf32> to vector<16x16x4xf32>
    %176 = vector.shape_cast %175 : vector<16x16x4xf32> to vector<256x4xf32>
    %177 = vector.extract_strided_slice %172 {offsets = [0, 2, 0], sizes = [16, 16, 4], strides = [1, 1, 1]} : vector<16x18x4xf32> to vector<16x16x4xf32>
    %178 = vector.shape_cast %177 : vector<16x16x4xf32> to vector<256x4xf32>
    %179 = tpu.concatenate %174, %176, %178 in 1 : vector<256x4xf32>, vector<256x4xf32>, vector<256x4xf32> -> vector<256x12xf32>
    %180 = vector.extract_strided_slice %146 {offsets = [2, 0, 0], sizes = [1, 12, 4], strides = [1, 1, 1]} : vector<3x12x4xf32> to vector<1x12x4xf32>
    %181 = vector.shape_cast %180 : vector<1x12x4xf32> to vector<12x4xf32>
    %cst_73 = arith.constant dense<0.000000e+00> : vector<256x4xf32>
    %182 = tpu.matmul %179, %181, %cst_73 {dimension_numbers = #tpu.dot_dimension_numbers<[1], [0], [0], [1], [0, 0, 1, 1], [], []>} : vector<256x12xf32>, vector<12x4xf32>, vector<256x4xf32> -> vector<256x4xf32>
    %183 = arith.addf %171, %182 : vector<256x4xf32>
    %c0_74 = arith.constant 0 : index
    %c0_75 = arith.constant 0 : index
    %184 = vector.load %arg7[%c0_74, %c0_75] : memref<1x4xf32, #tpu.memory_space<vmem>>, vector<1x4xf32>
    %185 = vector.broadcast %184 : vector<1x4xf32> to vector<256x4xf32>
    %186 = arith.addf %183, %185 : vector<256x4xf32>
    %cst_76 = arith.constant 0.000000e+00 : f32
    %187 = vector.broadcast %cst_76 : f32 to vector<256x4xf32>
    %188 = arith.maximumf %186, %187 : vector<256x4xf32>
    %189 = vector.shape_cast %188 : vector<256x4xf32> to vector<16x16x4xf32>
    %c0_77 = arith.constant 0 : index
    %c0_78 = arith.constant 0 : index
    %c0_79 = arith.constant 0 : index
    %c0_80 = arith.constant 0 : index
    %190 = vector.load %arg8[%c0_77, %c0_78, %c0_79, %c0_80] : memref<1x16x16x4xf32, #tpu.memory_space<vmem>>, vector<1x16x16x4xf32>
    %191 = vector.shape_cast %190 : vector<1x16x16x4xf32> to vector<16x16x4xf32>
    %192 = vector.shape_cast %189 : vector<16x16x4xf32> to vector<1x16x16x4xf32>
    tpu.vector_store %arg8[%c0_77, %c0_78, %c0_79, %c0_80], %192 {strides = array<i32>} : memref<1x16x16x4xf32, #tpu.memory_space<vmem>>, vector<1x16x16x4xf32>,
    return
  }
  func.func @transform_0(%arg0: i32) -> (i32, i32, i32, i32) {
    %c0_i32 = arith.constant 0 : i32
    %c0_i32_0 = arith.constant 0 : i32
    %c0_i32_1 = arith.constant 0 : i32
    %c0_i32_2 = arith.constant 0 : i32
    return %arg0, %c0_i32, %c0_i32_0, %c0_i32_1 : i32, i32, i32, i32
  }
  func.func @transform_1(%arg0: i32) -> (i32, i32) {
    %c0_i32 = arith.constant 0 : i32
    %c0_i32_0 = arith.constant 0 : i32
    %c0_i32_1 = arith.constant 0 : i32
    return %c0_i32, %c0_i32_0 : i32, i32
  }
  func.func @transform_2(%arg0: i32) -> (i32, i32) {
    %c0_i32 = arith.constant 0 : i32
    %c0_i32_0 = arith.constant 0 : i32
    %c0_i32_1 = arith.constant 0 : i32
    return %c0_i32, %c0_i32_0 : i32, i32
  }
  func.func @transform_3(%arg0: i32) -> (i32, i32, i32) {
    %c0_i32 = arith.constant 0 : i32
    %c0_i32_0 = arith.constant 0 : i32
    %c0_i32_1 = arith.constant 0 : i32
    %c0_i32_2 = arith.constant 0 : i32
    return %c0_i32, %c0_i32_0, %c0_i32_1 : i32, i32, i32
  }
  func.func @transform_4(%arg0: i32) -> (i32, i32) {
    %c0_i32 = arith.constant 0 : i32
    %c0_i32_0 = arith.constant 0 : i32
    %c0_i32_1 = arith.constant 0 : i32
    return %c0_i32, %c0_i32_0 : i32, i32
  }
  func.func @transform_5(%arg0: i32) -> (i32, i32, i32) {
    %c0_i32 = arith.constant 0 : i32
    %c0_i32_0 = arith.constant 0 : i32
    %c0_i32_1 = arith.constant 0 : i32
    %c0_i32_2 = arith.constant 0 : i32
    return %c0_i32, %c0_i32_0, %c0_i32_1 : i32, i32, i32
  }
  func.func @transform_6(%arg0: i32) -> (i32, i32) {
    %c0_i32 = arith.constant 0 : i32
    %c0_i32_0 = arith.constant 0 : i32
    %c0_i32_1 = arith.constant 0 : i32
    return %c0_i32, %c0_i32_0 : i32, i32
  }
  func.func @transform_7(%arg0: i32) -> (i32, i32, i32, i32) {
    %c0_i32 = arith.constant 0 : i32
    %c0_i32_0 = arith.constant 0 : i32
    %c0_i32_1 = arith.constant 0 : i32
    %c0_i32_2 = arith.constant 0 : i32
    return %arg0, %c0_i32, %c0_i32_0, %c0_i32_1 : i32, i32, i32, i32
  }
}

</mosaic_0001>

<llo_original>
// kernel: tpu_custom_call.1
$region0: #{tpu_custom_call.1}
  #allocation0 [shape = 'u32[]', space=smem, size = 0x4, offset = 0x4, fixed_abs, tag = 'smem constant byte address 0x4 - core index']
  #allocation1 [shape = 'u32[144,128]{1,0:T(1,128)}', space=vmem, size = 0x12000, scoped, tag = 'internal scratch']
  #allocation2 [shape = 'f32[9,2,18,4]{3,2,1,0:T(8,128)}', space=vmem, size = 0x36000, scoped, tag = 'scratch operand']
  %s0 = inlined_call_operand.hbm [shape: f32[2,8,8,8], index: 0, kind: input, shape index: {}]
  %s1 = inlined_call_operand.vmem [shape: f32[8,16], index: 1, kind: input, shape index: {}]
  %s2 = inlined_call_operand.vmem [shape: f32[1,16], index: 2, kind: input, shape index: {}]
  %s3 = inlined_call_operand.vmem [shape: f32[3,12,4], index: 3, kind: input, shape index: {}]
  %s4 = inlined_call_operand.vmem [shape: f32[1,4], index: 4, kind: input, shape index: {}]
  %s5 = inlined_call_operand.vmem [shape: f32[3,12,4], index: 5, kind: input, shape index: {}]
  %s6 = inlined_call_operand.vmem [shape: f32[1,4], index: 6, kind: input, shape index: {}]
  %s7 = inlined_call_operand.vmem [shape: f32[2,16,16,4], index: 7, kind: output, shape index: {}]
  %s8 = sld [smem:[#allocation0]]
  $region65: #{tpu_custom_call.1} parent=0
    _
  %s10 = ssub.s32 1, %s8
  %s11 = scalar_select 0, %s10, %s8
  $region1: #{tpu_custom_call.1} parent=0
    #allocation3 [shape = 'u8[65536]{0}', space=vmem, size = 0x10000, scoped, tag = 'input window, operand 0']
    #allocation4 [shape = 's32[2]{0}', space=sflag, size = 0x8, scoped, tag = 'scoped memory for tpu_custom_call.1']
    %12 = vsyncpa [#allocation4], 0
    %s13 = scalar_lea.sflag [#allocation4], 1
    %14 = vsyncpa %s13, 0
    loop: start=0, step=1, limit=4
    $region2: #{tpu_custom_call.1} parent=1 // loop_pre_header
      _
    $region3: #{tpu_custom_call.1} parent=1 // loop_header
      %s16 = sphi 0, %s20
      %p17 = scmp.ge.s32.totalorder %s16, 4
      %s26 = sphi 0, %s28
      %s29 = sphi 0, %s26
      %s30 = sphi 0, %s29
      %s46 = sphi 0, %s30
      %s50 = sphi 0, %s50
      %s52 = sphi 0, %s50
      %s53 = sphi 0, %s52
      %s67 = sphi 0, %s53
      %s71 = sphi 0, %s71
      %s73 = sphi 0, %s71
      %s74 = sphi 0, %s73
      %s88 = sphi 0, %s74
      %s92 = sphi 0, %s92
      %s94 = sphi 0, %s92
      %s95 = sphi 0, %s94
      %s109 = sphi 0, %s95
      %s113 = sphi 0, %s113
      %s115 = sphi 0, %s113
      %s116 = sphi 0, %s115
      %s130 = sphi 0, %s116
      %s134 = sphi 0, %s134
      %s136 = sphi 0, %s134
      %s137 = sphi 0, %s136
      %s151 = sphi 0, %s137
      %s155 = sphi 0, %s155
      %s157 = sphi 0, %s155
      %s158 = sphi 0, %s157
      %s172 = sphi 0, %s158
      %s178 = sphi 0, %s180
      %s181 = sphi 0, %s178
      %s182 = sphi 0, %s181
      %s198 = sphi 0, %s182
    $region4: #{tpu_custom_call.1} parent=1 // loop_header_branch
      %19 = sbr.rel (%p17) target = $region8
    $region5: #{tpu_custom_call.1} parent=1 // loop_body
      %s21 = ssub.s32 %s16, 1
      %s22 = ssub.s32 %s16, 2
      %s23 = sadd.s32 %s16, 1
      %s24 = ssub.s32 %s16, %s23
      %p25 = scmp.eq.s32.totalorder %s24, 0
      %s27 = sadd.s32 %s26, 1
      %s28 = scalar_select %p25, %s26, %s27
      %p31 = pneg %p25
      %p32 = scmp.eq.s32.totalorder %s16, 1
      %p33 = por %p31, %p32
      %p34 = scmp.ne.s32.totalorder %s26, %s29
      %p35 = scmp.eq.s32.totalorder %s16, 0
      %p36 = por %p34, %p35
      %p37 = scmp.ne.s32.totalorder %s26, %s29
      %p38 = scmp.eq.s32.totalorder %s21, 1
      %p39 = por %p37, %p38
      %p40 = scmp.ne.s32.totalorder %s29, %s30
      %p41 = scmp.eq.s32.totalorder %s21, 0
      %p42 = por %p40, %p41
      %p43 = scmp.ne.s32.totalorder %s29, %s30
      %p44 = scmp.eq.s32.totalorder %s22, 1
      %p45 = por %p43, %p44
      %p47 = scmp.ne.s32.totalorder %s30, %s46
      %p48 = scmp.eq.s32.totalorder %s22, 0
      %p49 = por %p47, %p48
      %s51 = sadd.s32 %s50, 1
      %p54 = scmp.eq.s32.totalorder %s16, 1
      %p55 = scmp.ne.s32.totalorder %s50, %s52
      %p56 = scmp.eq.s32.totalorder %s16, 0
      %p57 = por %p55, %p56
      %p58 = scmp.ne.s32.totalorder %s50, %s52
      %p59 = scmp.eq.s32.totalorder %s21, 1
      %p60 = por %p58, %p59
      %p61 = scmp.ne.s32.totalorder %s52, %s53
      %p62 = scmp.eq.s32.totalorder %s21, 0
      %p63 = por %p61, %p62
      %p64 = scmp.ne.s32.totalorder %s52, %s53
      %p65 = scmp.eq.s32.totalorder %s22, 1
      %p66 = por %p64, %p65
      %p68 = scmp.ne.s32.totalorder %s53, %s67
      %p69 = scmp.eq.s32.totalorder %s22, 0
      %p70 = por %p68, %p69
      %s72 = sadd.s32 %s71, 1
      %p75 = scmp.eq.s32.totalorder %s16, 1
      %p76 = scmp.ne.s32.totalorder %s71, %s73
      %p77 = scmp.eq.s32.totalorder %s16, 0
      %p78 = por %p76, %p77
      %p79 = scmp.ne.s32.totalorder %s71, %s73
      %p80 = scmp.eq.s32.totalorder %s21, 1
      %p81 = por %p79, %p80
      %p82 = scmp.ne.s32.totalorder %s73, %s74
      %p83 = scmp.eq.s32.totalorder %s21, 0
      %p84 = por %p82, %p83
      %p85 = scmp.ne.s32.totalorder %s73, %s74
      %p86 = scmp.eq.s32.totalorder %s22, 1
      %p87 = por %p85, %p86
      %p89 = scmp.ne.s32.totalorder %s74, %s88
      %p90 = scmp.eq.s32.totalorder %s22, 0
      %p91 = por %p89, %p90
      %s93 = sadd.s32 %s92, 1
      %p96 = scmp.eq.s32.totalorder %s16, 1
      %p97 = scmp.ne.s32.totalorder %s92, %s94
      %p98 = scmp.eq.s32.totalorder %s16, 0
      %p99 = por %p97, %p98
      %p100 = scmp.ne.s32.totalorder %s92, %s94
      %p101 = scmp.eq.s32.totalorder %s21, 1
      %p102 = por %p100, %p101
      %p103 = scmp.ne.s32.totalorder %s94, %s95
      %p104 = scmp.eq.s32.totalorder %s21, 0
      %p105 = por %p103, %p104
      %p106 = scmp.ne.s32.totalorder %s94, %s95
      %p107 = scmp.eq.s32.totalorder %s22, 1
      %p108 = por %p106, %p107
      %p110 = scmp.ne.s32.totalorder %s95, %s109
      %p111 = scmp.eq.s32.totalorder %s22, 0
      %p112 = por %p110, %p111
      %s114 = sadd.s32 %s113, 1
      %p117 = scmp.eq.s32.totalorder %s16, 1
      %p118 = scmp.ne.s32.totalorder %s113, %s115
      %p119 = scmp.eq.s32.totalorder %s16, 0
      %p120 = por %p118, %p119
      %p121 = scmp.ne.s32.totalorder %s113, %s115
      %p122 = scmp.eq.s32.totalorder %s21, 1
      %p123 = por %p121, %p122
      %p124 = scmp.ne.s32.totalorder %s115, %s116
      %p125 = scmp.eq.s32.totalorder %s21, 0
      %p126 = por %p124, %p125
      %p127 = scmp.ne.s32.totalorder %s115, %s116
      %p128 = scmp.eq.s32.totalorder %s22, 1
      %p129 = por %p127, %p128
      %p131 = scmp.ne.s32.totalorder %s116, %s130
      %p132 = scmp.eq.s32.totalorder %s22, 0
      %p133 = por %p131, %p132
      %s135 = sadd.s32 %s134, 1
      %p138 = scmp.eq.s32.totalorder %s16, 1
      %p139 = scmp.ne.s32.totalorder %s134, %s136
      %p140 = scmp.eq.s32.totalorder %s16, 0
      %p141 = por %p139, %p140
      %p142 = scmp.ne.s32.totalorder %s134, %s136
      %p143 = scmp.eq.s32.totalorder %s21, 1
      %p144 = por %p142, %p143
      %p145 = scmp.ne.s32.totalorder %s136, %s137
      %p146 = scmp.eq.s32.totalorder %s21, 0
      %p147 = por %p145, %p146
      %p148 = scmp.ne.s32.totalorder %s136, %s137
      %p149 = scmp.eq.s32.totalorder %s22, 1
      %p150 = por %p148, %p149
      %p152 = scmp.ne.s32.totalorder %s137, %s151
      %p153 = scmp.eq.s32.totalorder %s22, 0
      %p154 = por %p152, %p153
      %s156 = sadd.s32 %s155, 1
      %p159 = scmp.eq.s32.totalorder %s16, 1
      %p160 = scmp.ne.s32.totalorder %s155, %s157
      %p161 = scmp.eq.s32.totalorder %s16, 0
      %p162 = por %p160, %p161
      %p163 = scmp.ne.s32.totalorder %s155, %s157
      %p164 = scmp.eq.s32.totalorder %s21, 1
      %p165 = por %p163, %p164
      %p166 = scmp.ne.s32.totalorder %s157, %s158
      %p167 = scmp.eq.s32.totalorder %s21, 0
      %p168 = por %p166, %p167
      %p169 = scmp.ne.s32.totalorder %s157, %s158
      %p170 = scmp.eq.s32.totalorder %s22, 1
      %p171 = por %p169, %p170
      %p173 = scmp.ne.s32.totalorder %s158, %s172
      %p174 = scmp.eq.s32.totalorder %s22, 0
      %p175 = por %p173, %p174
      %s176 = ssub.s32 %s16, %s23
      %p177 = scmp.eq.s32.totalorder %s176, 0
      %s179 = sadd.s32 %s178, 1
      %s180 = scalar_select %p177, %s178, %s179
      %p183 = pneg %p177
      %p184 = scmp.eq.s32.totalorder %s16, 1
      %p185 = por %p183, %p184
      %p186 = scmp.ne.s32.totalorder %s178, %s181
      %p187 = scmp.eq.s32.totalorder %s16, 0
      %p188 = por %p186, %p187
      %p189 = scmp.ne.s32.totalorder %s178, %s181
      %p190 = scmp.eq.s32.totalorder %s21, 1
      %p191 = por %p189, %p190
      %p192 = scmp.ne.s32.totalorder %s181, %s182
      %p193 = scmp.eq.s32.totalorder %s21, 0
      %p194 = por %p192, %p193
      %p195 = scmp.ne.s32.totalorder %s181, %s182
      %p196 = scmp.eq.s32.totalorder %s22, 1
      %p197 = por %p195, %p196
      %p199 = scmp.ne.s32.totalorder %s182, %s198
      %p200 = scmp.eq.s32.totalorder %s22, 0
      %p201 = por %p199, %p200
      %p202 = scmp.le.s32.totalorder 1, %s16
      %p203 = scmp.lt.s32.totalorder %s16, 3
      %p204 = pnand %p202, %p203
      %p205 = pneg %p204
      // Predicated region
      $region9: #{tpu_custom_call.1} parent=5 // pred_check
        _
      $region10: #{tpu_custom_call.1} parent=5 // pred_check_branch
        %207 = sbr.rel (%p204) target = $region12
      $region11: #{tpu_custom_call.1} parent=5 // pred_region
        %s208 = ssub.s32 %s16, 1
        // Predicated region
        $region13: #{tpu_custom_call.1} parent=11 // pred_check
          %p209 = pneg %p63
        $region14: #{tpu_custom_call.1} parent=11 // pred_check_branch
          %211 = sbr.rel (%p209) target = $region16
        $region15: #{tpu_custom_call.1} parent=11 // pred_region
          _
        $region16: #{tpu_custom_call.1} parent=11 // pred_fallthru
          _
        // Predicated region
        $region17: #{tpu_custom_call.1} parent=11 // pred_check
          %p212 = pneg %p84
        $region18: #{tpu_custom_call.1} parent=11 // pred_check_branch
          %214 = sbr.rel (%p212) target = $region20
        $region19: #{tpu_custom_call.1} parent=11 // pred_region
          _
        $region20: #{tpu_custom_call.1} parent=11 // pred_fallthru
          _
        // Predicated region
        $region21: #{tpu_custom_call.1} parent=11 // pred_check
          %p215 = pneg %p105
        $region22: #{tpu_custom_call.1} parent=11 // pred_check_branch
          %217 = sbr.rel (%p215) target = $region24
        $region23: #{tpu_custom_call.1} parent=11 // pred_region
          _
        $region24: #{tpu_custom_call.1} parent=11 // pred_fallthru
          _
        // Predicated region
        $region25: #{tpu_custom_call.1} parent=11 // pred_check
          %p218 = pneg %p126
        $region26: #{tpu_custom_call.1} parent=11 // pred_check_branch
          %220 = sbr.rel (%p218) target = $region28
        $region27: #{tpu_custom_call.1} parent=11 // pred_region
          _
        $region28: #{tpu_custom_call.1} parent=11 // pred_fallthru
          _
        // Predicated region
        $region29: #{tpu_custom_call.1} parent=11 // pred_check
          %p221 = pneg %p147
        $region30: #{tpu_custom_call.1} parent=11 // pred_check_branch
          %223 = sbr.rel (%p221) target = $region32
        $region31: #{tpu_custom_call.1} parent=11 // pred_region
          _
        $region32: #{tpu_custom_call.1} parent=11 // pred_fallthru
          _
        // Predicated region
        $region33: #{tpu_custom_call.1} parent=11 // pred_check
          %p224 = pneg %p168
        $region34: #{tpu_custom_call.1} parent=11 // pred_check_branch
          %226 = sbr.rel (%p224) target = $region36
        $region35: #{tpu_custom_call.1} parent=11 // pred_region
          _
        $region36: #{tpu_custom_call.1} parent=11 // pred_fallthru
          _
      $region12: #{tpu_custom_call.1} parent=5 // pred_fallthru
        _
      %p227 = scmp.lt.s32.totalorder %s16, 2
      // Predicated region
      $region37: #{tpu_custom_call.1} parent=5 // pred_check
        %p228 = pneg %p227
      $region38: #{tpu_custom_call.1} parent=5 // pred_check_branch
        %230 = sbr.rel (%p228) target = $region40
      $region39: #{tpu_custom_call.1} parent=5 // pred_region
        // Predicated region
        $region41: #{tpu_custom_call.1} parent=39 // pred_check
          %p231 = pneg %p36
        $region42: #{tpu_custom_call.1} parent=39 // pred_check_branch
          %233 = sbr.rel (%p231) target = $region44
        $region43: #{tpu_custom_call.1} parent=39 // pred_region
          %s234 = sand.u32 %s26, 1
          %s235 = scalar_lea.sflag [#allocation4], %s234
          %s236 = sand.u32 %s26, 1
          %s237 = smul.addr %s236, 64
          %s238 = scalar_lea.vmem [#allocation3], %s237
          %s240 = ssub.s32 1024, 1024
          %241 = vsyncadd %s235, %s240
          %s242 = smul.addr %s16, 8
          %s243 = smul.addr %s242, 128
          %s244 = scalar_lea.hbm %s0, %s243
          %s245 = sshll.u32 %s238, 4
          %s246 = int_to_ptr.vmem [resolvable:$true] %s245
          %251 = dma.hbm_to_vmem [thread:$0]  %s244, 1024, %s246, %s235, 128, 128, 8
        $region44: #{tpu_custom_call.1} parent=39 // pred_fallthru
          _
      $region40: #{tpu_custom_call.1} parent=5 // pred_fallthru
        _
      %p252 = scmp.le.s32.totalorder 1, %s16
      %p253 = scmp.lt.s32.totalorder %s16, 3
      %p254 = pnand %p252, %p253
      %p255 = pneg %p254
      // Predicated region
      $region45: #{tpu_custom_call.1} parent=5 // pred_check
        _
      $region46: #{tpu_custom_call.1} parent=5 // pred_check_branch
        %257 = sbr.rel (%p254) target = $region48
      $region47: #{tpu_custom_call.1} parent=5 // pred_region
        %s258 = ssub.s32 %s16, 1
        %s259 = sand.u32 %s29, 1
        %s260 = scalar_lea.sflag [#allocation4], %s259
        %s261 = sand.u32 %s29, 1
        %s262 = smul.addr %s261, 64
        %s263 = scalar_lea.vmem [#allocation3], %s262
        // Predicated region
        $region49: #{tpu_custom_call.1} parent=47 // pred_check
          %p264 = pneg %p42
        $region50: #{tpu_custom_call.1} parent=47 // pred_check_branch
          %266 = sbr.rel (%p264) target = $region52
        $region51: #{tpu_custom_call.1} parent=47 // pred_region
          %267 = dma.done %s260, 1024
        $region52: #{tpu_custom_call.1} parent=47 // pred_fallthru
          _
        %s268 = sand.u32 %s29, 1
        %s269 = scalar_lea.sflag [#allocation4], %s268
        %s270 = sand.u32 %s29, 1
        %s271 = smul.addr %s270, 64
        %s272 = scalar_lea.vmem [#allocation3], %s271
        %p273 = pneg %p42
        %p274 = pneg %p39
        %p275 = pneg %p63
        %p276 = pneg %p60
        %p277 = pneg %p84
        %p278 = pneg %p81
        %p279 = pneg %p105
        %p280 = pneg %p102
        %p281 = pneg %p126
        %p282 = pneg %p123
        %p283 = pneg %p147
        %p284 = pneg %p144
        %p285 = pneg %p168
        %p286 = pneg %p165
        %p287 = pneg %p194
        %p288 = pneg %p191
        %p289 = scmp.lt.s32.totalorder %s21, 1
        %s290 = scalar_select %p289, %s21, 1
        %s291 = smul.addr %s290, 32
        %s292 = smul.addr %s291, 8
        %s293 = scalar_lea.vmem %s7, %s292
        %p294 = scmp.lt.s32.totalorder %s21, 1
        %s295 = scalar_select %p294, %s21, 1
        %s296 = smul.addr %s295, 32
        %s297 = smul.addr %s296, 8
        %s298 = scalar_lea.vmem %s7, %s297
        %vm299 = vcmask 31744
        %300 = vst.msk [vmem:[#allocation2] sm:$0xff] %vm299, 0.0
        %301 = vst.msk [vmem:[#allocation2 + $0x8] sm:$0xff] %vm299, 0.0
        %vm302 = vcmask 25600
        %303 = vst.msk [vmem:[#allocation2 + $0x10] sm:$0x3] %vm302, 0.0
        %s304 = scalar_lea.vmem [#allocation2], 408
        %305 = vst.msk [vmem:[%s304] sm:$0xff] %vm299, 0.0
        %306 = vst.msk [vmem:[%s304 + $0x8] sm:$0xff] %vm299, 0.0
        %307 = vst.msk [vmem:[%s304 + $0x10] sm:$0x3] %vm302, 0.0
        %vm308 = vcmask 24576
        %309 = vst.msk [vmem:[#allocation2] sm:$0x1] %vm308, 0.0
        %310 = vst.msk [vmem:[#allocation2 + $0x18] sm:$0x1] %vm308, 0.0
        %311 = vst.msk [vmem:[#allocation2 + $0x30] sm:$0x1] %vm308, 0.0
        %312 = vst.msk [vmem:[#allocation2 + $0x48] sm:$0x1] %vm308, 0.0
        %313 = vst.msk [vmem:[#allocation2 + $0x60] sm:$0x1] %vm308, 0.0
        %314 = vst.msk [vmem:[#allocation2 + $0x78] sm:$0x1] %vm308, 0.0
        %315 = vst.msk [vmem:[#allocation2 + $0x90] sm:$0x1] %vm308, 0.0
        %316 = vst.msk [vmem:[#allocation2 + $0xa8] sm:$0x1] %vm308, 0.0
        %317 = vst.msk [vmem:[#allocation2 + $0xc0] sm:$0x1] %vm308, 0.0
        %318 = vst.msk [vmem:[#allocation2 + $0xd8] sm:$0x1] %vm308, 0.0
        %319 = vst.msk [vmem:[#allocation2 + $0xf0] sm:$0x1] %vm308, 0.0
        %320 = vst.msk [vmem:[#allocation2 + $0x108] sm:$0x1] %vm308, 0.0
        %321 = vst.msk [vmem:[#allocation2 + $0x120] sm:$0x1] %vm308, 0.0
        %322 = vst.msk [vmem:[#allocation2 + $0x138] sm:$0x1] %vm308, 0.0
        %323 = vst.msk [vmem:[#allocation2 + $0x150] sm:$0x1] %vm308, 0.0
        %324 = vst.msk [vmem:[#allocation2 + $0x168] sm:$0x1] %vm308, 0.0
        %325 = vst.msk [vmem:[#allocation2 + $0x180] sm:$0x1] %vm308, 0.0
        %326 = vst.msk [vmem:[#allocation2 + $0x198] sm:$0x1] %vm308, 0.0
        %327 = vst.msk [vmem:[#allocation2 + $0x11] sm:$0x1] %vm308, 0.0
        %328 = vst.msk [vmem:[#allocation2 + $0x29] sm:$0x1] %vm308, 0.0
        %329 = vst.msk [vmem:[#allocation2 + $0x41] sm:$0x1] %vm308, 0.0
        %330 = vst.msk [vmem:[#allocation2 + $0x59] sm:$0x1] %vm308, 0.0
        %331 = vst.msk [vmem:[#allocation2 + $0x71] sm:$0x1] %vm308, 0.0
        %332 = vst.msk [vmem:[#allocation2 + $0x89] sm:$0x1] %vm308, 0.0
        %333 = vst.msk [vmem:[#allocation2 + $0xa1] sm:$0x1] %vm308, 0.0
        %334 = vst.msk [vmem:[#allocation2 + $0xb9] sm:$0x1] %vm308, 0.0
        %335 = vst.msk [vmem:[#allocation2 + $0xd1] sm:$0x1] %vm308, 0.0
        %336 = vst.msk [vmem:[#allocation2 + $0xe9] sm:$0x1] %vm308, 0.0
        %337 = vst.msk [vmem:[#allocation2 + $0x101] sm:$0x1] %vm308, 0.0
        %338 = vst.msk [vmem:[#allocation2 + $0x119] sm:$0x1] %vm308, 0.0
        %339 = vst.msk [vmem:[#allocation2 + $0x131] sm:$0x1] %vm308, 0.0
        %340 = vst.msk [vmem:[#allocation2 + $0x149] sm:$0x1] %vm308, 0.0
        %341 = vst.msk [vmem:[#allocation2 + $0x161] sm:$0x1] %vm308, 0.0
        %342 = vst.msk [vmem:[#allocation2 + $0x179] sm:$0x1] %vm308, 0.0
        %343 = vst.msk [vmem:[#allocation2 + $0x191] sm:$0x1] %vm308, 0.0
        %344 = vst.msk [vmem:[#allocation2 + $0x1a9] sm:$0x1] %vm308, 0.0
        %v345 = vld [vmem:[%s263] sm:$0xff]
        %v346 = vld [vmem:[%s263 + $0x8] sm:$0xff]
        %v347 = vld [vmem:[%s263 + $0x10] sm:$0xff]
        %v348 = vld [vmem:[%s263 + $0x18] sm:$0xff]
        %v349 = vld [vmem:[%s263 + $0x20] sm:$0xff]
        %v350 = vld [vmem:[%s263 + $0x28] sm:$0xff]
        %v351 = vld [vmem:[%s263 + $0x30] sm:$0xff]
        %v352 = vld [vmem:[%s263 + $0x38] sm:$0xff]
        %v353 = vld [vmem:[%s1] sm:$0xff]
        %v354 = vld [vmem:[%s2] sm:$0x1]
        %v356 = vlaneseq
        %v357 = vshrl.u32 %v356, 7
        %v358 = vsub.s32 0, %v357
        %v359 = vrot.slane %v354, %v358
        %vm361 = vcmask 64512
        %v363 = vsel %vm361, %v345, 0
        %v366 = vsel %vm361, %v346, 0
        %v369 = vsel %vm361, %v347, 0
        %v372 = vsel %vm361, %v348, 0
        %v375 = vsel %vm361, %v349, 0
        %v378 = vsel %vm361, %v350, 0
        %v381 = vsel %vm361, %v351, 0
        %v384 = vsel %vm361, %v352, 0
        %386 = vmatprep.subr.mxu0 0.0
        %387 = vmatpush1.msra.mxu0 0.0
        %388 = vmatprep.subr.mxu0 0.0
        %389 = vmatpush1.msra.mxu0 0.0
        %390 = vmatprep.subr.mxu0 0.0
        %391 = vmatpush1.msra.mxu0 0.0
        %392 = vmatprep.subr.mxu0 0.0
        %393 = vmatpush1.msra.mxu0 0.0
        %394 = vmatprep.subr.mxu0 0.0
        %395 = vmatpush1.msra.mxu0 0.0
        %396 = vmatprep.subr.mxu0 0.0
        %397 = vmatpush1.msra.mxu0 0.0
        %398 = vmatprep.subr.mxu0 0.0
        %399 = vmatpush1.msra.mxu0 0.0
        %400 = vmatprep.subr.mxu0 0.0
        %401 = vmatpush1.msra.mxu0 0.0
        %402 = vmatprep.subr.mxu0 0.0
        %403 = vmatpush1.msra.mxu0 0.0
        %404 = vmatprep.subr.mxu0 0.0
        %405 = vmatpush1.msra.mxu0 0.0
        %406 = vmatprep.subr.mxu0 0.0
        %407 = vmatpush1.msra.mxu0 0.0
        %408 = vmatprep.subr.mxu0 0.0
        %409 = vmatpush1.msra.mxu0 0.0
        %410 = vmatprep.subr.mxu0 0.0
        %411 = vmatpush1.msra.mxu0 0.0
        %412 = vmatprep.subr.mxu0 0.0
        %413 = vmatpush1.msra.mxu0 0.0
        %414 = vmatprep.subr.mxu0 0.0
        %415 = vmatpush1.msra.mxu0 0.0
        %416 = vmatprep.subr.mxu0 0.0
        %417 = vmatpush1.msra.mxu0 %v353
        %418 = vmatprep.subr.mxu0 0.0
        %419 = vmatpush2.msra.mxu0 0.0
        %420 = vmatprep.subr.mxu0 0.0
        %421 = vmatpush2.msra.mxu0 0.0
        %422 = vmatprep.subr.mxu0 0.0
        %423 = vmatpush2.msra.mxu0 0.0
        %424 = vmatprep.subr.mxu0 0.0
        %425 = vmatpush2.msra.mxu0 0.0
        %426 = vmatprep.subr.mxu0 0.0
        %427 = vmatpush2.msra.mxu0 0.0
        %428 = vmatprep.subr.mxu0 0.0
        %429 = vmatpush2.msra.mxu0 0.0
        %430 = vmatprep.subr.mxu0 0.0
        %431 = vmatpush2.msra.mxu0 0.0
        %432 = vmatprep.subr.mxu0 0.0
        %433 = vmatpush2.msra.mxu0 0.0
        %434 = vmatprep.subr.mxu0 0.0
        %435 = vmatpush2.msra.mxu0 0.0
        %436 = vmatprep.subr.mxu0 0.0
        %437 = vmatpush2.msra.mxu0 0.0
        %438 = vmatprep.subr.mxu0 0.0
        %439 = vmatpush2.msra.mxu0 0.0
        %440 = vmatprep.subr.mxu0 0.0
        %441 = vmatpush2.msra.mxu0 0.0
        %442 = vmatprep.subr.mxu0 0.0
        %443 = vmatpush2.msra.mxu0 0.0
        %444 = vmatprep.subr.mxu0 0.0
        %445 = vmatpush2.msra.mxu0 0.0
        %446 = vmatprep.subr.mxu0 0.0
        %447 = vmatpush2.msra.mxu0 0.0
        %448 = vmatprep.subr.mxu0 0.0
        %449 = vmatpush2.msra.mxu0 0.0
        %450 = vmatprep.mubr.f32.mxu0 0.0
        %451 = vmatmul.mubr.f32.gmra.mxu0 %v363
        %v452 = vpop.f32.mrf.mxu0
        %v453 = vadd.f32 %v359, %v452
        %v454 = vpop.f32.mrf.mxu0
        %455 = vmatprep.mubr.f32.mxu0 0.0
        %456 = vmatmul.mubr.f32.gmra.mxu0 %v366
        %v457 = vpop.f32.mrf.mxu0
        %v458 = vadd.f32 %v359, %v457
        %v459 = vpop.f32.mrf.mxu0
        %460 = vmatprep.mubr.f32.mxu0 0.0
        %461 = vmatmul.mubr.f32.gmra.mxu0 %v369
        %v462 = vpop.f32.mrf.mxu0
        %v463 = vadd.f32 %v359, %v462
        %v464 = vpop.f32.mrf.mxu0
        %465 = vmatprep.mubr.f32.mxu0 0.0
        %466 = vmatmul.mubr.f32.gmra.mxu0 %v372
        %v467 = vpop.f32.mrf.mxu0
        %v468 = vadd.f32 %v359, %v467
        %v469 = vpop.f32.mrf.mxu0
        %470 = vmatprep.mubr.f32.mxu0 0.0
        %471 = vmatmul.mubr.f32.gmra.mxu0 %v375
        %v472 = vpop.f32.mrf.mxu0
        %v473 = vadd.f32 %v359, %v472
        %v474 = vpop.f32.mrf.mxu0
        %475 = vmatprep.mubr.f32.mxu0 0.0
        %476 = vmatmul.mubr.f32.gmra.mxu0 %v378
        %v477 = vpop.f32.mrf.mxu0
        %v478 = vadd.f32 %v359, %v477
        %v479 = vpop.f32.mrf.mxu0
        %480 = vmatprep.mubr.f32.mxu0 0.0
        %481 = vmatmul.mubr.f32.gmra.mxu0 %v381
        %v482 = vpop.f32.mrf.mxu0
        %v483 = vadd.f32 %v359, %v482
        %v484 = vpop.f32.mrf.mxu0
        %485 = vmatprep.mubr.f32.mxu0 0.0
        %486 = vmatmul.mubr.f32.gmra.mxu0 %v384
        %v487 = vpop.f32.mrf.mxu0
        %v488 = vadd.f32 %v359, %v487
        %v489 = vpop.f32.mrf.mxu0
        %490 = vdwg.mxu0
        %v499 = vcombine.high %v453, %v453
        %v501 = vunpack.c.l.s4 1966171168
        %v502 = vunpack.c.0.s8 %v501
        %v503 = vlaneseq
        %v504 = vshrl.u32 %v503, 7
        %v505 = vsub.s32 %v502, %v504
        %v506 = vrot.slane %v453, %v505
        %v508 = vunpack.c.l.s4 1966171168
        %v509 = vunpack.c.0.s8 %v508
        %v510 = vlaneseq
        %v511 = vshrl.u32 %v510, 7
        %v512 = vsub.s32 %v509, %v511
        %v513 = vrot.slane %v499, %v512
        %v514 = vcombine.high %v506, %v506
        %v515 = vcombine.high %v513, %v513
        %v517 = vunpack.c.l.s4 1966171168
        %v518 = vunpack.c.0.s8 %v517
        %v519 = vlaneseq
        %v520 = vshrl.u32 %v519, 7
        %v521 = vsub.s32 %v518, %v520
        %v522 = vrot.slane %v506, %v521
        %v524 = vunpack.c.l.s4 1966171168
        %v525 = vunpack.c.0.s8 %v524
        %v526 = vlaneseq
        %v527 = vshrl.u32 %v526, 7
        %v528 = vsub.s32 %v525, %v527
        %v529 = vrot.slane %v513, %v528
        %v531 = vunpack.c.l.s4 1966171168
        %v532 = vunpack.c.0.s8 %v531
        %v533 = vlaneseq
        %v534 = vshrl.u32 %v533, 7
        %v535 = vsub.s32 %v532, %v534
        %v536 = vrot.slane %v514, %v535
        %v538 = vunpack.c.l.s4 1966171168
        %v539 = vunpack.c.0.s8 %v538
        %v540 = vlaneseq
        %v541 = vshrl.u32 %v540, 7
        %v542 = vsub.s32 %v539, %v541
        %v543 = vrot.slane %v515, %v542
        %v544 = vcombine.high %v522, %v522
        %v545 = vcombine.high %v529, %v529
        %v546 = vcombine.high %v536, %v536
        %v547 = vcombine.high %v543, %v543
        %v548 = vcombine.high %v458, %v458
        %v550 = vunpack.c.l.s4 1966171168
        %v551 = vunpack.c.0.s8 %v550
        %v552 = vlaneseq
        %v553 = vshrl.u32 %v552, 7
        %v554 = vsub.s32 %v551, %v553
        %v555 = vrot.slane %v458, %v554
        %v557 = vunpack.c.l.s4 1966171168
        %v558 = vunpack.c.0.s8 %v557
        %v559 = vlaneseq
        %v560 = vshrl.u32 %v559, 7
        %v561 = vsub.s32 %v558, %v560
        %v562 = vrot.slane %v548, %v561
        %v563 = vcombine.high %v555, %v555
        %v564 = vcombine.high %v562, %v562
        %v566 = vunpack.c.l.s4 1966171168
        %v567 = vunpack.c.0.s8 %v566
        %v568 = vlaneseq
        %v569 = vshrl.u32 %v568, 7
        %v570 = vsub.s32 %v567, %v569
        %v571 = vrot.slane %v555, %v570
        %v573 = vunpack.c.l.s4 1966171168
        %v574 = vunpack.c.0.s8 %v573
        %v575 = vlaneseq
        %v576 = vshrl.u32 %v575, 7
        %v577 = vsub.s32 %v574, %v576
        %v578 = vrot.slane %v562, %v577
        %v580 = vunpack.c.l.s4 1966171168
        %v581 = vunpack.c.0.s8 %v580
        %v582 = vlaneseq
        %v583 = vshrl.u32 %v582, 7
        %v584 = vsub.s32 %v581, %v583
        %v585 = vrot.slane %v563, %v584
        %v587 = vunpack.c.l.s4 1966171168
        %v588 = vunpack.c.0.s8 %v587
        %v589 = vlaneseq
        %v590 = vshrl.u32 %v589, 7
        %v591 = vsub.s32 %v588, %v590
        %v592 = vrot.slane %v564, %v591
        %v593 = vcombine.high %v571, %v571
        %v594 = vcombine.high %v578, %v578
        %v595 = vcombine.high %v585, %v585
        %v596 = vcombine.high %v592, %v592
        %v597 = vcombine.high %v463, %v463
        %v599 = vunpack.c.l.s4 1966171168
        %v600 = vunpack.c.0.s8 %v599
        %v601 = vlaneseq
        %v602 = vshrl.u32 %v601, 7
        %v603 = vsub.s32 %v600, %v602
        %v604 = vrot.slane %v463, %v603
        %v606 = vunpack.c.l.s4 1966171168
        %v607 = vunpack.c.0.s8 %v606
        %v608 = vlaneseq
        %v609 = vshrl.u32 %v608, 7
        %v610 = vsub.s32 %v607, %v609
        %v611 = vrot.slane %v597, %v610
        %v612 = vcombine.high %v604, %v604
        %v613 = vcombine.high %v611, %v611
        %v615 = vunpack.c.l.s4 1966171168
        %v616 = vunpack.c.0.s8 %v615
        %v617 = vlaneseq
        %v618 = vshrl.u32 %v617, 7
        %v619 = vsub.s32 %v616, %v618
        %v620 = vrot.slane %v604, %v619
        %v622 = vunpack.c.l.s4 1966171168
        %v623 = vunpack.c.0.s8 %v622
        %v624 = vlaneseq
        %v625 = vshrl.u32 %v624, 7
        %v626 = vsub.s32 %v623, %v625
        %v627 = vrot.slane %v611, %v626
        %v629 = vunpack.c.l.s4 1966171168
        %v630 = vunpack.c.0.s8 %v629
        %v631 = vlaneseq
        %v632 = vshrl.u32 %v631, 7
        %v633 = vsub.s32 %v630, %v632
        %v634 = vrot.slane %v612, %v633
        %v636 = vunpack.c.l.s4 1966171168
        %v637 = vunpack.c.0.s8 %v636
        %v638 = vlaneseq
        %v639 = vshrl.u32 %v638, 7
        %v640 = vsub.s32 %v637, %v639
        %v641 = vrot.slane %v613, %v640
        %v642 = vcombine.high %v620, %v620
        %v643 = vcombine.high %v627, %v627
        %v644 = vcombine.high %v634, %v634
        %v645 = vcombine.high %v641, %v641
        %v646 = vcombine.high %v468, %v468
        %v648 = vunpack.c.l.s4 1966171168
        %v649 = vunpack.c.0.s8 %v648
        %v650 = vlaneseq
        %v651 = vshrl.u32 %v650, 7
        %v652 = vsub.s32 %v649, %v651
        %v653 = vrot.slane %v468, %v652
        %v655 = vunpack.c.l.s4 1966171168
        %v656 = vunpack.c.0.s8 %v655
        %v657 = vlaneseq
        %v658 = vshrl.u32 %v657, 7
        %v659 = vsub.s32 %v656, %v658
        %v660 = vrot.slane %v646, %v659
        %v661 = vcombine.high %v653, %v653
        %v662 = vcombine.high %v660, %v660
        %v664 = vunpack.c.l.s4 1966171168
        %v665 = vunpack.c.0.s8 %v664
        %v666 = vlaneseq
        %v667 = vshrl.u32 %v666, 7
        %v668 = vsub.s32 %v665, %v667
        %v669 = vrot.slane %v653, %v668
        %v671 = vunpack.c.l.s4 1966171168
        %v672 = vunpack.c.0.s8 %v671
        %v673 = vlaneseq
        %v674 = vshrl.u32 %v673, 7
        %v675 = vsub.s32 %v672, %v674
        %v676 = vrot.slane %v660, %v675
        %v678 = vunpack.c.l.s4 1966171168
        %v679 = vunpack.c.0.s8 %v678
        %v680 = vlaneseq
        %v681 = vshrl.u32 %v680, 7
        %v682 = vsub.s32 %v679, %v681
        %v683 = vrot.slane %v661, %v682
        %v685 = vunpack.c.l.s4 1966171168
        %v686 = vunpack.c.0.s8 %v685
        %v687 = vlaneseq
        %v688 = vshrl.u32 %v687, 7
        %v689 = vsub.s32 %v686, %v688
        %v690 = vrot.slane %v662, %v689
        %v691 = vcombine.high %v669, %v669
        %v692 = vcombine.high %v676, %v676
        %v693 = vcombine.high %v683, %v683
        %v694 = vcombine.high %v690, %v690
        %v695 = vcombine.high %v473, %v473
        %v697 = vunpack.c.l.s4 1966171168
        %v698 = vunpack.c.0.s8 %v697
        %v699 = vlaneseq
        %v700 = vshrl.u32 %v699, 7
        %v701 = vsub.s32 %v698, %v700
        %v702 = vrot.slane %v473, %v701
        %v704 = vunpack.c.l.s4 1966171168
        %v705 = vunpack.c.0.s8 %v704
        %v706 = vlaneseq
        %v707 = vshrl.u32 %v706, 7
        %v708 = vsub.s32 %v705, %v707
        %v709 = vrot.slane %v695, %v708
        %v710 = vcombine.high %v702, %v702
        %v711 = vcombine.high %v709, %v709
        %v713 = vunpack.c.l.s4 1966171168
        %v714 = vunpack.c.0.s8 %v713
        %v715 = vlaneseq
        %v716 = vshrl.u32 %v715, 7
        %v717 = vsub.s32 %v714, %v716
        %v718 = vrot.slane %v702, %v717
        %v720 = vunpack.c.l.s4 1966171168
        %v721 = vunpack.c.0.s8 %v720
        %v722 = vlaneseq
        %v723 = vshrl.u32 %v722, 7
        %v724 = vsub.s32 %v721, %v723
        %v725 = vrot.slane %v709, %v724
        %v727 = vunpack.c.l.s4 1966171168
        %v728 = vunpack.c.0.s8 %v727
        %v729 = vlaneseq
        %v730 = vshrl.u32 %v729, 7
        %v731 = vsub.s32 %v728, %v730
        %v732 = vrot.slane %v710, %v731
        %v734 = vunpack.c.l.s4 1966171168
        %v735 = vunpack.c.0.s8 %v734
        %v736 = vlaneseq
        %v737 = vshrl.u32 %v736, 7
        %v738 = vsub.s32 %v735, %v737
        %v739 = vrot.slane %v711, %v738
        %v740 = vcombine.high %v718, %v718
        %v741 = vcombine.high %v725, %v725
        %v742 = vcombine.high %v732, %v732
        %v743 = vcombine.high %v739, %v739
        %v744 = vcombine.high %v478, %v478
        %v746 = vunpack.c.l.s4 1966171168
        %v747 = vunpack.c.0.s8 %v746
        %v748 = vlaneseq
        %v749 = vshrl.u32 %v748, 7
        %v750 = vsub.s32 %v747, %v749
        %v751 = vrot.slane %v478, %v750
        %v753 = vunpack.c.l.s4 1966171168
        %v754 = vunpack.c.0.s8 %v753
        %v755 = vlaneseq
        %v756 = vshrl.u32 %v755, 7
        %v757 = vsub.s32 %v754, %v756
        %v758 = vrot.slane %v744, %v757
        %v759 = vcombine.high %v751, %v751
        %v760 = vcombine.high %v758, %v758
        %v762 = vunpack.c.l.s4 1966171168
        %v763 = vunpack.c.0.s8 %v762
        %v764 = vlaneseq
        %v765 = vshrl.u32 %v764, 7
        %v766 = vsub.s32 %v763, %v765
        %v767 = vrot.slane %v751, %v766
        %v769 = vunpack.c.l.s4 1966171168
        %v770 = vunpack.c.0.s8 %v769
        %v771 = vlaneseq
        %v772 = vshrl.u32 %v771, 7
        %v773 = vsub.s32 %v770, %v772
        %v774 = vrot.slane %v758, %v773
        %v776 = vunpack.c.l.s4 1966171168
        %v777 = vunpack.c.0.s8 %v776
        %v778 = vlaneseq
        %v779 = vshrl.u32 %v778, 7
        %v780 = vsub.s32 %v777, %v779
        %v781 = vrot.slane %v759, %v780
        %v783 = vunpack.c.l.s4 1966171168
        %v784 = vunpack.c.0.s8 %v783
        %v785 = vlaneseq
        %v786 = vshrl.u32 %v785, 7
        %v787 = vsub.s32 %v784, %v786
        %v788 = vrot.slane %v760, %v787
        %v789 = vcombine.high %v767, %v767
        %v790 = vcombine.high %v774, %v774
        %v791 = vcombine.high %v781, %v781
        %v792 = vcombine.high %v788, %v788
        %v793 = vcombine.high %v483, %v483
        %v795 = vunpack.c.l.s4 1966171168
        %v796 = vunpack.c.0.s8 %v795
        %v797 = vlaneseq
        %v798 = vshrl.u32 %v797, 7
        %v799 = vsub.s32 %v796, %v798
        %v800 = vrot.slane %v483, %v799
        %v802 = vunpack.c.l.s4 1966171168
        %v803 = vunpack.c.0.s8 %v802
        %v804 = vlaneseq
        %v805 = vshrl.u32 %v804, 7
        %v806 = vsub.s32 %v803, %v805
        %v807 = vrot.slane %v793, %v806
        %v808 = vcombine.high %v800, %v800
        %v809 = vcombine.high %v807, %v807
        %v811 = vunpack.c.l.s4 1966171168
        %v812 = vunpack.c.0.s8 %v811
        %v813 = vlaneseq
        %v814 = vshrl.u32 %v813, 7
        %v815 = vsub.s32 %v812, %v814
        %v816 = vrot.slane %v800, %v815
        %v818 = vunpack.c.l.s4 1966171168
        %v819 = vunpack.c.0.s8 %v818
        %v820 = vlaneseq
        %v821 = vshrl.u32 %v820, 7
        %v822 = vsub.s32 %v819, %v821
        %v823 = vrot.slane %v807, %v822
        %v825 = vunpack.c.l.s4 1966171168
        %v826 = vunpack.c.0.s8 %v825
        %v827 = vlaneseq
        %v828 = vshrl.u32 %v827, 7
        %v829 = vsub.s32 %v826, %v828
        %v830 = vrot.slane %v808, %v829
        %v832 = vunpack.c.l.s4 1966171168
        %v833 = vunpack.c.0.s8 %v832
        %v834 = vlaneseq
        %v835 = vshrl.u32 %v834, 7
        %v836 = vsub.s32 %v833, %v835
        %v837 = vrot.slane %v809, %v836
        %v838 = vcombine.high %v816, %v816
        %v839 = vcombine.high %v823, %v823
        %v840 = vcombine.high %v830, %v830
        %v841 = vcombine.high %v837, %v837
        %v842 = vcombine.high %v488, %v488
        %v844 = vunpack.c.l.s4 1966171168
        %v845 = vunpack.c.0.s8 %v844
        %v846 = vlaneseq
        %v847 = vshrl.u32 %v846, 7
        %v848 = vsub.s32 %v845, %v847
        %v849 = vrot.slane %v488, %v848
        %v851 = vunpack.c.l.s4 1966171168
        %v852 = vunpack.c.0.s8 %v851
        %v853 = vlaneseq
        %v854 = vshrl.u32 %v853, 7
        %v855 = vsub.s32 %v852, %v854
        %v856 = vrot.slane %v842, %v855
        %v857 = vcombine.high %v849, %v849
        %v858 = vcombine.high %v856, %v856
        %v860 = vunpack.c.l.s4 1966171168
        %v861 = vunpack.c.0.s8 %v860
        %v862 = vlaneseq
        %v863 = vshrl.u32 %v862, 7
        %v864 = vsub.s32 %v861, %v863
        %v865 = vrot.slane %v849, %v864
        %v867 = vunpack.c.l.s4 1966171168
        %v868 = vunpack.c.0.s8 %v867
        %v869 = vlaneseq
        %v870 = vshrl.u32 %v869, 7
        %v871 = vsub.s32 %v868, %v870
        %v872 = vrot.slane %v856, %v871
        %v874 = vunpack.c.l.s4 1966171168
        %v875 = vunpack.c.0.s8 %v874
        %v876 = vlaneseq
        %v877 = vshrl.u32 %v876, 7
        %v878 = vsub.s32 %v875, %v877
        %v879 = vrot.slane %v857, %v878
        %v881 = vunpack.c.l.s4 1966171168
        %v882 = vunpack.c.0.s8 %v881
        %v883 = vlaneseq
        %v884 = vshrl.u32 %v883, 7
        %v885 = vsub.s32 %v882, %v884
        %v886 = vrot.slane %v858, %v885
        %v887 = vcombine.high %v865, %v865
        %v888 = vcombine.high %v872, %v872
        %v889 = vcombine.high %v879, %v879
        %v890 = vcombine.high %v886, %v886
        %v891 = vlaneseq
        %v892 = vshrl.u32 %v891, 7
        %v893 = vsub.s32 0, %v892
        %v894 = vrot.slane %v522, %v893
        %v895 = vlaneseq
        %v896 = vshrl.u32 %v895, 7
        %v897 = vsub.s32 0, %v896
        %v898 = vrot.slane %v536, %v897
        %v899 = vlaneseq
        %v900 = vshrl.u32 %v899, 7
        %v901 = vsub.s32 0, %v900
        %v902 = vrot.slane %v544, %v901
        %v903 = vlaneseq
        %v904 = vshrl.u32 %v903, 7
        %v905 = vsub.s32 0, %v904
        %v906 = vrot.slane %v546, %v905
        %v907 = vlaneseq
        %v908 = vshrl.u32 %v907, 7
        %v909 = vsub.s32 0, %v908
        %v910 = vrot.slane %v529, %v909
        %v911 = vlaneseq
        %v912 = vshrl.u32 %v911, 7
        %v913 = vsub.s32 0, %v912
        %v914 = vrot.slane %v543, %v913
        %v915 = vlaneseq
        %v916 = vshrl.u32 %v915, 7
        %v917 = vsub.s32 0, %v916
        %v918 = vrot.slane %v545, %v917
        %v919 = vlaneseq
        %v920 = vshrl.u32 %v919, 7
        %v921 = vsub.s32 0, %v920
        %v922 = vrot.slane %v547, %v921
        %v923 = vlaneseq
        %v924 = vshrl.u32 %v923, 7
        %v925 = vsub.s32 0, %v924
        %v926 = vrot.slane %v571, %v925
        %v927 = vlaneseq
        %v928 = vshrl.u32 %v927, 7
        %v929 = vsub.s32 0, %v928
        %v930 = vrot.slane %v585, %v929
        %v931 = vlaneseq
        %v932 = vshrl.u32 %v931, 7
        %v933 = vsub.s32 0, %v932
        %v934 = vrot.slane %v593, %v933
        %v935 = vlaneseq
        %v936 = vshrl.u32 %v935, 7
        %v937 = vsub.s32 0, %v936
        %v938 = vrot.slane %v595, %v937
        %v939 = vlaneseq
        %v940 = vshrl.u32 %v939, 7
        %v941 = vsub.s32 0, %v940
        %v942 = vrot.slane %v578, %v941
        %v943 = vlaneseq
        %v944 = vshrl.u32 %v943, 7
        %v945 = vsub.s32 0, %v944
        %v946 = vrot.slane %v592, %v945
        %v947 = vlaneseq
        %v948 = vshrl.u32 %v947, 7
        %v949 = vsub.s32 0, %v948
        %v950 = vrot.slane %v594, %v949
        %v951 = vlaneseq
        %v952 = vshrl.u32 %v951, 7
        %v953 = vsub.s32 0, %v952
        %v954 = vrot.slane %v596, %v953
        %v955 = vlaneseq
        %v956 = vshrl.u32 %v955, 7
        %v957 = vsub.s32 0, %v956
        %v958 = vrot.slane %v620, %v957
        %v959 = vlaneseq
        %v960 = vshrl.u32 %v959, 7
        %v961 = vsub.s32 0, %v960
        %v962 = vrot.slane %v634, %v961
        %v963 = vlaneseq
        %v964 = vshrl.u32 %v963, 7
        %v965 = vsub.s32 0, %v964
        %v966 = vrot.slane %v642, %v965
        %v967 = vlaneseq
        %v968 = vshrl.u32 %v967, 7
        %v969 = vsub.s32 0, %v968
        %v970 = vrot.slane %v644, %v969
        %v971 = vlaneseq
        %v972 = vshrl.u32 %v971, 7
        %v973 = vsub.s32 0, %v972
        %v974 = vrot.slane %v627, %v973
        %v975 = vlaneseq
        %v976 = vshrl.u32 %v975, 7
        %v977 = vsub.s32 0, %v976
        %v978 = vrot.slane %v641, %v977
        %v979 = vlaneseq
        %v980 = vshrl.u32 %v979, 7
        %v981 = vsub.s32 0, %v980
        %v982 = vrot.slane %v643, %v981
        %v983 = vlaneseq
        %v984 = vshrl.u32 %v983, 7
        %v985 = vsub.s32 0, %v984
        %v986 = vrot.slane %v645, %v985
        %v987 = vlaneseq
        %v988 = vshrl.u32 %v987, 7
        %v989 = vsub.s32 0, %v988
        %v990 = vrot.slane %v669, %v989
        %v991 = vlaneseq
        %v992 = vshrl.u32 %v991, 7
        %v993 = vsub.s32 0, %v992
        %v994 = vrot.slane %v683, %v993
        %v995 = vlaneseq
        %v996 = vshrl.u32 %v995, 7
        %v997 = vsub.s32 0, %v996
        %v998 = vrot.slane %v691, %v997
        %v999 = vlaneseq
        %v1000 = vshrl.u32 %v999, 7
        %v1001 = vsub.s32 0, %v1000
        %v1002 = vrot.slane %v693, %v1001
        %v1003 = vlaneseq
        %v1004 = vshrl.u32 %v1003, 7
        %v1005 = vsub.s32 0, %v1004
        %v1006 = vrot.slane %v676, %v1005
        %v1007 = vlaneseq
        %v1008 = vshrl.u32 %v1007, 7
        %v1009 = vsub.s32 0, %v1008
        %v1010 = vrot.slane %v690, %v1009
        %v1011 = vlaneseq
        %v1012 = vshrl.u32 %v1011, 7
        %v1013 = vsub.s32 0, %v1012
        %v1014 = vrot.slane %v692, %v1013
        %v1015 = vlaneseq
        %v1016 = vshrl.u32 %v1015, 7
        %v1017 = vsub.s32 0, %v1016
        %v1018 = vrot.slane %v694, %v1017
        %v1019 = vlaneseq
        %v1020 = vshrl.u32 %v1019, 7
        %v1021 = vsub.s32 0, %v1020
        %v1022 = vrot.slane %v718, %v1021
        %v1023 = vlaneseq
        %v1024 = vshrl.u32 %v1023, 7
        %v1025 = vsub.s32 0, %v1024
        %v1026 = vrot.slane %v732, %v1025
        %v1027 = vlaneseq
        %v1028 = vshrl.u32 %v1027, 7
        %v1029 = vsub.s32 0, %v1028
        %v1030 = vrot.slane %v740, %v1029
        %v1031 = vlaneseq
        %v1032 = vshrl.u32 %v1031, 7
        %v1033 = vsub.s32 0, %v1032
        %v1034 = vrot.slane %v742, %v1033
        %v1035 = vlaneseq
        %v1036 = vshrl.u32 %v1035, 7
        %v1037 = vsub.s32 0, %v1036
        %v1038 = vrot.slane %v725, %v1037
        %v1039 = vlaneseq
        %v1040 = vshrl.u32 %v1039, 7
        %v1041 = vsub.s32 0, %v1040
        %v1042 = vrot.slane %v739, %v1041
        %v1043 = vlaneseq
        %v1044 = vshrl.u32 %v1043, 7
        %v1045 = vsub.s32 0, %v1044
        %v1046 = vrot.slane %v741, %v1045
        %v1047 = vlaneseq
        %v1048 = vshrl.u32 %v1047, 7
        %v1049 = vsub.s32 0, %v1048
        %v1050 = vrot.slane %v743, %v1049
        %v1051 = vlaneseq
        %v1052 = vshrl.u32 %v1051, 7
        %v1053 = vsub.s32 0, %v1052
        %v1054 = vrot.slane %v767, %v1053
        %v1055 = vlaneseq
        %v1056 = vshrl.u32 %v1055, 7
        %v1057 = vsub.s32 0, %v1056
        %v1058 = vrot.slane %v781, %v1057
        %v1059 = vlaneseq
        %v1060 = vshrl.u32 %v1059, 7
        %v1061 = vsub.s32 0, %v1060
        %v1062 = vrot.slane %v789, %v1061
        %v1063 = vlaneseq
        %v1064 = vshrl.u32 %v1063, 7
        %v1065 = vsub.s32 0, %v1064
        %v1066 = vrot.slane %v791, %v1065
        %v1067 = vlaneseq
        %v1068 = vshrl.u32 %v1067, 7
        %v1069 = vsub.s32 0, %v1068
        %v1070 = vrot.slane %v774, %v1069
        %v1071 = vlaneseq
        %v1072 = vshrl.u32 %v1071, 7
        %v1073 = vsub.s32 0, %v1072
        %v1074 = vrot.slane %v788, %v1073
        %v1075 = vlaneseq
        %v1076 = vshrl.u32 %v1075, 7
        %v1077 = vsub.s32 0, %v1076
        %v1078 = vrot.slane %v790, %v1077
        %v1079 = vlaneseq
        %v1080 = vshrl.u32 %v1079, 7
        %v1081 = vsub.s32 0, %v1080
        %v1082 = vrot.slane %v792, %v1081
        %v1083 = vlaneseq
        %v1084 = vshrl.u32 %v1083, 7
        %v1085 = vsub.s32 0, %v1084
        %v1086 = vrot.slane %v816, %v1085
        %v1087 = vlaneseq
        %v1088 = vshrl.u32 %v1087, 7
        %v1089 = vsub.s32 0, %v1088
        %v1090 = vrot.slane %v830, %v1089
        %v1091 = vlaneseq
        %v1092 = vshrl.u32 %v1091, 7
        %v1093 = vsub.s32 0, %v1092
        %v1094 = vrot.slane %v838, %v1093
        %v1095 = vlaneseq
        %v1096 = vshrl.u32 %v1095, 7
        %v1097 = vsub.s32 0, %v1096
        %v1098 = vrot.slane %v840, %v1097
        %v1099 = vlaneseq
        %v1100 = vshrl.u32 %v1099, 7
        %v1101 = vsub.s32 0, %v1100
        %v1102 = vrot.slane %v823, %v1101
        %v1103 = vlaneseq
        %v1104 = vshrl.u32 %v1103, 7
        %v1105 = vsub.s32 0, %v1104
        %v1106 = vrot.slane %v837, %v1105
        %v1107 = vlaneseq
        %v1108 = vshrl.u32 %v1107, 7
        %v1109 = vsub.s32 0, %v1108
        %v1110 = vrot.slane %v839, %v1109
        %v1111 = vlaneseq
        %v1112 = vshrl.u32 %v1111, 7
        %v1113 = vsub.s32 0, %v1112
        %v1114 = vrot.slane %v841, %v1113
        %v1115 = vlaneseq
        %v1116 = vshrl.u32 %v1115, 7
        %v1117 = vsub.s32 0, %v1116
        %v1118 = vrot.slane %v865, %v1117
        %v1119 = vlaneseq
        %v1120 = vshrl.u32 %v1119, 7
        %v1121 = vsub.s32 0, %v1120
        %v1122 = vrot.slane %v879, %v1121
        %v1123 = vlaneseq
        %v1124 = vshrl.u32 %v1123, 7
        %v1125 = vsub.s32 0, %v1124
        %v1126 = vrot.slane %v887, %v1125
        %v1127 = vlaneseq
        %v1128 = vshrl.u32 %v1127, 7
        %v1129 = vsub.s32 0, %v1128
        %v1130 = vrot.slane %v889, %v1129
        %v1131 = vlaneseq
        %v1132 = vshrl.u32 %v1131, 7
        %v1133 = vsub.s32 0, %v1132
        %v1134 = vrot.slane %v872, %v1133
        %v1135 = vlaneseq
        %v1136 = vshrl.u32 %v1135, 7
        %v1137 = vsub.s32 0, %v1136
        %v1138 = vrot.slane %v886, %v1137
        %v1139 = vlaneseq
        %v1140 = vshrl.u32 %v1139, 7
        %v1141 = vsub.s32 0, %v1140
        %v1142 = vrot.slane %v888, %v1141
        %v1143 = vlaneseq
        %v1144 = vshrl.u32 %v1143, 7
        %v1145 = vsub.s32 0, %v1144
        %v1146 = vrot.slane %v890, %v1145
        %v1147 = vlaneseq
        %v1148 = vshrl.u32 %v1147, 7
        %v1149 = vadd.s32 %v1148, 8
        %vm1150 = vcmp.lt.s32.totalorder %v1148, 0
        %v1151 = vsub.s32 0, %v1148
        %v1152 = vsel %vm1150, %v1151, %v1148
        %v1153 = vshrl.u32 %v1152, 1
        %v1154 = vand.u32 %v1152, 1
        %v1155 = vsub.s32 0, %v1154
        %v1156 = vsel %vm1150, %v1155, %v1154
        %vm1157 = vcmp.lt.s32.totalorder %v1149, 0
        %v1158 = vsub.s32 0, %v1149
        %v1159 = vsel %vm1157, %v1158, %v1149
        %v1160 = vshrl.u32 %v1159, 1
        %v1161 = vand.u32 %v1159, 1
        %v1162 = vsub.s32 0, %v1161
        %v1163 = vsel %vm1157, %v1162, %v1161
        %vm1164 = vcmp.ne.s32.totalorder %v1156, 0
        %vm1165 = vcmp.ne.s32.totalorder %v1163, 0
        %vm1166 = vcmp.lt.s32.totalorder %v1156, 0
        %vm1167 = vcmp.lt.s32.totalorder %v1163, 0
        %vm1168 = vmand %vm1166, %vm1164
        %vm1169 = vmand %vm1167, %vm1165
        %v1170 = vadd.s32 %v1156, 2
        %v1171 = vadd.s32 %v1163, 2
        %v1172 = vsel %vm1168, %v1170, %v1156
        %v1173 = vsel %vm1169, %v1171, %v1163
        %vm1174 = vcmp.eq.s32.totalorder %v1172, 0
        %vm1175 = vcmp.eq.s32.totalorder %v1173, 0
        %v1176 = vcombine.low %v894, %v898
        %v1177 = vcombine.low %v902, %v906
        %v1179 = vunpack.c.l.s4 1983009808
        %v1180 = vunpack.c.0.s8 %v1179
        %v1181 = vlaneseq
        %v1182 = vshrl.u32 %v1181, 7
        %v1183 = vsub.s32 %v1180, %v1182
        %v1184 = vrot.slane %v1176, %v1183
        %v1186 = vunpack.c.l.s4 1983009808
        %v1187 = vunpack.c.0.s8 %v1186
        %v1188 = vlaneseq
        %v1189 = vshrl.u32 %v1188, 7
        %v1190 = vsub.s32 %v1187, %v1189
        %v1191 = vrot.slane %v1177, %v1190
        %v1192 = vcombine.low %v1184, %v1191
        %v1193 = vcombine.low %v910, %v914
        %v1194 = vcombine.low %v918, %v922
        %v1196 = vunpack.c.l.s4 1983009808
        %v1197 = vunpack.c.0.s8 %v1196
        %v1198 = vlaneseq
        %v1199 = vshrl.u32 %v1198, 7
        %v1200 = vsub.s32 %v1197, %v1199
        %v1201 = vrot.slane %v1193, %v1200
        %v1203 = vunpack.c.l.s4 1983009808
        %v1204 = vunpack.c.0.s8 %v1203
        %v1205 = vlaneseq
        %v1206 = vshrl.u32 %v1205, 7
        %v1207 = vsub.s32 %v1204, %v1206
        %v1208 = vrot.slane %v1194, %v1207
        %v1209 = vcombine.low %v1201, %v1208
        %v1210 = vcombine.low %v926, %v930
        %v1211 = vcombine.low %v934, %v938
        %v1213 = vunpack.c.l.s4 1983009808
        %v1214 = vunpack.c.0.s8 %v1213
        %v1215 = vlaneseq
        %v1216 = vshrl.u32 %v1215, 7
        %v1217 = vsub.s32 %v1214, %v1216
        %v1218 = vrot.slane %v1210, %v1217
        %v1220 = vunpack.c.l.s4 1983009808
        %v1221 = vunpack.c.0.s8 %v1220
        %v1222 = vlaneseq
        %v1223 = vshrl.u32 %v1222, 7
        %v1224 = vsub.s32 %v1221, %v1223
        %v1225 = vrot.slane %v1211, %v1224
        %v1226 = vcombine.low %v1218, %v1225
        %v1227 = vcombine.low %v942, %v946
        %v1228 = vcombine.low %v950, %v954
        %v1230 = vunpack.c.l.s4 1983009808
        %v1231 = vunpack.c.0.s8 %v1230
        %v1232 = vlaneseq
        %v1233 = vshrl.u32 %v1232, 7
        %v1234 = vsub.s32 %v1231, %v1233
        %v1235 = vrot.slane %v1227, %v1234
        %v1237 = vunpack.c.l.s4 1983009808
        %v1238 = vunpack.c.0.s8 %v1237
        %v1239 = vlaneseq
        %v1240 = vshrl.u32 %v1239, 7
        %v1241 = vsub.s32 %v1238, %v1240
        %v1242 = vrot.slane %v1228, %v1241
        %v1243 = vcombine.low %v1235, %v1242
        %v1244 = vcombine.low %v958, %v962
        %v1245 = vcombine.low %v966, %v970
        %v1247 = vunpack.c.l.s4 1983009808
        %v1248 = vunpack.c.0.s8 %v1247
        %v1249 = vlaneseq
        %v1250 = vshrl.u32 %v1249, 7
        %v1251 = vsub.s32 %v1248, %v1250
        %v1252 = vrot.slane %v1244, %v1251
        %v1254 = vunpack.c.l.s4 1983009808
        %v1255 = vunpack.c.0.s8 %v1254
        %v1256 = vlaneseq
        %v1257 = vshrl.u32 %v1256, 7
        %v1258 = vsub.s32 %v1255, %v1257
        %v1259 = vrot.slane %v1245, %v1258
        %v1260 = vcombine.low %v1252, %v1259
        %v1261 = vcombine.low %v974, %v978
        %v1262 = vcombine.low %v982, %v986
        %v1264 = vunpack.c.l.s4 1983009808
        %v1265 = vunpack.c.0.s8 %v1264
        %v1266 = vlaneseq
        %v1267 = vshrl.u32 %v1266, 7
        %v1268 = vsub.s32 %v1265, %v1267
        %v1269 = vrot.slane %v1261, %v1268
        %v1271 = vunpack.c.l.s4 1983009808
        %v1272 = vunpack.c.0.s8 %v1271
        %v1273 = vlaneseq
        %v1274 = vshrl.u32 %v1273, 7
        %v1275 = vsub.s32 %v1272, %v1274
        %v1276 = vrot.slane %v1262, %v1275
        %v1277 = vcombine.low %v1269, %v1276
        %v1278 = vcombine.low %v990, %v994
        %v1279 = vcombine.low %v998, %v1002
        %v1281 = vunpack.c.l.s4 1983009808
        %v1282 = vunpack.c.0.s8 %v1281
        %v1283 = vlaneseq
        %v1284 = vshrl.u32 %v1283, 7
        %v1285 = vsub.s32 %v1282, %v1284
        %v1286 = vrot.slane %v1278, %v1285
        %v1288 = vunpack.c.l.s4 1983009808
        %v1289 = vunpack.c.0.s8 %v1288
        %v1290 = vlaneseq
        %v1291 = vshrl.u32 %v1290, 7
        %v1292 = vsub.s32 %v1289, %v1291
        %v1293 = vrot.slane %v1279, %v1292
        %v1294 = vcombine.low %v1286, %v1293
        %v1295 = vcombine.low %v1006, %v1010
        %v1296 = vcombine.low %v1014, %v1018
        %v1298 = vunpack.c.l.s4 1983009808
        %v1299 = vunpack.c.0.s8 %v1298
        %v1300 = vlaneseq
        %v1301 = vshrl.u32 %v1300, 7
        %v1302 = vsub.s32 %v1299, %v1301
        %v1303 = vrot.slane %v1295, %v1302
        %v1305 = vunpack.c.l.s4 1983009808
        %v1306 = vunpack.c.0.s8 %v1305
        %v1307 = vlaneseq
        %v1308 = vshrl.u32 %v1307, 7
        %v1309 = vsub.s32 %v1306, %v1308
        %v1310 = vrot.slane %v1296, %v1309
        %v1311 = vcombine.low %v1303, %v1310
        %v1312 = vcombine.low %v1022, %v1026
        %v1313 = vcombine.low %v1030, %v1034
        %v1315 = vunpack.c.l.s4 1983009808
        %v1316 = vunpack.c.0.s8 %v1315
        %v1317 = vlaneseq
        %v1318 = vshrl.u32 %v1317, 7
        %v1319 = vsub.s32 %v1316, %v1318
        %v1320 = vrot.slane %v1312, %v1319
        %v1322 = vunpack.c.l.s4 1983009808
        %v1323 = vunpack.c.0.s8 %v1322
        %v1324 = vlaneseq
        %v1325 = vshrl.u32 %v1324, 7
        %v1326 = vsub.s32 %v1323, %v1325
        %v1327 = vrot.slane %v1313, %v1326
        %v1328 = vcombine.low %v1320, %v1327
        %v1329 = vcombine.low %v1038, %v1042
        %v1330 = vcombine.low %v1046, %v1050
        %v1332 = vunpack.c.l.s4 1983009808
        %v1333 = vunpack.c.0.s8 %v1332
        %v1334 = vlaneseq
        %v1335 = vshrl.u32 %v1334, 7
        %v1336 = vsub.s32 %v1333, %v1335
        %v1337 = vrot.slane %v1329, %v1336
        %v1339 = vunpack.c.l.s4 1983009808
        %v1340 = vunpack.c.0.s8 %v1339
        %v1341 = vlaneseq
        %v1342 = vshrl.u32 %v1341, 7
        %v1343 = vsub.s32 %v1340, %v1342
        %v1344 = vrot.slane %v1330, %v1343
        %v1345 = vcombine.low %v1337, %v1344
        %v1346 = vcombine.low %v1054, %v1058
        %v1347 = vcombine.low %v1062, %v1066
        %v1349 = vunpack.c.l.s4 1983009808
        %v1350 = vunpack.c.0.s8 %v1349
        %v1351 = vlaneseq
        %v1352 = vshrl.u32 %v1351, 7
        %v1353 = vsub.s32 %v1350, %v1352
        %v1354 = vrot.slane %v1346, %v1353
        %v1356 = vunpack.c.l.s4 1983009808
        %v1357 = vunpack.c.0.s8 %v1356
        %v1358 = vlaneseq
        %v1359 = vshrl.u32 %v1358, 7
        %v1360 = vsub.s32 %v1357, %v1359
        %v1361 = vrot.slane %v1347, %v1360
        %v1362 = vcombine.low %v1354, %v1361
        %v1363 = vcombine.low %v1070, %v1074
        %v1364 = vcombine.low %v1078, %v1082
        %v1366 = vunpack.c.l.s4 1983009808
        %v1367 = vunpack.c.0.s8 %v1366
        %v1368 = vlaneseq
        %v1369 = vshrl.u32 %v1368, 7
        %v1370 = vsub.s32 %v1367, %v1369
        %v1371 = vrot.slane %v1363, %v1370
        %v1373 = vunpack.c.l.s4 1983009808
        %v1374 = vunpack.c.0.s8 %v1373
        %v1375 = vlaneseq
        %v1376 = vshrl.u32 %v1375, 7
        %v1377 = vsub.s32 %v1374, %v1376
        %v1378 = vrot.slane %v1364, %v1377
        %v1379 = vcombine.low %v1371, %v1378
        %v1380 = vcombine.low %v1086, %v1090
        %v1381 = vcombine.low %v1094, %v1098
        %v1383 = vunpack.c.l.s4 1983009808
        %v1384 = vunpack.c.0.s8 %v1383
        %v1385 = vlaneseq
        %v1386 = vshrl.u32 %v1385, 7
        %v1387 = vsub.s32 %v1384, %v1386
        %v1388 = vrot.slane %v1380, %v1387
        %v1390 = vunpack.c.l.s4 1983009808
        %v1391 = vunpack.c.0.s8 %v1390
        %v1392 = vlaneseq
        %v1393 = vshrl.u32 %v1392, 7
        %v1394 = vsub.s32 %v1391, %v1393
        %v1395 = vrot.slane %v1381, %v1394
        %v1396 = vcombine.low %v1388, %v1395
        %v1397 = vcombine.low %v1102, %v1106
        %v1398 = vcombine.low %v1110, %v1114
        %v1400 = vunpack.c.l.s4 1983009808
        %v1401 = vunpack.c.0.s8 %v1400
        %v1402 = vlaneseq
        %v1403 = vshrl.u32 %v1402, 7
        %v1404 = vsub.s32 %v1401, %v1403
        %v1405 = vrot.slane %v1397, %v1404
        %v1407 = vunpack.c.l.s4 1983009808
        %v1408 = vunpack.c.0.s8 %v1407
        %v1409 = vlaneseq
        %v1410 = vshrl.u32 %v1409, 7
        %v1411 = vsub.s32 %v1408, %v1410
        %v1412 = vrot.slane %v1398, %v1411
        %v1413 = vcombine.low %v1405, %v1412
        %v1414 = vcombine.low %v1118, %v1122
        %v1415 = vcombine.low %v1126, %v1130
        %v1417 = vunpack.c.l.s4 1983009808
        %v1418 = vunpack.c.0.s8 %v1417
        %v1419 = vlaneseq
        %v1420 = vshrl.u32 %v1419, 7
        %v1421 = vsub.s32 %v1418, %v1420
        %v1422 = vrot.slane %v1414, %v1421
        %v1424 = vunpack.c.l.s4 1983009808
        %v1425 = vunpack.c.0.s8 %v1424
        %v1426 = vlaneseq
        %v1427 = vshrl.u32 %v1426, 7
        %v1428 = vsub.s32 %v1425, %v1427
        %v1429 = vrot.slane %v1415, %v1428
        %v1430 = vcombine.low %v1422, %v1429
        %v1431 = vcombine.low %v1134, %v1138
        %v1432 = vcombine.low %v1142, %v1146
        %v1434 = vunpack.c.l.s4 1983009808
        %v1435 = vunpack.c.0.s8 %v1434
        %v1436 = vlaneseq
        %v1437 = vshrl.u32 %v1436, 7
        %v1438 = vsub.s32 %v1435, %v1437
        %v1439 = vrot.slane %v1431, %v1438
        %v1441 = vunpack.c.l.s4 1983009808
        %v1442 = vunpack.c.0.s8 %v1441
        %v1443 = vlaneseq
        %v1444 = vshrl.u32 %v1443, 7
        %v1445 = vsub.s32 %v1442, %v1444
        %v1446 = vrot.slane %v1432, %v1445
        %v1447 = vcombine.low %v1439, %v1446
        %1464 = vrot.lane.b32.xlu0 %v1192, 124
        %v1465 = vpop.permute.xlu0 %1464
        %1466 = vrot.lane.b32.xlu0 %v1209, 124
        %v1467 = vpop.permute.xlu0 %1466
        %1468 = vrot.lane.b32.xlu0 %v1226, 124
        %v1469 = vpop.permute.xlu0 %1468
        %1470 = vrot.lane.b32.xlu0 %v1243, 124
        %v1471 = vpop.permute.xlu0 %1470
        %1472 = vrot.lane.b32.xlu0 %v1260, 124
        %v1473 = vpop.permute.xlu0 %1472
        %1474 = vrot.lane.b32.xlu0 %v1277, 124
        %v1475 = vpop.permute.xlu0 %1474
        %1476 = vrot.lane.b32.xlu0 %v1294, 124
        %v1477 = vpop.permute.xlu0 %1476
        %1478 = vrot.lane.b32.xlu0 %v1311, 124
        %v1479 = vpop.permute.xlu0 %1478
        %1480 = vrot.lane.b32.xlu0 %v1328, 124
        %v1481 = vpop.permute.xlu0 %1480
        %1482 = vrot.lane.b32.xlu0 %v1345, 124
        %v1483 = vpop.permute.xlu0 %1482
        %1484 = vrot.lane.b32.xlu0 %v1362, 124
        %v1485 = vpop.permute.xlu0 %1484
        %1486 = vrot.lane.b32.xlu0 %v1379, 124
        %v1487 = vpop.permute.xlu0 %1486
        %1488 = vrot.lane.b32.xlu0 %v1396, 124
        %v1489 = vpop.permute.xlu0 %1488
        %1490 = vrot.lane.b32.xlu0 %v1413, 124
        %v1491 = vpop.permute.xlu0 %1490
        %1492 = vrot.lane.b32.xlu0 %v1430, 124
        %v1493 = vpop.permute.xlu0 %1492
        %1494 = vrot.lane.b32.xlu0 %v1447, 124
        %v1495 = vpop.permute.xlu0 %1494
        %v1512 = vsel %vm1174, %v1192, %v1465
        %v1513 = vsel %vm1175, %v1209, %v1467
        %v1514 = vsel %vm1174, %v1226, %v1469
        %v1515 = vsel %vm1175, %v1243, %v1471
        %v1516 = vsel %vm1174, %v1260, %v1473
        %v1517 = vsel %vm1175, %v1277, %v1475
        %v1518 = vsel %vm1174, %v1294, %v1477
        %v1519 = vsel %vm1175, %v1311, %v1479
        %v1520 = vsel %vm1174, %v1328, %v1481
        %v1521 = vsel %vm1175, %v1345, %v1483
        %v1522 = vsel %vm1174, %v1362, %v1485
        %v1523 = vsel %vm1175, %v1379, %v1487
        %v1524 = vsel %vm1174, %v1396, %v1489
        %v1525 = vsel %vm1175, %v1413, %v1491
        %v1526 = vsel %vm1174, %v1430, %v1493
        %v1527 = vsel %vm1175, %v1447, %v1495
        %1528 = vrot.lane.b32.xlu0 %v1192, 120
        %v1529 = vpop.permute.xlu0 %1528
        %1530 = vrot.lane.b32.xlu0 %v1209, 120
        %v1531 = vpop.permute.xlu0 %1530
        %1532 = vrot.lane.b32.xlu0 %v1226, 120
        %v1533 = vpop.permute.xlu0 %1532
        %1534 = vrot.lane.b32.xlu0 %v1243, 120
        %v1535 = vpop.permute.xlu0 %1534
        %1536 = vrot.lane.b32.xlu0 %v1260, 120
        %v1537 = vpop.permute.xlu0 %1536
        %1538 = vrot.lane.b32.xlu0 %v1277, 120
        %v1539 = vpop.permute.xlu0 %1538
        %1540 = vrot.lane.b32.xlu0 %v1294, 120
        %v1541 = vpop.permute.xlu0 %1540
        %1542 = vrot.lane.b32.xlu0 %v1311, 120
        %v1543 = vpop.permute.xlu0 %1542
        %1544 = vrot.lane.b32.xlu0 %v1328, 120
        %v1545 = vpop.permute.xlu0 %1544
        %1546 = vrot.lane.b32.xlu0 %v1345, 120
        %v1547 = vpop.permute.xlu0 %1546
        %1548 = vrot.lane.b32.xlu0 %v1362, 120
        %v1549 = vpop.permute.xlu0 %1548
        %1550 = vrot.lane.b32.xlu0 %v1379, 120
        %v1551 = vpop.permute.xlu0 %1550
        %1552 = vrot.lane.b32.xlu0 %v1396, 120
        %v1553 = vpop.permute.xlu0 %1552
        %1554 = vrot.lane.b32.xlu0 %v1413, 120
        %v1555 = vpop.permute.xlu0 %1554
        %1556 = vrot.lane.b32.xlu0 %v1430, 120
        %v1557 = vpop.permute.xlu0 %1556
        %1558 = vrot.lane.b32.xlu0 %v1447, 120
        %v1559 = vpop.permute.xlu0 %1558
        %1576 = vrot.lane.b32.xlu0 %v1192, 116
        %v1577 = vpop.permute.xlu0 %1576
        %1578 = vrot.lane.b32.xlu0 %v1209, 116
        %v1579 = vpop.permute.xlu0 %1578
        %1580 = vrot.lane.b32.xlu0 %v1226, 116
        %v1581 = vpop.permute.xlu0 %1580
        %1582 = vrot.lane.b32.xlu0 %v1243, 116
        %v1583 = vpop.permute.xlu0 %1582
        %1584 = vrot.lane.b32.xlu0 %v1260, 116
        %v1585 = vpop.permute.xlu0 %1584
        %1586 = vrot.lane.b32.xlu0 %v1277, 116
        %v1587 = vpop.permute.xlu0 %1586
        %1588 = vrot.lane.b32.xlu0 %v1294, 116
        %v1589 = vpop.permute.xlu0 %1588
        %1590 = vrot.lane.b32.xlu0 %v1311, 116
        %v1591 = vpop.permute.xlu0 %1590
        %1592 = vrot.lane.b32.xlu0 %v1328, 116
        %v1593 = vpop.permute.xlu0 %1592
        %1594 = vrot.lane.b32.xlu0 %v1345, 116
        %v1595 = vpop.permute.xlu0 %1594
        %1596 = vrot.lane.b32.xlu0 %v1362, 116
        %v1597 = vpop.permute.xlu0 %1596
        %1598 = vrot.lane.b32.xlu0 %v1379, 116
        %v1599 = vpop.permute.xlu0 %1598
        %1600 = vrot.lane.b32.xlu0 %v1396, 116
        %v1601 = vpop.permute.xlu0 %1600
        %1602 = vrot.lane.b32.xlu0 %v1413, 116
        %v1603 = vpop.permute.xlu0 %1602
        %1604 = vrot.lane.b32.xlu0 %v1430, 116
        %v1605 = vpop.permute.xlu0 %1604
        %1606 = vrot.lane.b32.xlu0 %v1447, 116
        %v1607 = vpop.permute.xlu0 %1606
        %v1624 = vsel %vm1174, %v1529, %v1577
        %v1625 = vsel %vm1175, %v1531, %v1579
        %v1626 = vsel %vm1174, %v1533, %v1581
        %v1627 = vsel %vm1175, %v1535, %v1583
        %v1628 = vsel %vm1174, %v1537, %v1585
        %v1629 = vsel %vm1175, %v1539, %v1587
        %v1630 = vsel %vm1174, %v1541, %v1589
        %v1631 = vsel %vm1175, %v1543, %v1591
        %v1632 = vsel %vm1174, %v1545, %v1593
        %v1633 = vsel %vm1175, %v1547, %v1595
        %v1634 = vsel %vm1174, %v1549, %v1597
        %v1635 = vsel %vm1175, %v1551, %v1599
        %v1636 = vsel %vm1174, %v1553, %v1601
        %v1637 = vsel %vm1175, %v1555, %v1603
        %v1638 = vsel %vm1174, %v1557, %v1605
        %v1639 = vsel %vm1175, %v1559, %v1607
        %s1640 = scalar_lea.vmem [#allocation2], 24
        %1641 = vst.msk [vmem:[%s1640 + $0x1] sm:$0xff] %vm299, %v1512
        %1642 = vst.msk [vmem:[%s1640 + $0x9] sm:$0xff] %vm299, %v1513
        %1643 = vst.msk [vmem:[%s1640 + $0x31] sm:$0xff] %vm299, %v1514
        %1644 = vst.msk [vmem:[%s1640 + $0x39] sm:$0xff] %vm299, %v1515
        %1645 = vst.msk [vmem:[%s1640 + $0x61] sm:$0xff] %vm299, %v1516
        %1646 = vst.msk [vmem:[%s1640 + $0x69] sm:$0xff] %vm299, %v1517
        %1647 = vst.msk [vmem:[%s1640 + $0x91] sm:$0xff] %vm299, %v1518
        %1648 = vst.msk [vmem:[%s1640 + $0x99] sm:$0xff] %vm299, %v1519
        %1649 = vst.msk [vmem:[%s1640 + $0xc1] sm:$0xff] %vm299, %v1520
        %1650 = vst.msk [vmem:[%s1640 + $0xc9] sm:$0xff] %vm299, %v1521
        %1651 = vst.msk [vmem:[%s1640 + $0xf1] sm:$0xff] %vm299, %v1522
        %1652 = vst.msk [vmem:[%s1640 + $0xf9] sm:$0xff] %vm299, %v1523
        %1653 = vst.msk [vmem:[%s1640 + $0x121] sm:$0xff] %vm299, %v1524
        %1654 = vst.msk [vmem:[%s1640 + $0x129] sm:$0xff] %vm299, %v1525
        %1655 = vst.msk [vmem:[%s1640 + $0x151] sm:$0xff] %vm299, %v1526
        %1656 = vst.msk [vmem:[%s1640 + $0x159] sm:$0xff] %vm299, %v1527
        %s1657 = scalar_lea.vmem [#allocation2], 48
        %1658 = vst.msk [vmem:[%s1657 + $0x1] sm:$0xff] %vm299, %v1624
        %1659 = vst.msk [vmem:[%s1657 + $0x9] sm:$0xff] %vm299, %v1625
        %1660 = vst.msk [vmem:[%s1657 + $0x31] sm:$0xff] %vm299, %v1626
        %1661 = vst.msk [vmem:[%s1657 + $0x39] sm:$0xff] %vm299, %v1627
        %1662 = vst.msk [vmem:[%s1657 + $0x61] sm:$0xff] %vm299, %v1628
        %1663 = vst.msk [vmem:[%s1657 + $0x69] sm:$0xff] %vm299, %v1629
        %1664 = vst.msk [vmem:[%s1657 + $0x91] sm:$0xff] %vm299, %v1630
        %1665 = vst.msk [vmem:[%s1657 + $0x99] sm:$0xff] %vm299, %v1631
        %1666 = vst.msk [vmem:[%s1657 + $0xc1] sm:$0xff] %vm299, %v1632
        %1667 = vst.msk [vmem:[%s1657 + $0xc9] sm:$0xff] %vm299, %v1633
        %1668 = vst.msk [vmem:[%s1657 + $0xf1] sm:$0xff] %vm299, %v1634
        %1669 = vst.msk [vmem:[%s1657 + $0xf9] sm:$0xff] %vm299, %v1635
        %1670 = vst.msk [vmem:[%s1657 + $0x121] sm:$0xff] %vm299, %v1636
        %1671 = vst.msk [vmem:[%s1657 + $0x129] sm:$0xff] %vm299, %v1637
        %1672 = vst.msk [vmem:[%s1657 + $0x151] sm:$0xff] %vm299, %v1638
        %1673 = vst.msk [vmem:[%s1657 + $0x159] sm:$0xff] %vm299, %v1639
        %v1674 = vld [vmem:[#allocation2] sm:$0xff]
        %v1675 = vld [vmem:[#allocation2 + $0x8] sm:$0xff]
        %v1676 = vld [vmem:[#allocation2 + $0x10] sm:$0x3]
        %v1677 = vld [vmem:[#allocation2 + $0x18] sm:$0xff]
        %v1678 = vld [vmem:[#allocation2 + $0x20] sm:$0xff]
        %v1679 = vld [vmem:[#allocation2 + $0x28] sm:$0x3]
        %v1680 = vld [vmem:[#allocation2 + $0x30] sm:$0xff]
        %v1681 = vld [vmem:[#allocation2 + $0x38] sm:$0xff]
        %v1682 = vld [vmem:[#allocation2 + $0x40] sm:$0x3]
        %v1683 = vld [vmem:[#allocation2 + $0x48] sm:$0xff]
        %v1684 = vld [vmem:[#allocation2 + $0x50] sm:$0xff]
        %v1685 = vld [vmem:[#allocation2 + $0x58] sm:$0x3]
        %v1686 = vld [vmem:[#allocation2 + $0x60] sm:$0xff]
        %v1687 = vld [vmem:[#allocation2 + $0x68] sm:$0xff]
        %v1688 = vld [vmem:[#allocation2 + $0x70] sm:$0x3]
        %v1689 = vld [vmem:[#allocation2 + $0x78] sm:$0xff]
        %v1690 = vld [vmem:[#allocation2 + $0x80] sm:$0xff]
        %v1691 = vld [vmem:[#allocation2 + $0x88] sm:$0x3]
        %v1692 = vld [vmem:[#allocation2 + $0x90] sm:$0xff]
        %v1693 = vld [vmem:[#allocation2 + $0x98] sm:$0xff]
        %v1694 = vld [vmem:[#allocation2 + $0xa0] sm:$0x3]
        %v1695 = vld [vmem:[#allocation2 + $0xa8] sm:$0xff]
        %v1696 = vld [vmem:[#allocation2 + $0xb0] sm:$0xff]
        %v1697 = vld [vmem:[#allocation2 + $0xb8] sm:$0x3]
        %v1698 = vld [vmem:[#allocation2 + $0xc0] sm:$0xff]
        %v1699 = vld [vmem:[#allocation2 + $0xc8] sm:$0xff]
        %v1700 = vld [vmem:[#allocation2 + $0xd0] sm:$0x3]
        %v1701 = vld [vmem:[#allocation2 + $0xd8] sm:$0xff]
        %v1702 = vld [vmem:[#allocation2 + $0xe0] sm:$0xff]
        %v1703 = vld [vmem:[#allocation2 + $0xe8] sm:$0x3]
        %v1704 = vld [vmem:[#allocation2 + $0xf0] sm:$0xff]
        %v1705 = vld [vmem:[#allocation2 + $0xf8] sm:$0xff]
        %v1706 = vld [vmem:[#allocation2 + $0x100] sm:$0x3]
        %v1707 = vld [vmem:[#allocation2 + $0x108] sm:$0xff]
        %v1708 = vld [vmem:[#allocation2 + $0x110] sm:$0xff]
        %v1709 = vld [vmem:[#allocation2 + $0x118] sm:$0x3]
        %v1710 = vld [vmem:[#allocation2 + $0x120] sm:$0xff]
        %v1711 = vld [vmem:[#allocation2 + $0x128] sm:$0xff]
        %v1712 = vld [vmem:[#allocation2 + $0x130] sm:$0x3]
        %v1713 = vld [vmem:[#allocation2 + $0x138] sm:$0xff]
        %v1714 = vld [vmem:[#allocation2 + $0x140] sm:$0xff]
        %v1715 = vld [vmem:[#allocation2 + $0x148] sm:$0x3]
        %v1716 = vld [vmem:[#allocation2 + $0x150] sm:$0xff]
        %v1717 = vld [vmem:[#allocation2 + $0x158] sm:$0xff]
        %v1718 = vld [vmem:[#allocation2 + $0x160] sm:$0x3]
        %v1719 = vld [vmem:[#allocation2 + $0x168] sm:$0xff]
        %v1720 = vld [vmem:[#allocation2 + $0x170] sm:$0xff]
        %v1721 = vld [vmem:[#allocation2 + $0x178] sm:$0x3]
        %v1722 = vld [vmem:[#allocation2 + $0x180] sm:$0xff]
        %v1723 = vld [vmem:[#allocation2 + $0x188] sm:$0xff]
        %v1724 = vld [vmem:[#allocation2 + $0x190] sm:$0x3]
        %v1725 = vld [vmem:[#allocation2 + $0x198] sm:$0xff]
        %v1726 = vld [vmem:[#allocation2 + $0x1a0] sm:$0xff]
        %v1727 = vld [vmem:[#allocation2 + $0x1a8] sm:$0x3]
        %v1728 = vld [vmem:[%s3] sm:$0xff]
        %v1729 = vld [vmem:[%s3 + $0x8] sm:$0xf]
        %v1730 = vld [vmem:[%s3 + $0x10] sm:$0xff]
        %v1731 = vld [vmem:[%s3 + $0x18] sm:$0xf]
        %v1732 = vld [vmem:[%s3 + $0x20] sm:$0xff]
        %v1733 = vld [vmem:[%s3 + $0x28] sm:$0xf]
        %vm1782 = vcmask 1046528
        %v1783 = vrot.slane %v1674, 1
        %v1784 = vrot.slane %v1675, 1
        %v1785 = vsel %vm1782, %v1783, %v1784
        %v1786 = vrot.slane %v1676, 1
        %v1787 = vsel %vm1782, %v1784, %v1786
        %v1788 = vrot.slane %v1677, 1
        %v1789 = vrot.slane %v1678, 1
        %v1790 = vsel %vm1782, %v1788, %v1789
        %v1791 = vrot.slane %v1679, 1
        %v1792 = vsel %vm1782, %v1789, %v1791
        %v1793 = vrot.slane %v1680, 1
        %v1794 = vrot.slane %v1681, 1
        %v1795 = vsel %vm1782, %v1793, %v1794
        %v1796 = vrot.slane %v1682, 1
        %v1797 = vsel %vm1782, %v1794, %v1796
        %v1798 = vrot.slane %v1683, 1
        %v1799 = vrot.slane %v1684, 1
        %v1800 = vsel %vm1782, %v1798, %v1799
        %v1801 = vrot.slane %v1685, 1
        %v1802 = vsel %vm1782, %v1799, %v1801
        %v1803 = vrot.slane %v1686, 1
        %v1804 = vrot.slane %v1687, 1
        %v1805 = vsel %vm1782, %v1803, %v1804
        %v1806 = vrot.slane %v1688, 1
        %v1807 = vsel %vm1782, %v1804, %v1806
        %v1808 = vrot.slane %v1689, 1
        %v1809 = vrot.slane %v1690, 1
        %v1810 = vsel %vm1782, %v1808, %v1809
        %v1811 = vrot.slane %v1691, 1
        %v1812 = vsel %vm1782, %v1809, %v1811
        %v1813 = vrot.slane %v1692, 1
        %v1814 = vrot.slane %v1693, 1
        %v1815 = vsel %vm1782, %v1813, %v1814
        %v1816 = vrot.slane %v1694, 1
        %v1817 = vsel %vm1782, %v1814, %v1816
        %v1818 = vrot.slane %v1695, 1
        %v1819 = vrot.slane %v1696, 1
        %v1820 = vsel %vm1782, %v1818, %v1819
        %v1821 = vrot.slane %v1697, 1
        %v1822 = vsel %vm1782, %v1819, %v1821
        %v1823 = vrot.slane %v1698, 1
        %v1824 = vrot.slane %v1699, 1
        %v1825 = vsel %vm1782, %v1823, %v1824
        %v1826 = vrot.slane %v1700, 1
        %v1827 = vsel %vm1782, %v1824, %v1826
        %v1828 = vrot.slane %v1701, 1
        %v1829 = vrot.slane %v1702, 1
        %v1830 = vsel %vm1782, %v1828, %v1829
        %v1831 = vrot.slane %v1703, 1
        %v1832 = vsel %vm1782, %v1829, %v1831
        %v1833 = vrot.slane %v1704, 1
        %v1834 = vrot.slane %v1705, 1
        %v1835 = vsel %vm1782, %v1833, %v1834
        %v1836 = vrot.slane %v1706, 1
        %v1837 = vsel %vm1782, %v1834, %v1836
        %v1838 = vrot.slane %v1707, 1
        %v1839 = vrot.slane %v1708, 1
        %v1840 = vsel %vm1782, %v1838, %v1839
        %v1841 = vrot.slane %v1709, 1
        %v1842 = vsel %vm1782, %v1839, %v1841
        %v1843 = vrot.slane %v1710, 1
        %v1844 = vrot.slane %v1711, 1
        %v1845 = vsel %vm1782, %v1843, %v1844
        %v1846 = vrot.slane %v1712, 1
        %v1847 = vsel %vm1782, %v1844, %v1846
        %v1848 = vrot.slane %v1713, 1
        %v1849 = vrot.slane %v1714, 1
        %v1850 = vsel %vm1782, %v1848, %v1849
        %v1851 = vrot.slane %v1715, 1
        %v1852 = vsel %vm1782, %v1849, %v1851
        %v1853 = vrot.slane %v1716, 1
        %v1854 = vrot.slane %v1717, 1
        %v1855 = vsel %vm1782, %v1853, %v1854
        %v1856 = vrot.slane %v1718, 1
        %v1857 = vsel %vm1782, %v1854, %v1856
        %v1858 = vrot.slane %v1719, 1
        %v1859 = vrot.slane %v1720, 1
        %v1860 = vsel %vm1782, %v1858, %v1859
        %v1861 = vrot.slane %v1721, 1
        %v1862 = vsel %vm1782, %v1859, %v1861
        %vm1863 = vcmask 1045504
        %v1864 = vrot.slane %v1674, 2
        %v1865 = vrot.slane %v1675, 2
        %v1866 = vsel %vm1863, %v1864, %v1865
        %v1867 = vrot.slane %v1676, 2
        %v1868 = vsel %vm1863, %v1865, %v1867
        %v1869 = vrot.slane %v1677, 2
        %v1870 = vrot.slane %v1678, 2
        %v1871 = vsel %vm1863, %v1869, %v1870
        %v1872 = vrot.slane %v1679, 2
        %v1873 = vsel %vm1863, %v1870, %v1872
        %v1874 = vrot.slane %v1680, 2
        %v1875 = vrot.slane %v1681, 2
        %v1876 = vsel %vm1863, %v1874, %v1875
        %v1877 = vrot.slane %v1682, 2
        %v1878 = vsel %vm1863, %v1875, %v1877
        %v1879 = vrot.slane %v1683, 2
        %v1880 = vrot.slane %v1684, 2
        %v1881 = vsel %vm1863, %v1879, %v1880
        %v1882 = vrot.slane %v1685, 2
        %v1883 = vsel %vm1863, %v1880, %v1882
        %v1884 = vrot.slane %v1686, 2
        %v1885 = vrot.slane %v1687, 2
        %v1886 = vsel %vm1863, %v1884, %v1885
        %v1887 = vrot.slane %v1688, 2
        %v1888 = vsel %vm1863, %v1885, %v1887
        %v1889 = vrot.slane %v1689, 2
        %v1890 = vrot.slane %v1690, 2
        %v1891 = vsel %vm1863, %v1889, %v1890
        %v1892 = vrot.slane %v1691, 2
        %v1893 = vsel %vm1863, %v1890, %v1892
        %v1894 = vrot.slane %v1692, 2
        %v1895 = vrot.slane %v1693, 2
        %v1896 = vsel %vm1863, %v1894, %v1895
        %v1897 = vrot.slane %v1694, 2
        %v1898 = vsel %vm1863, %v1895, %v1897
        %v1899 = vrot.slane %v1695, 2
        %v1900 = vrot.slane %v1696, 2
        %v1901 = vsel %vm1863, %v1899, %v1900
        %v1902 = vrot.slane %v1697, 2
        %v1903 = vsel %vm1863, %v1900, %v1902
        %v1904 = vrot.slane %v1698, 2
        %v1905 = vrot.slane %v1699, 2
        %v1906 = vsel %vm1863, %v1904, %v1905
        %v1907 = vrot.slane %v1700, 2
        %v1908 = vsel %vm1863, %v1905, %v1907
        %v1909 = vrot.slane %v1701, 2
        %v1910 = vrot.slane %v1702, 2
        %v1911 = vsel %vm1863, %v1909, %v1910
        %v1912 = vrot.slane %v1703, 2
        %v1913 = vsel %vm1863, %v1910, %v1912
        %v1914 = vrot.slane %v1704, 2
        %v1915 = vrot.slane %v1705, 2
        %v1916 = vsel %vm1863, %v1914, %v1915
        %v1917 = vrot.slane %v1706, 2
        %v1918 = vsel %vm1863, %v1915, %v1917
        %v1919 = vrot.slane %v1707, 2
        %v1920 = vrot.slane %v1708, 2
        %v1921 = vsel %vm1863, %v1919, %v1920
        %v1922 = vrot.slane %v1709, 2
        %v1923 = vsel %vm1863, %v1920, %v1922
        %v1924 = vrot.slane %v1710, 2
        %v1925 = vrot.slane %v1711, 2
        %v1926 = vsel %vm1863, %v1924, %v1925
        %v1927 = vrot.slane %v1712, 2
        %v1928 = vsel %vm1863, %v1925, %v1927
        %v1929 = vrot.slane %v1713, 2
        %v1930 = vrot.slane %v1714, 2
        %v1931 = vsel %vm1863, %v1929, %v1930
        %v1932 = vrot.slane %v1715, 2
        %v1933 = vsel %vm1863, %v1930, %v1932
        %v1934 = vrot.slane %v1716, 2
        %v1935 = vrot.slane %v1717, 2
        %v1936 = vsel %vm1863, %v1934, %v1935
        %v1937 = vrot.slane %v1718, 2
        %v1938 = vsel %vm1863, %v1935, %v1937
        %v1939 = vrot.slane %v1719, 2
        %v1940 = vrot.slane %v1720, 2
        %v1941 = vsel %vm1863, %v1939, %v1940
        %v1942 = vrot.slane %v1721, 2
        %v1943 = vsel %vm1863, %v1940, %v1942
        %1944 = vrot.lane.b32.xlu0 %v1785, 4
        %v1945 = vpop.permute.xlu0 %1944
        %1946 = vrot.lane.b32.xlu0 %v1787, 4
        %v1947 = vpop.permute.xlu0 %1946
        %1948 = vrot.lane.b32.xlu0 %v1790, 4
        %v1949 = vpop.permute.xlu0 %1948
        %1950 = vrot.lane.b32.xlu0 %v1792, 4
        %v1951 = vpop.permute.xlu0 %1950
        %1952 = vrot.lane.b32.xlu0 %v1795, 4
        %v1953 = vpop.permute.xlu0 %1952
        %1954 = vrot.lane.b32.xlu0 %v1797, 4
        %v1955 = vpop.permute.xlu0 %1954
        %1956 = vrot.lane.b32.xlu0 %v1800, 4
        %v1957 = vpop.permute.xlu0 %1956
        %1958 = vrot.lane.b32.xlu0 %v1802, 4
        %v1959 = vpop.permute.xlu0 %1958
        %1960 = vrot.lane.b32.xlu0 %v1805, 4
        %v1961 = vpop.permute.xlu0 %1960
        %1962 = vrot.lane.b32.xlu0 %v1807, 4
        %v1963 = vpop.permute.xlu0 %1962
        %1964 = vrot.lane.b32.xlu0 %v1810, 4
        %v1965 = vpop.permute.xlu0 %1964
        %1966 = vrot.lane.b32.xlu0 %v1812, 4
        %v1967 = vpop.permute.xlu0 %1966
        %1968 = vrot.lane.b32.xlu0 %v1815, 4
        %v1969 = vpop.permute.xlu0 %1968
        %1970 = vrot.lane.b32.xlu0 %v1817, 4
        %v1971 = vpop.permute.xlu0 %1970
        %1972 = vrot.lane.b32.xlu0 %v1820, 4
        %v1973 = vpop.permute.xlu0 %1972
        %1974 = vrot.lane.b32.xlu0 %v1822, 4
        %v1975 = vpop.permute.xlu0 %1974
        %1976 = vrot.lane.b32.xlu0 %v1825, 4
        %v1977 = vpop.permute.xlu0 %1976
        %1978 = vrot.lane.b32.xlu0 %v1827, 4
        %v1979 = vpop.permute.xlu0 %1978
        %1980 = vrot.lane.b32.xlu0 %v1830, 4
        %v1981 = vpop.permute.xlu0 %1980
        %1982 = vrot.lane.b32.xlu0 %v1832, 4
        %v1983 = vpop.permute.xlu0 %1982
        %1984 = vrot.lane.b32.xlu0 %v1835, 4
        %v1985 = vpop.permute.xlu0 %1984
        %1986 = vrot.lane.b32.xlu0 %v1837, 4
        %v1987 = vpop.permute.xlu0 %1986
        %1988 = vrot.lane.b32.xlu0 %v1840, 4
        %v1989 = vpop.permute.xlu0 %1988
        %1990 = vrot.lane.b32.xlu0 %v1842, 4
        %v1991 = vpop.permute.xlu0 %1990
        %1992 = vrot.lane.b32.xlu0 %v1845, 4
        %v1993 = vpop.permute.xlu0 %1992
        %1994 = vrot.lane.b32.xlu0 %v1847, 4
        %v1995 = vpop.permute.xlu0 %1994
        %1996 = vrot.lane.b32.xlu0 %v1850, 4
        %v1997 = vpop.permute.xlu0 %1996
        %1998 = vrot.lane.b32.xlu0 %v1852, 4
        %v1999 = vpop.permute.xlu0 %1998
        %2000 = vrot.lane.b32.xlu0 %v1855, 4
        %v2001 = vpop.permute.xlu0 %2000
        %2002 = vrot.lane.b32.xlu0 %v1857, 4
        %v2003 = vpop.permute.xlu0 %2002
        %2004 = vrot.lane.b32.xlu0 %v1860, 4
        %v2005 = vpop.permute.xlu0 %2004
        %2006 = vrot.lane.b32.xlu0 %v1862, 4
        %v2007 = vpop.permute.xlu0 %2006
        %2040 = vrot.lane.b32.xlu0 %v1866, 8
        %v2041 = vpop.permute.xlu0 %2040
        %2042 = vrot.lane.b32.xlu0 %v1868, 8
        %v2043 = vpop.permute.xlu0 %2042
        %2044 = vrot.lane.b32.xlu0 %v1871, 8
        %v2045 = vpop.permute.xlu0 %2044
        %2046 = vrot.lane.b32.xlu0 %v1873, 8
        %v2047 = vpop.permute.xlu0 %2046
        %2048 = vrot.lane.b32.xlu0 %v1876, 8
        %v2049 = vpop.permute.xlu0 %2048
        %2050 = vrot.lane.b32.xlu0 %v1878, 8
        %v2051 = vpop.permute.xlu0 %2050
        %2052 = vrot.lane.b32.xlu0 %v1881, 8
        %v2053 = vpop.permute.xlu0 %2052
        %2054 = vrot.lane.b32.xlu0 %v1883, 8
        %v2055 = vpop.permute.xlu0 %2054
        %2056 = vrot.lane.b32.xlu0 %v1886, 8
        %v2057 = vpop.permute.xlu0 %2056
        %2058 = vrot.lane.b32.xlu0 %v1888, 8
        %v2059 = vpop.permute.xlu0 %2058
        %2060 = vrot.lane.b32.xlu0 %v1891, 8
        %v2061 = vpop.permute.xlu0 %2060
        %2062 = vrot.lane.b32.xlu0 %v1893, 8
        %v2063 = vpop.permute.xlu0 %2062
        %2064 = vrot.lane.b32.xlu0 %v1896, 8
        %v2065 = vpop.permute.xlu0 %2064
        %2066 = vrot.lane.b32.xlu0 %v1898, 8
        %v2067 = vpop.permute.xlu0 %2066
        %2068 = vrot.lane.b32.xlu0 %v1901, 8
        %v2069 = vpop.permute.xlu0 %2068
        %2070 = vrot.lane.b32.xlu0 %v1903, 8
        %v2071 = vpop.permute.xlu0 %2070
        %2072 = vrot.lane.b32.xlu0 %v1906, 8
        %v2073 = vpop.permute.xlu0 %2072
        %2074 = vrot.lane.b32.xlu0 %v1908, 8
        %v2075 = vpop.permute.xlu0 %2074
        %2076 = vrot.lane.b32.xlu0 %v1911, 8
        %v2077 = vpop.permute.xlu0 %2076
        %2078 = vrot.lane.b32.xlu0 %v1913, 8
        %v2079 = vpop.permute.xlu0 %2078
        %2080 = vrot.lane.b32.xlu0 %v1916, 8
        %v2081 = vpop.permute.xlu0 %2080
        %2082 = vrot.lane.b32.xlu0 %v1918, 8
        %v2083 = vpop.permute.xlu0 %2082
        %2084 = vrot.lane.b32.xlu0 %v1921, 8
        %v2085 = vpop.permute.xlu0 %2084
        %2086 = vrot.lane.b32.xlu0 %v1923, 8
        %v2087 = vpop.permute.xlu0 %2086
        %2088 = vrot.lane.b32.xlu0 %v1926, 8
        %v2089 = vpop.permute.xlu0 %2088
        %2090 = vrot.lane.b32.xlu0 %v1928, 8
        %v2091 = vpop.permute.xlu0 %2090
        %2092 = vrot.lane.b32.xlu0 %v1931, 8
        %v2093 = vpop.permute.xlu0 %2092
        %2094 = vrot.lane.b32.xlu0 %v1933, 8
        %v2095 = vpop.permute.xlu0 %2094
        %2096 = vrot.lane.b32.xlu0 %v1936, 8
        %v2097 = vpop.permute.xlu0 %2096
        %2098 = vrot.lane.b32.xlu0 %v1938, 8
        %v2099 = vpop.permute.xlu0 %2098
        %2100 = vrot.lane.b32.xlu0 %v1941, 8
        %v2101 = vpop.permute.xlu0 %2100
        %2102 = vrot.lane.b32.xlu0 %v1943, 8
        %v2103 = vpop.permute.xlu0 %2102
        %v2136 = vsel %vm299, %v1674, %v1945
        %v2137 = vsel %vm299, %v1675, %v1947
        %v2138 = vsel %vm299, %v1677, %v1949
        %v2139 = vsel %vm299, %v1678, %v1951
        %v2140 = vsel %vm299, %v1680, %v1953
        %v2141 = vsel %vm299, %v1681, %v1955
        %v2142 = vsel %vm299, %v1683, %v1957
        %v2143 = vsel %vm299, %v1684, %v1959
        %v2144 = vsel %vm299, %v1686, %v1961
        %v2145 = vsel %vm299, %v1687, %v1963
        %v2146 = vsel %vm299, %v1689, %v1965
        %v2147 = vsel %vm299, %v1690, %v1967
        %v2148 = vsel %vm299, %v1692, %v1969
        %v2149 = vsel %vm299, %v1693, %v1971
        %v2150 = vsel %vm299, %v1695, %v1973
        %v2151 = vsel %vm299, %v1696, %v1975
        %v2152 = vsel %vm299, %v1698, %v1977
        %v2153 = vsel %vm299, %v1699, %v1979
        %v2154 = vsel %vm299, %v1701, %v1981
        %v2155 = vsel %vm299, %v1702, %v1983
        %v2156 = vsel %vm299, %v1704, %v1985
        %v2157 = vsel %vm299, %v1705, %v1987
        %v2158 = vsel %vm299, %v1707, %v1989
        %v2159 = vsel %vm299, %v1708, %v1991
        %v2160 = vsel %vm299, %v1710, %v1993
        %v2161 = vsel %vm299, %v1711, %v1995
        %v2162 = vsel %vm299, %v1713, %v1997
        %v2163 = vsel %vm299, %v1714, %v1999
        %v2164 = vsel %vm299, %v1716, %v2001
        %v2165 = vsel %vm299, %v1717, %v2003
        %v2166 = vsel %vm299, %v1719, %v2005
        %v2167 = vsel %vm299, %v1720, %v2007
        %v2168 = vsel %vm361, %v2136, %v2041
        %v2169 = vsel %vm361, %v2137, %v2043
        %v2170 = vsel %vm361, %v2138, %v2045
        %v2171 = vsel %vm361, %v2139, %v2047
        %v2172 = vsel %vm361, %v2140, %v2049
        %v2173 = vsel %vm361, %v2141, %v2051
        %v2174 = vsel %vm361, %v2142, %v2053
        %v2175 = vsel %vm361, %v2143, %v2055
        %v2176 = vsel %vm361, %v2144, %v2057
        %v2177 = vsel %vm361, %v2145, %v2059
        %v2178 = vsel %vm361, %v2146, %v2061
        %v2179 = vsel %vm361, %v2147, %v2063
        %v2180 = vsel %vm361, %v2148, %v2065
        %v2181 = vsel %vm361, %v2149, %v2067
        %v2182 = vsel %vm361, %v2150, %v2069
        %v2183 = vsel %vm361, %v2151, %v2071
        %v2184 = vsel %vm361, %v2152, %v2073
        %v2185 = vsel %vm361, %v2153, %v2075
        %v2186 = vsel %vm361, %v2154, %v2077
        %v2187 = vsel %vm361, %v2155, %v2079
        %v2188 = vsel %vm361, %v2156, %v2081
        %v2189 = vsel %vm361, %v2157, %v2083
        %v2190 = vsel %vm361, %v2158, %v2085
        %v2191 = vsel %vm361, %v2159, %v2087
        %v2192 = vsel %vm361, %v2160, %v2089
        %v2193 = vsel %vm361, %v2161, %v2091
        %v2194 = vsel %vm361, %v2162, %v2093
        %v2195 = vsel %vm361, %v2163, %v2095
        %v2196 = vsel %vm361, %v2164, %v2097
        %v2197 = vsel %vm361, %v2165, %v2099
        %v2198 = vsel %vm361, %v2166, %v2101
        %v2199 = vsel %vm361, %v2167, %v2103
        %v2203 = vrot.slane %v1722, 1
        %v2204 = vrot.slane %v1723, 1
        %v2205 = vsel %vm1782, %v2203, %v2204
        %v2206 = vrot.slane %v1724, 1
        %v2207 = vsel %vm1782, %v2204, %v2206
        %v2208 = vrot.slane %v1722, 2
        %v2209 = vrot.slane %v1723, 2
        %v2210 = vsel %vm1863, %v2208, %v2209
        %v2211 = vrot.slane %v1724, 2
        %v2212 = vsel %vm1863, %v2209, %v2211
        %2213 = vrot.lane.b32.xlu0 %v2205, 4
        %v2214 = vpop.permute.xlu0 %2213
        %2215 = vrot.lane.b32.xlu0 %v2207, 4
        %v2216 = vpop.permute.xlu0 %2215
        %2219 = vrot.lane.b32.xlu0 %v2210, 8
        %v2220 = vpop.permute.xlu0 %2219
        %2221 = vrot.lane.b32.xlu0 %v2212, 8
        %v2222 = vpop.permute.xlu0 %2221
        %v2225 = vsel %vm299, %v1722, %v2214
        %v2226 = vsel %vm299, %v1723, %v2216
        %v2227 = vsel %vm361, %v2225, %v2220
        %v2228 = vsel %vm361, %v2226, %v2222
        %vm2229 = vcmask 97280
        %v2231 = vsel %vm2229, %v2170, 0
        %v2234 = vsel %vm2229, %v2171, 0
        %v2237 = vsel %vm2229, %v2172, 0
        %v2240 = vsel %vm2229, %v2173, 0
        %v2243 = vsel %vm2229, %v2174, 0
        %v2246 = vsel %vm2229, %v2175, 0
        %v2249 = vsel %vm2229, %v2176, 0
        %v2252 = vsel %vm2229, %v2177, 0
        %v2255 = vsel %vm2229, %v2178, 0
        %v2258 = vsel %vm2229, %v2179, 0
        %v2261 = vsel %vm2229, %v2180, 0
        %v2264 = vsel %vm2229, %v2181, 0
        %v2267 = vsel %vm2229, %v2182, 0
        %v2270 = vsel %vm2229, %v2183, 0
        %v2273 = vsel %vm2229, %v2184, 0
        %v2276 = vsel %vm2229, %v2185, 0
        %v2279 = vsel %vm2229, %v2186, 0
        %v2282 = vsel %vm2229, %v2187, 0
        %v2285 = vsel %vm2229, %v2188, 0
        %v2288 = vsel %vm2229, %v2189, 0
        %v2291 = vsel %vm2229, %v2190, 0
        %v2294 = vsel %vm2229, %v2191, 0
        %v2297 = vsel %vm2229, %v2192, 0
        %v2300 = vsel %vm2229, %v2193, 0
        %v2303 = vsel %vm2229, %v2194, 0
        %v2306 = vsel %vm2229, %v2195, 0
        %v2309 = vsel %vm2229, %v2196, 0
        %v2312 = vsel %vm2229, %v2197, 0
        %v2315 = vsel %vm2229, %v2198, 0
        %v2318 = vsel %vm2229, %v2199, 0
        %v2321 = vsel %vm2229, %v2227, 0
        %v2324 = vsel %vm2229, %v2228, 0
        %vm2326 = vcmask 1043456
        %v2328 = vsel %vm2326, %v1731, 0
        %2330 = vmatprep.subr.mxu0 0.0
        %2331 = vmatpush1.msra.mxu0 0.0
        %2332 = vmatprep.subr.mxu0 0.0
        %2333 = vmatpush1.msra.mxu0 0.0
        %2334 = vmatprep.subr.mxu0 0.0
        %2335 = vmatpush1.msra.mxu0 0.0
        %2336 = vmatprep.subr.mxu0 0.0
        %2337 = vmatpush1.msra.mxu0 0.0
        %2338 = vmatprep.subr.mxu0 0.0
        %2339 = vmatpush1.msra.mxu0 0.0
        %2340 = vmatprep.subr.mxu0 0.0
        %2341 = vmatpush1.msra.mxu0 0.0
        %2342 = vmatprep.subr.mxu0 0.0
        %2343 = vmatpush1.msra.mxu0 0.0
        %2344 = vmatprep.subr.mxu0 0.0
        %2345 = vmatpush1.msra.mxu0 0.0
        %2346 = vmatprep.subr.mxu0 0.0
        %2347 = vmatpush1.msra.mxu0 0.0
        %2348 = vmatprep.subr.mxu0 0.0
        %2349 = vmatpush1.msra.mxu0 0.0
        %2350 = vmatprep.subr.mxu0 0.0
        %2351 = vmatpush1.msra.mxu0 0.0
        %2352 = vmatprep.subr.mxu0 0.0
        %2353 = vmatpush1.msra.mxu0 0.0
        %2354 = vmatprep.subr.mxu0 0.0
        %2355 = vmatpush1.msra.mxu0 0.0
        %2356 = vmatprep.subr.mxu0 0.0
        %2357 = vmatpush1.msra.mxu0 0.0
        %2358 = vmatprep.subr.mxu0 0.0
        %2359 = vmatpush1.msra.mxu0 %v2328
        %2360 = vmatprep.subr.mxu0 0.0
        %2361 = vmatpush1.msra.mxu0 %v1730
        %2362 = vmatprep.subr.mxu0 0.0
        %2363 = vmatpush2.msra.mxu0 0.0
        %2364 = vmatprep.subr.mxu0 0.0
        %2365 = vmatpush2.msra.mxu0 0.0
        %2366 = vmatprep.subr.mxu0 0.0
        %2367 = vmatpush2.msra.mxu0 0.0
        %2368 = vmatprep.subr.mxu0 0.0
        %2369 = vmatpush2.msra.mxu0 0.0
        %2370 = vmatprep.subr.mxu0 0.0
        %2371 = vmatpush2.msra.mxu0 0.0
        %2372 = vmatprep.subr.mxu0 0.0
        %2373 = vmatpush2.msra.mxu0 0.0
        %2374 = vmatprep.subr.mxu0 0.0
        %2375 = vmatpush2.msra.mxu0 0.0
        %2376 = vmatprep.subr.mxu0 0.0
        %2377 = vmatpush2.msra.mxu0 0.0
        %2378 = vmatprep.subr.mxu0 0.0
        %2379 = vmatpush2.msra.mxu0 0.0
        %2380 = vmatprep.subr.mxu0 0.0
        %2381 = vmatpush2.msra.mxu0 0.0
        %2382 = vmatprep.subr.mxu0 0.0
        %2383 = vmatpush2.msra.mxu0 0.0
        %2384 = vmatprep.subr.mxu0 0.0
        %2385 = vmatpush2.msra.mxu0 0.0
        %2386 = vmatprep.subr.mxu0 0.0
        %2387 = vmatpush2.msra.mxu0 0.0
        %2388 = vmatprep.subr.mxu0 0.0
        %2389 = vmatpush2.msra.mxu0 0.0
        %2390 = vmatprep.subr.mxu0 0.0
        %2391 = vmatpush2.msra.mxu0 0.0
        %2392 = vmatprep.subr.mxu0 0.0
        %2393 = vmatpush2.msra.mxu0 0.0
        %2394 = vmatprep.mubr.f32.mxu0 0.0
        %2395 = vmatmul.mubr.f32.gmra.mxu0 %v2231
        %v2396 = vpop.f32.mrf.mxu0
        %v2397 = vadd.f32 0.0, %v2396
        %v2398 = vpop.f32.mrf.mxu0
        %2399 = vmatprep.mubr.f32.mxu0 0.0
        %2400 = vmatmul.mubr.f32.gmra.mxu0 %v2234
        %v2401 = vpop.f32.mrf.mxu0
        %v2402 = vadd.f32 0.0, %v2401
        %v2403 = vpop.f32.mrf.mxu0
        %2404 = vmatprep.mubr.f32.mxu0 0.0
        %2405 = vmatmul.mubr.f32.gmra.mxu0 %v2237
        %v2406 = vpop.f32.mrf.mxu0
        %v2407 = vadd.f32 0.0, %v2406
        %v2408 = vpop.f32.mrf.mxu0
        %2409 = vmatprep.mubr.f32.mxu0 0.0
        %2410 = vmatmul.mubr.f32.gmra.mxu0 %v2240
        %v2411 = vpop.f32.mrf.mxu0
        %v2412 = vadd.f32 0.0, %v2411
        %v2413 = vpop.f32.mrf.mxu0
        %2414 = vmatprep.mubr.f32.mxu0 0.0
        %2415 = vmatmul.mubr.f32.gmra.mxu0 %v2243
        %v2416 = vpop.f32.mrf.mxu0
        %v2417 = vadd.f32 0.0, %v2416
        %v2418 = vpop.f32.mrf.mxu0
        %2419 = vmatprep.mubr.f32.mxu0 0.0
        %2420 = vmatmul.mubr.f32.gmra.mxu0 %v2246
        %v2421 = vpop.f32.mrf.mxu0
        %v2422 = vadd.f32 0.0, %v2421
        %v2423 = vpop.f32.mrf.mxu0
        %2424 = vmatprep.mubr.f32.mxu0 0.0
        %2425 = vmatmul.mubr.f32.gmra.mxu0 %v2249
        %v2426 = vpop.f32.mrf.mxu0
        %v2427 = vadd.f32 0.0, %v2426
        %v2428 = vpop.f32.mrf.mxu0
        %2429 = vmatprep.mubr.f32.mxu0 0.0
        %2430 = vmatmul.mubr.f32.gmra.mxu0 %v2252
        %v2431 = vpop.f32.mrf.mxu0
        %v2432 = vadd.f32 0.0, %v2431
        %v2433 = vpop.f32.mrf.mxu0
        %2434 = vmatprep.mubr.f32.mxu0 0.0
        %2435 = vmatmul.mubr.f32.gmra.mxu0 %v2255
        %v2436 = vpop.f32.mrf.mxu0
        %v2437 = vadd.f32 0.0, %v2436
        %v2438 = vpop.f32.mrf.mxu0
        %2439 = vmatprep.mubr.f32.mxu0 0.0
        %2440 = vmatmul.mubr.f32.gmra.mxu0 %v2258
        %v2441 = vpop.f32.mrf.mxu0
        %v2442 = vadd.f32 0.0, %v2441
        %v2443 = vpop.f32.mrf.mxu0
        %2444 = vmatprep.mubr.f32.mxu0 0.0
        %2445 = vmatmul.mubr.f32.gmra.mxu0 %v2261
        %v2446 = vpop.f32.mrf.mxu0
        %v2447 = vadd.f32 0.0, %v2446
        %v2448 = vpop.f32.mrf.mxu0
        %2449 = vmatprep.mubr.f32.mxu0 0.0
        %2450 = vmatmul.mubr.f32.gmra.mxu0 %v2264
        %v2451 = vpop.f32.mrf.mxu0
        %v2452 = vadd.f32 0.0, %v2451
        %v2453 = vpop.f32.mrf.mxu0
        %2454 = vmatprep.mubr.f32.mxu0 0.0
        %2455 = vmatmul.mubr.f32.gmra.mxu0 %v2267
        %v2456 = vpop.f32.mrf.mxu0
        %v2457 = vadd.f32 0.0, %v2456
        %v2458 = vpop.f32.mrf.mxu0
        %2459 = vmatprep.mubr.f32.mxu0 0.0
        %2460 = vmatmul.mubr.f32.gmra.mxu0 %v2270
        %v2461 = vpop.f32.mrf.mxu0
        %v2462 = vadd.f32 0.0, %v2461
        %v2463 = vpop.f32.mrf.mxu0
        %2464 = vmatprep.mubr.f32.mxu0 0.0
        %2465 = vmatmul.mubr.f32.gmra.mxu0 %v2273
        %v2466 = vpop.f32.mrf.mxu0
        %v2467 = vadd.f32 0.0, %v2466
        %v2468 = vpop.f32.mrf.mxu0
        %2469 = vmatprep.mubr.f32.mxu0 0.0
        %2470 = vmatmul.mubr.f32.gmra.mxu0 %v2276
        %v2471 = vpop.f32.mrf.mxu0
        %v2472 = vadd.f32 0.0, %v2471
        %v2473 = vpop.f32.mrf.mxu0
        %2474 = vmatprep.mubr.f32.mxu0 0.0
        %2475 = vmatmul.mubr.f32.gmra.mxu0 %v2279
        %v2476 = vpop.f32.mrf.mxu0
        %v2477 = vadd.f32 0.0, %v2476
        %v2478 = vpop.f32.mrf.mxu0
        %2479 = vmatprep.mubr.f32.mxu0 0.0
        %2480 = vmatmul.mubr.f32.gmra.mxu0 %v2282
        %v2481 = vpop.f32.mrf.mxu0
        %v2482 = vadd.f32 0.0, %v2481
        %v2483 = vpop.f32.mrf.mxu0
        %2484 = vmatprep.mubr.f32.mxu0 0.0
        %2485 = vmatmul.mubr.f32.gmra.mxu0 %v2285
        %v2486 = vpop.f32.mrf.mxu0
        %v2487 = vadd.f32 0.0, %v2486
        %v2488 = vpop.f32.mrf.mxu0
        %2489 = vmatprep.mubr.f32.mxu0 0.0
        %2490 = vmatmul.mubr.f32.gmra.mxu0 %v2288
        %v2491 = vpop.f32.mrf.mxu0
        %v2492 = vadd.f32 0.0, %v2491
        %v2493 = vpop.f32.mrf.mxu0
        %2494 = vmatprep.mubr.f32.mxu0 0.0
        %2495 = vmatmul.mubr.f32.gmra.mxu0 %v2291
        %v2496 = vpop.f32.mrf.mxu0
        %v2497 = vadd.f32 0.0, %v2496
        %v2498 = vpop.f32.mrf.mxu0
        %2499 = vmatprep.mubr.f32.mxu0 0.0
        %2500 = vmatmul.mubr.f32.gmra.mxu0 %v2294
        %v2501 = vpop.f32.mrf.mxu0
        %v2502 = vadd.f32 0.0, %v2501
        %v2503 = vpop.f32.mrf.mxu0
        %2504 = vmatprep.mubr.f32.mxu0 0.0
        %2505 = vmatmul.mubr.f32.gmra.mxu0 %v2297
        %v2506 = vpop.f32.mrf.mxu0
        %v2507 = vadd.f32 0.0, %v2506
        %v2508 = vpop.f32.mrf.mxu0
        %2509 = vmatprep.mubr.f32.mxu0 0.0
        %2510 = vmatmul.mubr.f32.gmra.mxu0 %v2300
        %v2511 = vpop.f32.mrf.mxu0
        %v2512 = vadd.f32 0.0, %v2511
        %v2513 = vpop.f32.mrf.mxu0
        %2514 = vmatprep.mubr.f32.mxu0 0.0
        %2515 = vmatmul.mubr.f32.gmra.mxu0 %v2303
        %v2516 = vpop.f32.mrf.mxu0
        %v2517 = vadd.f32 0.0, %v2516
        %v2518 = vpop.f32.mrf.mxu0
        %2519 = vmatprep.mubr.f32.mxu0 0.0
        %2520 = vmatmul.mubr.f32.gmra.mxu0 %v2306
        %v2521 = vpop.f32.mrf.mxu0
        %v2522 = vadd.f32 0.0, %v2521
        %v2523 = vpop.f32.mrf.mxu0
        %2524 = vmatprep.mubr.f32.mxu0 0.0
        %2525 = vmatmul.mubr.f32.gmra.mxu0 %v2309
        %v2526 = vpop.f32.mrf.mxu0
        %v2527 = vadd.f32 0.0, %v2526
        %v2528 = vpop.f32.mrf.mxu0
        %2529 = vmatprep.mubr.f32.mxu0 0.0
        %2530 = vmatmul.mubr.f32.gmra.mxu0 %v2312
        %v2531 = vpop.f32.mrf.mxu0
        %v2532 = vadd.f32 0.0, %v2531
        %v2533 = vpop.f32.mrf.mxu0
        %2534 = vmatprep.mubr.f32.mxu0 0.0
        %2535 = vmatmul.mubr.f32.gmra.mxu0 %v2315
        %v2536 = vpop.f32.mrf.mxu0
        %v2537 = vadd.f32 0.0, %v2536
        %v2538 = vpop.f32.mrf.mxu0
        %2539 = vmatprep.mubr.f32.mxu0 0.0
        %2540 = vmatmul.mubr.f32.gmra.mxu0 %v2318
        %v2541 = vpop.f32.mrf.mxu0
        %v2542 = vadd.f32 0.0, %v2541
        %v2543 = vpop.f32.mrf.mxu0
        %2544 = vmatprep.mubr.f32.mxu0 0.0
        %2545 = vmatmul.mubr.f32.gmra.mxu0 %v2321
        %v2546 = vpop.f32.mrf.mxu0
        %v2547 = vadd.f32 0.0, %v2546
        %v2548 = vpop.f32.mrf.mxu0
        %2549 = vmatprep.mubr.f32.mxu0 0.0
        %2550 = vmatmul.mubr.f32.gmra.mxu0 %v2324
        %v2551 = vpop.f32.mrf.mxu0
        %v2552 = vadd.f32 0.0, %v2551
        %v2553 = vpop.f32.mrf.mxu0
        %2554 = vdwg.mxu0
        %v2556 = vsel %vm2229, %v2168, 0
        %v2559 = vsel %vm2229, %v2169, 0
        %v2562 = vsel %vm2326, %v1729, 0
        %2564 = vmatprep.subr.mxu0 0.0
        %2565 = vmatpush1.msra.mxu0 0.0
        %2566 = vmatprep.subr.mxu0 0.0
        %2567 = vmatpush1.msra.mxu0 0.0
        %2568 = vmatprep.subr.mxu0 0.0
        %2569 = vmatpush1.msra.mxu0 0.0
        %2570 = vmatprep.subr.mxu0 0.0
        %2571 = vmatpush1.msra.mxu0 0.0
        %2572 = vmatprep.subr.mxu0 0.0
        %2573 = vmatpush1.msra.mxu0 0.0
        %2574 = vmatprep.subr.mxu0 0.0
        %2575 = vmatpush1.msra.mxu0 0.0
        %2576 = vmatprep.subr.mxu0 0.0
        %2577 = vmatpush1.msra.mxu0 0.0
        %2578 = vmatprep.subr.mxu0 0.0
        %2579 = vmatpush1.msra.mxu0 0.0
        %2580 = vmatprep.subr.mxu0 0.0
        %2581 = vmatpush1.msra.mxu0 0.0
        %2582 = vmatprep.subr.mxu0 0.0
        %2583 = vmatpush1.msra.mxu0 0.0
        %2584 = vmatprep.subr.mxu0 0.0
        %2585 = vmatpush1.msra.mxu0 0.0
        %2586 = vmatprep.subr.mxu0 0.0
        %2587 = vmatpush1.msra.mxu0 0.0
        %2588 = vmatprep.subr.mxu0 0.0
        %2589 = vmatpush1.msra.mxu0 0.0
        %2590 = vmatprep.subr.mxu0 0.0
        %2591 = vmatpush1.msra.mxu0 0.0
        %2592 = vmatprep.subr.mxu0 0.0
        %2593 = vmatpush1.msra.mxu0 %v2562
        %2594 = vmatprep.subr.mxu0 0.0
        %2595 = vmatpush1.msra.mxu0 %v1728
        %2596 = vmatprep.subr.mxu0 0.0
        %2597 = vmatpush2.msra.mxu0 0.0
        %2598 = vmatprep.subr.mxu0 0.0
        %2599 = vmatpush2.msra.mxu0 0.0
        %2600 = vmatprep.subr.mxu0 0.0
        %2601 = vmatpush2.msra.mxu0 0.0
        %2602 = vmatprep.subr.mxu0 0.0
        %2603 = vmatpush2.msra.mxu0 0.0
        %2604 = vmatprep.subr.mxu0 0.0
        %2605 = vmatpush2.msra.mxu0 0.0
        %2606 = vmatprep.subr.mxu0 0.0
        %2607 = vmatpush2.msra.mxu0 0.0
        %2608 = vmatprep.subr.mxu0 0.0
        %2609 = vmatpush2.msra.mxu0 0.0
        %2610 = vmatprep.subr.mxu0 0.0
        %2611 = vmatpush2.msra.mxu0 0.0
        %2612 = vmatprep.subr.mxu0 0.0
        %2613 = vmatpush2.msra.mxu0 0.0
        %2614 = vmatprep.subr.mxu0 0.0
        %2615 = vmatpush2.msra.mxu0 0.0
        %2616 = vmatprep.subr.mxu0 0.0
        %2617 = vmatpush2.msra.mxu0 0.0
        %2618 = vmatprep.subr.mxu0 0.0
        %2619 = vmatpush2.msra.mxu0 0.0
        %2620 = vmatprep.subr.mxu0 0.0
        %2621 = vmatpush2.msra.mxu0 0.0
        %2622 = vmatprep.subr.mxu0 0.0
        %2623 = vmatpush2.msra.mxu0 0.0
        %2624 = vmatprep.subr.mxu0 0.0
        %2625 = vmatpush2.msra.mxu0 0.0
        %2626 = vmatprep.subr.mxu0 0.0
        %2627 = vmatpush2.msra.mxu0 0.0
        %2628 = vmatprep.mubr.f32.mxu0 0.0
        %2629 = vmatmul.mubr.f32.gmra.mxu0 %v2556
        %v2630 = vpop.f32.mrf.mxu0
        %v2631 = vadd.f32 %v2397, %v2630
        %v2632 = vpop.f32.mrf.mxu0
        %2633 = vmatprep.mubr.f32.mxu0 0.0
        %2634 = vmatmul.mubr.f32.gmra.mxu0 %v2559
        %v2635 = vpop.f32.mrf.mxu0
        %v2636 = vadd.f32 %v2402, %v2635
        %v2637 = vpop.f32.mrf.mxu0
        %2638 = vmatprep.mubr.f32.mxu0 0.0
        %2639 = vmatmul.mubr.f32.gmra.mxu0 %v2231
        %v2640 = vpop.f32.mrf.mxu0
        %v2641 = vadd.f32 %v2407, %v2640
        %v2642 = vpop.f32.mrf.mxu0
        %2643 = vmatprep.mubr.f32.mxu0 0.0
        %2644 = vmatmul.mubr.f32.gmra.mxu0 %v2234
        %v2645 = vpop.f32.mrf.mxu0
        %v2646 = vadd.f32 %v2412, %v2645
        %v2647 = vpop.f32.mrf.mxu0
        %2648 = vmatprep.mubr.f32.mxu0 0.0
        %2649 = vmatmul.mubr.f32.gmra.mxu0 %v2237
        %v2650 = vpop.f32.mrf.mxu0
        %v2651 = vadd.f32 %v2417, %v2650
        %v2652 = vpop.f32.mrf.mxu0
        %2653 = vmatprep.mubr.f32.mxu0 0.0
        %2654 = vmatmul.mubr.f32.gmra.mxu0 %v2240
        %v2655 = vpop.f32.mrf.mxu0
        %v2656 = vadd.f32 %v2422, %v2655
        %v2657 = vpop.f32.mrf.mxu0
        %2658 = vmatprep.mubr.f32.mxu0 0.0
        %2659 = vmatmul.mubr.f32.gmra.mxu0 %v2243
        %v2660 = vpop.f32.mrf.mxu0
        %v2661 = vadd.f32 %v2427, %v2660
        %v2662 = vpop.f32.mrf.mxu0
        %2663 = vmatprep.mubr.f32.mxu0 0.0
        %2664 = vmatmul.mubr.f32.gmra.mxu0 %v2246
        %v2665 = vpop.f32.mrf.mxu0
        %v2666 = vadd.f32 %v2432, %v2665
        %v2667 = vpop.f32.mrf.mxu0
        %2668 = vmatprep.mubr.f32.mxu0 0.0
        %2669 = vmatmul.mubr.f32.gmra.mxu0 %v2249
        %v2670 = vpop.f32.mrf.mxu0
        %v2671 = vadd.f32 %v2437, %v2670
        %v2672 = vpop.f32.mrf.mxu0
        %2673 = vmatprep.mubr.f32.mxu0 0.0
        %2674 = vmatmul.mubr.f32.gmra.mxu0 %v2252
        %v2675 = vpop.f32.mrf.mxu0
        %v2676 = vadd.f32 %v2442, %v2675
        %v2677 = vpop.f32.mrf.mxu0
        %2678 = vmatprep.mubr.f32.mxu0 0.0
        %2679 = vmatmul.mubr.f32.gmra.mxu0 %v2255
        %v2680 = vpop.f32.mrf.mxu0
        %v2681 = vadd.f32 %v2447, %v2680
        %v2682 = vpop.f32.mrf.mxu0
        %2683 = vmatprep.mubr.f32.mxu0 0.0
        %2684 = vmatmul.mubr.f32.gmra.mxu0 %v2258
        %v2685 = vpop.f32.mrf.mxu0
        %v2686 = vadd.f32 %v2452, %v2685
        %v2687 = vpop.f32.mrf.mxu0
        %2688 = vmatprep.mubr.f32.mxu0 0.0
        %2689 = vmatmul.mubr.f32.gmra.mxu0 %v2261
        %v2690 = vpop.f32.mrf.mxu0
        %v2691 = vadd.f32 %v2457, %v2690
        %v2692 = vpop.f32.mrf.mxu0
        %2693 = vmatprep.mubr.f32.mxu0 0.0
        %2694 = vmatmul.mubr.f32.gmra.mxu0 %v2264
        %v2695 = vpop.f32.mrf.mxu0
        %v2696 = vadd.f32 %v2462, %v2695
        %v2697 = vpop.f32.mrf.mxu0
        %2698 = vmatprep.mubr.f32.mxu0 0.0
        %2699 = vmatmul.mubr.f32.gmra.mxu0 %v2267
        %v2700 = vpop.f32.mrf.mxu0
        %v2701 = vadd.f32 %v2467, %v2700
        %v2702 = vpop.f32.mrf.mxu0
        %2703 = vmatprep.mubr.f32.mxu0 0.0
        %2704 = vmatmul.mubr.f32.gmra.mxu0 %v2270
        %v2705 = vpop.f32.mrf.mxu0
        %v2706 = vadd.f32 %v2472, %v2705
        %v2707 = vpop.f32.mrf.mxu0
        %2708 = vmatprep.mubr.f32.mxu0 0.0
        %2709 = vmatmul.mubr.f32.gmra.mxu0 %v2273
        %v2710 = vpop.f32.mrf.mxu0
        %v2711 = vadd.f32 %v2477, %v2710
        %v2712 = vpop.f32.mrf.mxu0
        %2713 = vmatprep.mubr.f32.mxu0 0.0
        %2714 = vmatmul.mubr.f32.gmra.mxu0 %v2276
        %v2715 = vpop.f32.mrf.mxu0
        %v2716 = vadd.f32 %v2482, %v2715
        %v2717 = vpop.f32.mrf.mxu0
        %2718 = vmatprep.mubr.f32.mxu0 0.0
        %2719 = vmatmul.mubr.f32.gmra.mxu0 %v2279
        %v2720 = vpop.f32.mrf.mxu0
        %v2721 = vadd.f32 %v2487, %v2720
        %v2722 = vpop.f32.mrf.mxu0
        %2723 = vmatprep.mubr.f32.mxu0 0.0
        %2724 = vmatmul.mubr.f32.gmra.mxu0 %v2282
        %v2725 = vpop.f32.mrf.mxu0
        %v2726 = vadd.f32 %v2492, %v2725
        %v2727 = vpop.f32.mrf.mxu0
        %2728 = vmatprep.mubr.f32.mxu0 0.0
        %2729 = vmatmul.mubr.f32.gmra.mxu0 %v2285
        %v2730 = vpop.f32.mrf.mxu0
        %v2731 = vadd.f32 %v2497, %v2730
        %v2732 = vpop.f32.mrf.mxu0
        %2733 = vmatprep.mubr.f32.mxu0 0.0
        %2734 = vmatmul.mubr.f32.gmra.mxu0 %v2288
        %v2735 = vpop.f32.mrf.mxu0
        %v2736 = vadd.f32 %v2502, %v2735
        %v2737 = vpop.f32.mrf.mxu0
        %2738 = vmatprep.mubr.f32.mxu0 0.0
        %2739 = vmatmul.mubr.f32.gmra.mxu0 %v2291
        %v2740 = vpop.f32.mrf.mxu0
        %v2741 = vadd.f32 %v2507, %v2740
        %v2742 = vpop.f32.mrf.mxu0
        %2743 = vmatprep.mubr.f32.mxu0 0.0
        %2744 = vmatmul.mubr.f32.gmra.mxu0 %v2294
        %v2745 = vpop.f32.mrf.mxu0
        %v2746 = vadd.f32 %v2512, %v2745
        %v2747 = vpop.f32.mrf.mxu0
        %2748 = vmatprep.mubr.f32.mxu0 0.0
        %2749 = vmatmul.mubr.f32.gmra.mxu0 %v2297
        %v2750 = vpop.f32.mrf.mxu0
        %v2751 = vadd.f32 %v2517, %v2750
        %v2752 = vpop.f32.mrf.mxu0
        %2753 = vmatprep.mubr.f32.mxu0 0.0
        %2754 = vmatmul.mubr.f32.gmra.mxu0 %v2300
        %v2755 = vpop.f32.mrf.mxu0
        %v2756 = vadd.f32 %v2522, %v2755
        %v2757 = vpop.f32.mrf.mxu0
        %2758 = vmatprep.mubr.f32.mxu0 0.0
        %2759 = vmatmul.mubr.f32.gmra.mxu0 %v2303
        %v2760 = vpop.f32.mrf.mxu0
        %v2761 = vadd.f32 %v2527, %v2760
        %v2762 = vpop.f32.mrf.mxu0
        %2763 = vmatprep.mubr.f32.mxu0 0.0
        %2764 = vmatmul.mubr.f32.gmra.mxu0 %v2306
        %v2765 = vpop.f32.mrf.mxu0
        %v2766 = vadd.f32 %v2532, %v2765
        %v2767 = vpop.f32.mrf.mxu0
        %2768 = vmatprep.mubr.f32.mxu0 0.0
        %2769 = vmatmul.mubr.f32.gmra.mxu0 %v2309
        %v2770 = vpop.f32.mrf.mxu0
        %v2771 = vadd.f32 %v2537, %v2770
        %v2772 = vpop.f32.mrf.mxu0
        %2773 = vmatprep.mubr.f32.mxu0 0.0
        %2774 = vmatmul.mubr.f32.gmra.mxu0 %v2312
        %v2775 = vpop.f32.mrf.mxu0
        %v2776 = vadd.f32 %v2542, %v2775
        %v2777 = vpop.f32.mrf.mxu0
        %2778 = vmatprep.mubr.f32.mxu0 0.0
        %2779 = vmatmul.mubr.f32.gmra.mxu0 %v2315
        %v2780 = vpop.f32.mrf.mxu0
        %v2781 = vadd.f32 %v2547, %v2780
        %v2782 = vpop.f32.mrf.mxu0
        %2783 = vmatprep.mubr.f32.mxu0 0.0
        %2784 = vmatmul.mubr.f32.gmra.mxu0 %v2318
        %v2785 = vpop.f32.mrf.mxu0
        %v2786 = vadd.f32 %v2552, %v2785
        %v2787 = vpop.f32.mrf.mxu0
        %2788 = vdwg.mxu0
        %v2792 = vrot.slane %v1725, 1
        %v2793 = vrot.slane %v1726, 1
        %v2794 = vsel %vm1782, %v2792, %v2793
        %v2795 = vrot.slane %v1727, 1
        %v2796 = vsel %vm1782, %v2793, %v2795
        %v2797 = vrot.slane %v1725, 2
        %v2798 = vrot.slane %v1726, 2
        %v2799 = vsel %vm1863, %v2797, %v2798
        %v2800 = vrot.slane %v1727, 2
        %v2801 = vsel %vm1863, %v2798, %v2800
        %2802 = vrot.lane.b32.xlu0 %v2794, 4
        %v2803 = vpop.permute.xlu0 %2802
        %2804 = vrot.lane.b32.xlu0 %v2796, 4
        %v2805 = vpop.permute.xlu0 %2804
        %2808 = vrot.lane.b32.xlu0 %v2799, 8
        %v2809 = vpop.permute.xlu0 %2808
        %2810 = vrot.lane.b32.xlu0 %v2801, 8
        %v2811 = vpop.permute.xlu0 %2810
        %v2814 = vsel %vm299, %v1725, %v2803
        %v2815 = vsel %vm299, %v1726, %v2805
        %v2816 = vsel %vm361, %v2814, %v2809
        %v2817 = vsel %vm361, %v2815, %v2811
        %v2819 = vsel %vm2229, %v2816, 0
        %v2822 = vsel %vm2229, %v2817, 0
        %v2825 = vsel %vm2326, %v1733, 0
        %2827 = vmatprep.subr.mxu0 0.0
        %2828 = vmatpush1.msra.mxu0 0.0
        %2829 = vmatprep.subr.mxu0 0.0
        %2830 = vmatpush1.msra.mxu0 0.0
        %2831 = vmatprep.subr.mxu0 0.0
        %2832 = vmatpush1.msra.mxu0 0.0
        %2833 = vmatprep.subr.mxu0 0.0
        %2834 = vmatpush1.msra.mxu0 0.0
        %2835 = vmatprep.subr.mxu0 0.0
        %2836 = vmatpush1.msra.mxu0 0.0
        %2837 = vmatprep.subr.mxu0 0.0
        %2838 = vmatpush1.msra.mxu0 0.0
        %2839 = vmatprep.subr.mxu0 0.0
        %2840 = vmatpush1.msra.mxu0 0.0
        %2841 = vmatprep.subr.mxu0 0.0
        %2842 = vmatpush1.msra.mxu0 0.0
        %2843 = vmatprep.subr.mxu0 0.0
        %2844 = vmatpush1.msra.mxu0 0.0
        %2845 = vmatprep.subr.mxu0 0.0
        %2846 = vmatpush1.msra.mxu0 0.0
        %2847 = vmatprep.subr.mxu0 0.0
        %2848 = vmatpush1.msra.mxu0 0.0
        %2849 = vmatprep.subr.mxu0 0.0
        %2850 = vmatpush1.msra.mxu0 0.0
        %2851 = vmatprep.subr.mxu0 0.0
        %2852 = vmatpush1.msra.mxu0 0.0
        %2853 = vmatprep.subr.mxu0 0.0
        %2854 = vmatpush1.msra.mxu0 0.0
        %2855 = vmatprep.subr.mxu0 0.0
        %2856 = vmatpush1.msra.mxu0 %v2825
        %2857 = vmatprep.subr.mxu0 0.0
        %2858 = vmatpush1.msra.mxu0 %v1732
        %2859 = vmatprep.subr.mxu0 0.0
        %2860 = vmatpush2.msra.mxu0 0.0
        %2861 = vmatprep.subr.mxu0 0.0
        %2862 = vmatpush2.msra.mxu0 0.0
        %2863 = vmatprep.subr.mxu0 0.0
        %2864 = vmatpush2.msra.mxu0 0.0
        %2865 = vmatprep.subr.mxu0 0.0
        %2866 = vmatpush2.msra.mxu0 0.0
        %2867 = vmatprep.subr.mxu0 0.0
        %2868 = vmatpush2.msra.mxu0 0.0
        %2869 = vmatprep.subr.mxu0 0.0
        %2870 = vmatpush2.msra.mxu0 0.0
        %2871 = vmatprep.subr.mxu0 0.0
        %2872 = vmatpush2.msra.mxu0 0.0
        %2873 = vmatprep.subr.mxu0 0.0
        %2874 = vmatpush2.msra.mxu0 0.0
        %2875 = vmatprep.subr.mxu0 0.0
        %2876 = vmatpush2.msra.mxu0 0.0
        %2877 = vmatprep.subr.mxu0 0.0
        %2878 = vmatpush2.msra.mxu0 0.0
        %2879 = vmatprep.subr.mxu0 0.0
        %2880 = vmatpush2.msra.mxu0 0.0
        %2881 = vmatprep.subr.mxu0 0.0
        %2882 = vmatpush2.msra.mxu0 0.0
        %2883 = vmatprep.subr.mxu0 0.0
        %2884 = vmatpush2.msra.mxu0 0.0
        %2885 = vmatprep.subr.mxu0 0.0
        %2886 = vmatpush2.msra.mxu0 0.0
        %2887 = vmatprep.subr.mxu0 0.0
        %2888 = vmatpush2.msra.mxu0 0.0
        %2889 = vmatprep.subr.mxu0 0.0
        %2890 = vmatpush2.msra.mxu0 0.0
        %2891 = vmatprep.mubr.f32.mxu0 0.0
        %2892 = vmatmul.mubr.f32.gmra.mxu0 %v2237
        %v2893 = vpop.f32.mrf.mxu0
        %v2894 = vadd.f32 0.0, %v2893
        %v2895 = vpop.f32.mrf.mxu0
        %2896 = vmatprep.mubr.f32.mxu0 0.0
        %2897 = vmatmul.mubr.f32.gmra.mxu0 %v2240
        %v2898 = vpop.f32.mrf.mxu0
        %v2899 = vadd.f32 0.0, %v2898
        %v2900 = vpop.f32.mrf.mxu0
        %2901 = vmatprep.mubr.f32.mxu0 0.0
        %2902 = vmatmul.mubr.f32.gmra.mxu0 %v2243
        %v2903 = vpop.f32.mrf.mxu0
        %v2904 = vadd.f32 0.0, %v2903
        %v2905 = vpop.f32.mrf.mxu0
        %2906 = vmatprep.mubr.f32.mxu0 0.0
        %2907 = vmatmul.mubr.f32.gmra.mxu0 %v2246
        %v2908 = vpop.f32.mrf.mxu0
        %v2909 = vadd.f32 0.0, %v2908
        %v2910 = vpop.f32.mrf.mxu0
        %2911 = vmatprep.mubr.f32.mxu0 0.0
        %2912 = vmatmul.mubr.f32.gmra.mxu0 %v2249
        %v2913 = vpop.f32.mrf.mxu0
        %v2914 = vadd.f32 0.0, %v2913
        %v2915 = vpop.f32.mrf.mxu0
        %2916 = vmatprep.mubr.f32.mxu0 0.0
        %2917 = vmatmul.mubr.f32.gmra.mxu0 %v2252
        %v2918 = vpop.f32.mrf.mxu0
        %v2919 = vadd.f32 0.0, %v2918
        %v2920 = vpop.f32.mrf.mxu0
        %2921 = vmatprep.mubr.f32.mxu0 0.0
        %2922 = vmatmul.mubr.f32.gmra.mxu0 %v2255
        %v2923 = vpop.f32.mrf.mxu0
        %v2924 = vadd.f32 0.0, %v2923
        %v2925 = vpop.f32.mrf.mxu0
        %2926 = vmatprep.mubr.f32.mxu0 0.0
        %2927 = vmatmul.mubr.f32.gmra.mxu0 %v2258
        %v2928 = vpop.f32.mrf.mxu0
        %v2929 = vadd.f32 0.0, %v2928
        %v2930 = vpop.f32.mrf.mxu0
        %2931 = vmatprep.mubr.f32.mxu0 0.0
        %2932 = vmatmul.mubr.f32.gmra.mxu0 %v2261
        %v2933 = vpop.f32.mrf.mxu0
        %v2934 = vadd.f32 0.0, %v2933
        %v2935 = vpop.f32.mrf.mxu0
        %2936 = vmatprep.mubr.f32.mxu0 0.0
        %2937 = vmatmul.mubr.f32.gmra.mxu0 %v2264
        %v2938 = vpop.f32.mrf.mxu0
        %v2939 = vadd.f32 0.0, %v2938
        %v2940 = vpop.f32.mrf.mxu0
        %2941 = vmatprep.mubr.f32.mxu0 0.0
        %2942 = vmatmul.mubr.f32.gmra.mxu0 %v2267
        %v2943 = vpop.f32.mrf.mxu0
        %v2944 = vadd.f32 0.0, %v2943
        %v2945 = vpop.f32.mrf.mxu0
        %2946 = vmatprep.mubr.f32.mxu0 0.0
        %2947 = vmatmul.mubr.f32.gmra.mxu0 %v2270
        %v2948 = vpop.f32.mrf.mxu0
        %v2949 = vadd.f32 0.0, %v2948
        %v2950 = vpop.f32.mrf.mxu0
        %2951 = vmatprep.mubr.f32.mxu0 0.0
        %2952 = vmatmul.mubr.f32.gmra.mxu0 %v2273
        %v2953 = vpop.f32.mrf.mxu0
        %v2954 = vadd.f32 0.0, %v2953
        %v2955 = vpop.f32.mrf.mxu0
        %2956 = vmatprep.mubr.f32.mxu0 0.0
        %2957 = vmatmul.mubr.f32.gmra.mxu0 %v2276
        %v2958 = vpop.f32.mrf.mxu0
        %v2959 = vadd.f32 0.0, %v2958
        %v2960 = vpop.f32.mrf.mxu0
        %2961 = vmatprep.mubr.f32.mxu0 0.0
        %2962 = vmatmul.mubr.f32.gmra.mxu0 %v2279
        %v2963 = vpop.f32.mrf.mxu0
        %v2964 = vadd.f32 0.0, %v2963
        %v2965 = vpop.f32.mrf.mxu0
        %2966 = vmatprep.mubr.f32.mxu0 0.0
        %2967 = vmatmul.mubr.f32.gmra.mxu0 %v2282
        %v2968 = vpop.f32.mrf.mxu0
        %v2969 = vadd.f32 0.0, %v2968
        %v2970 = vpop.f32.mrf.mxu0
        %2971 = vmatprep.mubr.f32.mxu0 0.0
        %2972 = vmatmul.mubr.f32.gmra.mxu0 %v2285
        %v2973 = vpop.f32.mrf.mxu0
        %v2974 = vadd.f32 0.0, %v2973
        %v2975 = vpop.f32.mrf.mxu0
        %2976 = vmatprep.mubr.f32.mxu0 0.0
        %2977 = vmatmul.mubr.f32.gmra.mxu0 %v2288
        %v2978 = vpop.f32.mrf.mxu0
        %v2979 = vadd.f32 0.0, %v2978
        %v2980 = vpop.f32.mrf.mxu0
        %2981 = vmatprep.mubr.f32.mxu0 0.0
        %2982 = vmatmul.mubr.f32.gmra.mxu0 %v2291
        %v2983 = vpop.f32.mrf.mxu0
        %v2984 = vadd.f32 0.0, %v2983
        %v2985 = vpop.f32.mrf.mxu0
        %2986 = vmatprep.mubr.f32.mxu0 0.0
        %2987 = vmatmul.mubr.f32.gmra.mxu0 %v2294
        %v2988 = vpop.f32.mrf.mxu0
        %v2989 = vadd.f32 0.0, %v2988
        %v2990 = vpop.f32.mrf.mxu0
        %2991 = vmatprep.mubr.f32.mxu0 0.0
        %2992 = vmatmul.mubr.f32.gmra.mxu0 %v2297
        %v2993 = vpop.f32.mrf.mxu0
        %v2994 = vadd.f32 0.0, %v2993
        %v2995 = vpop.f32.mrf.mxu0
        %2996 = vmatprep.mubr.f32.mxu0 0.0
        %2997 = vmatmul.mubr.f32.gmra.mxu0 %v2300
        %v2998 = vpop.f32.mrf.mxu0
        %v2999 = vadd.f32 0.0, %v2998
        %v3000 = vpop.f32.mrf.mxu0
        %3001 = vmatprep.mubr.f32.mxu0 0.0
        %3002 = vmatmul.mubr.f32.gmra.mxu0 %v2303
        %v3003 = vpop.f32.mrf.mxu0
        %v3004 = vadd.f32 0.0, %v3003
        %v3005 = vpop.f32.mrf.mxu0
        %3006 = vmatprep.mubr.f32.mxu0 0.0
        %3007 = vmatmul.mubr.f32.gmra.mxu0 %v2306
        %v3008 = vpop.f32.mrf.mxu0
        %v3009 = vadd.f32 0.0, %v3008
        %v3010 = vpop.f32.mrf.mxu0
        %3011 = vmatprep.mubr.f32.mxu0 0.0
        %3012 = vmatmul.mubr.f32.gmra.mxu0 %v2309
        %v3013 = vpop.f32.mrf.mxu0
        %v3014 = vadd.f32 0.0, %v3013
        %v3015 = vpop.f32.mrf.mxu0
        %3016 = vmatprep.mubr.f32.mxu0 0.0
        %3017 = vmatmul.mubr.f32.gmra.mxu0 %v2312
        %v3018 = vpop.f32.mrf.mxu0
        %v3019 = vadd.f32 0.0, %v3018
        %v3020 = vpop.f32.mrf.mxu0
        %3021 = vmatprep.mubr.f32.mxu0 0.0
        %3022 = vmatmul.mubr.f32.gmra.mxu0 %v2315
        %v3023 = vpop.f32.mrf.mxu0
        %v3024 = vadd.f32 0.0, %v3023
        %v3025 = vpop.f32.mrf.mxu0
        %3026 = vmatprep.mubr.f32.mxu0 0.0
        %3027 = vmatmul.mubr.f32.gmra.mxu0 %v2318
        %v3028 = vpop.f32.mrf.mxu0
        %v3029 = vadd.f32 0.0, %v3028
        %v3030 = vpop.f32.mrf.mxu0
        %3031 = vmatprep.mubr.f32.mxu0 0.0
        %3032 = vmatmul.mubr.f32.gmra.mxu0 %v2321
        %v3033 = vpop.f32.mrf.mxu0
        %v3034 = vadd.f32 0.0, %v3033
        %v3035 = vpop.f32.mrf.mxu0
        %3036 = vmatprep.mubr.f32.mxu0 0.0
        %3037 = vmatmul.mubr.f32.gmra.mxu0 %v2324
        %v3038 = vpop.f32.mrf.mxu0
        %v3039 = vadd.f32 0.0, %v3038
        %v3040 = vpop.f32.mrf.mxu0
        %3041 = vmatprep.mubr.f32.mxu0 0.0
        %3042 = vmatmul.mubr.f32.gmra.mxu0 %v2819
        %v3043 = vpop.f32.mrf.mxu0
        %v3044 = vadd.f32 0.0, %v3043
        %v3045 = vpop.f32.mrf.mxu0
        %3046 = vmatprep.mubr.f32.mxu0 0.0
        %3047 = vmatmul.mubr.f32.gmra.mxu0 %v2822
        %v3048 = vpop.f32.mrf.mxu0
        %v3049 = vadd.f32 0.0, %v3048
        %v3050 = vpop.f32.mrf.mxu0
        %3051 = vdwg.mxu0
        %v3052 = vadd.f32 %v2631, %v2894
        %v3053 = vadd.f32 %v2636, %v2899
        %v3054 = vadd.f32 %v2641, %v2904
        %v3055 = vadd.f32 %v2646, %v2909
        %v3056 = vadd.f32 %v2651, %v2914
        %v3057 = vadd.f32 %v2656, %v2919
        %v3058 = vadd.f32 %v2661, %v2924
        %v3059 = vadd.f32 %v2666, %v2929
        %v3060 = vadd.f32 %v2671, %v2934
        %v3061 = vadd.f32 %v2676, %v2939
        %v3062 = vadd.f32 %v2681, %v2944
        %v3063 = vadd.f32 %v2686, %v2949
        %v3064 = vadd.f32 %v2691, %v2954
        %v3065 = vadd.f32 %v2696, %v2959
        %v3066 = vadd.f32 %v2701, %v2964
        %v3067 = vadd.f32 %v2706, %v2969
        %v3068 = vadd.f32 %v2711, %v2974
        %v3069 = vadd.f32 %v2716, %v2979
        %v3070 = vadd.f32 %v2721, %v2984
        %v3071 = vadd.f32 %v2726, %v2989
        %v3072 = vadd.f32 %v2731, %v2994
        %v3073 = vadd.f32 %v2736, %v2999
        %v3074 = vadd.f32 %v2741, %v3004
        %v3075 = vadd.f32 %v2746, %v3009
        %v3076 = vadd.f32 %v2751, %v3014
        %v3077 = vadd.f32 %v2756, %v3019
        %v3078 = vadd.f32 %v2761, %v3024
        %v3079 = vadd.f32 %v2766, %v3029
        %v3080 = vadd.f32 %v2771, %v3034
        %v3081 = vadd.f32 %v2776, %v3039
        %v3082 = vadd.f32 %v2781, %v3044
        %v3083 = vadd.f32 %v2786, %v3049
        %v3084 = vld [vmem:[%s4] sm:$0x1]
        %v3086 = vlaneseq
        %v3087 = vshrl.u32 %v3086, 7
        %v3088 = vsub.s32 0, %v3087
        %v3089 = vrot.slane %v3084, %v3088
        %v3091 = vadd.f32 %v3052, %v3089
        %v3092 = vadd.f32 %v3053, %v3089
        %v3093 = vadd.f32 %v3054, %v3089
        %v3094 = vadd.f32 %v3055, %v3089
        %v3095 = vadd.f32 %v3056, %v3089
        %v3096 = vadd.f32 %v3057, %v3089
        %v3097 = vadd.f32 %v3058, %v3089
        %v3098 = vadd.f32 %v3059, %v3089
        %v3099 = vadd.f32 %v3060, %v3089
        %v3100 = vadd.f32 %v3061, %v3089
        %v3101 = vadd.f32 %v3062, %v3089
        %v3102 = vadd.f32 %v3063, %v3089
        %v3103 = vadd.f32 %v3064, %v3089
        %v3104 = vadd.f32 %v3065, %v3089
        %v3105 = vadd.f32 %v3066, %v3089
        %v3106 = vadd.f32 %v3067, %v3089
        %v3107 = vadd.f32 %v3068, %v3089
        %v3108 = vadd.f32 %v3069, %v3089
        %v3109 = vadd.f32 %v3070, %v3089
        %v3110 = vadd.f32 %v3071, %v3089
        %v3111 = vadd.f32 %v3072, %v3089
        %v3112 = vadd.f32 %v3073, %v3089
        %v3113 = vadd.f32 %v3074, %v3089
        %v3114 = vadd.f32 %v3075, %v3089
        %v3115 = vadd.f32 %v3076, %v3089
        %v3116 = vadd.f32 %v3077, %v3089
        %v3117 = vadd.f32 %v3078, %v3089
        %v3118 = vadd.f32 %v3079, %v3089
        %v3119 = vadd.f32 %v3080, %v3089
        %v3120 = vadd.f32 %v3081, %v3089
        %v3121 = vadd.f32 %v3082, %v3089
        %v3122 = vadd.f32 %v3083, %v3089
        %v3123 = vmax.f32 %v3091, 0.0
        %v3124 = vmax.f32 %v3092, 0.0
        %v3125 = vmax.f32 %v3093, 0.0
        %v3126 = vmax.f32 %v3094, 0.0
        %v3127 = vmax.f32 %v3095, 0.0
        %v3128 = vmax.f32 %v3096, 0.0
        %v3129 = vmax.f32 %v3097, 0.0
        %v3130 = vmax.f32 %v3098, 0.0
        %v3131 = vmax.f32 %v3099, 0.0
        %v3132 = vmax.f32 %v3100, 0.0
        %v3133 = vmax.f32 %v3101, 0.0
        %v3134 = vmax.f32 %v3102, 0.0
        %v3135 = vmax.f32 %v3103, 0.0
        %v3136 = vmax.f32 %v3104, 0.0
        %v3137 = vmax.f32 %v3105, 0.0
        %v3138 = vmax.f32 %v3106, 0.0
        %v3139 = vmax.f32 %v3107, 0.0
        %v3140 = vmax.f32 %v3108, 0.0
        %v3141 = vmax.f32 %v3109, 0.0
        %v3142 = vmax.f32 %v3110, 0.0
        %v3143 = vmax.f32 %v3111, 0.0
        %v3144 = vmax.f32 %v3112, 0.0
        %v3145 = vmax.f32 %v3113, 0.0
        %v3146 = vmax.f32 %v3114, 0.0
        %v3147 = vmax.f32 %v3115, 0.0
        %v3148 = vmax.f32 %v3116, 0.0
        %v3149 = vmax.f32 %v3117, 0.0
        %v3150 = vmax.f32 %v3118, 0.0
        %v3151 = vmax.f32 %v3119, 0.0
        %v3152 = vmax.f32 %v3120, 0.0
        %v3153 = vmax.f32 %v3121, 0.0
        %v3154 = vmax.f32 %v3122, 0.0
        %3155 = vst.msk [vmem:[%s1640 + $0x1] sm:$0xff] %vm299, %v3123
        %3156 = vst.msk [vmem:[%s1640 + $0x9] sm:$0xff] %vm299, %v3124
        %3157 = vst.msk [vmem:[%s1640 + $0x31] sm:$0xff] %vm299, %v3127
        %3158 = vst.msk [vmem:[%s1640 + $0x39] sm:$0xff] %vm299, %v3128
        %3159 = vst.msk [vmem:[%s1640 + $0x61] sm:$0xff] %vm299, %v3131
        %3160 = vst.msk [vmem:[%s1640 + $0x69] sm:$0xff] %vm299, %v3132
        %3161 = vst.msk [vmem:[%s1640 + $0x91] sm:$0xff] %vm299, %v3135
        %3162 = vst.msk [vmem:[%s1640 + $0x99] sm:$0xff] %vm299, %v3136
        %3163 = vst.msk [vmem:[%s1640 + $0xc1] sm:$0xff] %vm299, %v3139
        %3164 = vst.msk [vmem:[%s1640 + $0xc9] sm:$0xff] %vm299, %v3140
        %3165 = vst.msk [vmem:[%s1640 + $0xf1] sm:$0xff] %vm299, %v3143
        %3166 = vst.msk [vmem:[%s1640 + $0xf9] sm:$0xff] %vm299, %v3144
        %3167 = vst.msk [vmem:[%s1640 + $0x121] sm:$0xff] %vm299, %v3147
        %3168 = vst.msk [vmem:[%s1640 + $0x129] sm:$0xff] %vm299, %v3148
        %3169 = vst.msk [vmem:[%s1640 + $0x151] sm:$0xff] %vm299, %v3151
        %3170 = vst.msk [vmem:[%s1640 + $0x159] sm:$0xff] %vm299, %v3152
        %3171 = vst.msk [vmem:[%s1657 + $0x1] sm:$0xff] %vm299, %v3125
        %3172 = vst.msk [vmem:[%s1657 + $0x9] sm:$0xff] %vm299, %v3126
        %3173 = vst.msk [vmem:[%s1657 + $0x31] sm:$0xff] %vm299, %v3129
        %3174 = vst.msk [vmem:[%s1657 + $0x39] sm:$0xff] %vm299, %v3130
        %3175 = vst.msk [vmem:[%s1657 + $0x61] sm:$0xff] %vm299, %v3133
        %3176 = vst.msk [vmem:[%s1657 + $0x69] sm:$0xff] %vm299, %v3134
        %3177 = vst.msk [vmem:[%s1657 + $0x91] sm:$0xff] %vm299, %v3137
        %3178 = vst.msk [vmem:[%s1657 + $0x99] sm:$0xff] %vm299, %v3138
        %3179 = vst.msk [vmem:[%s1657 + $0xc1] sm:$0xff] %vm299, %v3141
        %3180 = vst.msk [vmem:[%s1657 + $0xc9] sm:$0xff] %vm299, %v3142
        %3181 = vst.msk [vmem:[%s1657 + $0xf1] sm:$0xff] %vm299, %v3145
        %3182 = vst.msk [vmem:[%s1657 + $0xf9] sm:$0xff] %vm299, %v3146
        %3183 = vst.msk [vmem:[%s1657 + $0x121] sm:$0xff] %vm299, %v3149
        %3184 = vst.msk [vmem:[%s1657 + $0x129] sm:$0xff] %vm299, %v3150
        %3185 = vst.msk [vmem:[%s1657 + $0x151] sm:$0xff] %vm299, %v3153
        %3186 = vst.msk [vmem:[%s1657 + $0x159] sm:$0xff] %vm299, %v3154
        %v3187 = vld [vmem:[#allocation2] sm:$0xff]
        %v3188 = vld [vmem:[#allocation2 + $0x8] sm:$0xff]
        %v3189 = vld [vmem:[#allocation2 + $0x10] sm:$0x3]
        %v3190 = vld [vmem:[#allocation2 + $0x18] sm:$0xff]
        %v3191 = vld [vmem:[#allocation2 + $0x20] sm:$0xff]
        %v3192 = vld [vmem:[#allocation2 + $0x28] sm:$0x3]
        %v3193 = vld [vmem:[#allocation2 + $0x30] sm:$0xff]
        %v3194 = vld [vmem:[#allocation2 + $0x38] sm:$0xff]
        %v3195 = vld [vmem:[#allocation2 + $0x40] sm:$0x3]
        %v3196 = vld [vmem:[#allocation2 + $0x48] sm:$0xff]
        %v3197 = vld [vmem:[#allocation2 + $0x50] sm:$0xff]
        %v3198 = vld [vmem:[#allocation2 + $0x58] sm:$0x3]
        %v3199 = vld [vmem:[#allocation2 + $0x60] sm:$0xff]
        %v3200 = vld [vmem:[#allocation2 + $0x68] sm:$0xff]
        %v3201 = vld [vmem:[#allocation2 + $0x70] sm:$0x3]
        %v3202 = vld [vmem:[#allocation2 + $0x78] sm:$0xff]
        %v3203 = vld [vmem:[#allocation2 + $0x80] sm:$0xff]
        %v3204 = vld [vmem:[#allocation2 + $0x88] sm:$0x3]
        %v3205 = vld [vmem:[#allocation2 + $0x90] sm:$0xff]
        %v3206 = vld [vmem:[#allocation2 + $0x98] sm:$0xff]
        %v3207 = vld [vmem:[#allocation2 + $0xa0] sm:$0x3]
        %v3208 = vld [vmem:[#allocation2 + $0xa8] sm:$0xff]
        %v3209 = vld [vmem:[#allocation2 + $0xb0] sm:$0xff]
        %v3210 = vld [vmem:[#allocation2 + $0xb8] sm:$0x3]
        %v3211 = vld [vmem:[#allocation2 + $0xc0] sm:$0xff]
        %v3212 = vld [vmem:[#allocation2 + $0xc8] sm:$0xff]
        %v3213 = vld [vmem:[#allocation2 + $0xd0] sm:$0x3]
        %v3214 = vld [vmem:[#allocation2 + $0xd8] sm:$0xff]
        %v3215 = vld [vmem:[#allocation2 + $0xe0] sm:$0xff]
        %v3216 = vld [vmem:[#allocation2 + $0xe8] sm:$0x3]
        %v3217 = vld [vmem:[#allocation2 + $0xf0] sm:$0xff]
        %v3218 = vld [vmem:[#allocation2 + $0xf8] sm:$0xff]
        %v3219 = vld [vmem:[#allocation2 + $0x100] sm:$0x3]
        %v3220 = vld [vmem:[#allocation2 + $0x108] sm:$0xff]
        %v3221 = vld [vmem:[#allocation2 + $0x110] sm:$0xff]
        %v3222 = vld [vmem:[#allocation2 + $0x118] sm:$0x3]
        %v3223 = vld [vmem:[#allocation2 + $0x120] sm:$0xff]
        %v3224 = vld [vmem:[#allocation2 + $0x128] sm:$0xff]
        %v3225 = vld [vmem:[#allocation2 + $0x130] sm:$0x3]
        %v3226 = vld [vmem:[#allocation2 + $0x138] sm:$0xff]
        %v3227 = vld [vmem:[#allocation2 + $0x140] sm:$0xff]
        %v3228 = vld [vmem:[#allocation2 + $0x148] sm:$0x3]
        %v3229 = vld [vmem:[#allocation2 + $0x150] sm:$0xff]
        %v3230 = vld [vmem:[#allocation2 + $0x158] sm:$0xff]
        %v3231 = vld [vmem:[#allocation2 + $0x160] sm:$0x3]
        %v3232 = vld [vmem:[#allocation2 + $0x168] sm:$0xff]
        %v3233 = vld [vmem:[#allocation2 + $0x170] sm:$0xff]
        %v3234 = vld [vmem:[#allocation2 + $0x178] sm:$0x3]
        %v3235 = vld [vmem:[#allocation2 + $0x180] sm:$0xff]
        %v3236 = vld [vmem:[#allocation2 + $0x188] sm:$0xff]
        %v3237 = vld [vmem:[#allocation2 + $0x190] sm:$0x3]
        %v3238 = vld [vmem:[#allocation2 + $0x198] sm:$0xff]
        %v3239 = vld [vmem:[#allocation2 + $0x1a0] sm:$0xff]
        %v3240 = vld [vmem:[#allocation2 + $0x1a8] sm:$0x3]
        %v3241 = vld [vmem:[%s5] sm:$0xff]
        %v3242 = vld [vmem:[%s5 + $0x8] sm:$0xf]
        %v3243 = vld [vmem:[%s5 + $0x10] sm:$0xff]
        %v3244 = vld [vmem:[%s5 + $0x18] sm:$0xf]
        %v3245 = vld [vmem:[%s5 + $0x20] sm:$0xff]
        %v3246 = vld [vmem:[%s5 + $0x28] sm:$0xf]
        %v3295 = vrot.slane %v3187, 1
        %v3296 = vrot.slane %v3188, 1
        %v3297 = vsel %vm1782, %v3295, %v3296
        %v3298 = vrot.slane %v3189, 1
        %v3299 = vsel %vm1782, %v3296, %v3298
        %v3300 = vrot.slane %v3190, 1
        %v3301 = vrot.slane %v3191, 1
        %v3302 = vsel %vm1782, %v3300, %v3301
        %v3303 = vrot.slane %v3192, 1
        %v3304 = vsel %vm1782, %v3301, %v3303
        %v3305 = vrot.slane %v3193, 1
        %v3306 = vrot.slane %v3194, 1
        %v3307 = vsel %vm1782, %v3305, %v3306
        %v3308 = vrot.slane %v3195, 1
        %v3309 = vsel %vm1782, %v3306, %v3308
        %v3310 = vrot.slane %v3196, 1
        %v3311 = vrot.slane %v3197, 1
        %v3312 = vsel %vm1782, %v3310, %v3311
        %v3313 = vrot.slane %v3198, 1
        %v3314 = vsel %vm1782, %v3311, %v3313
        %v3315 = vrot.slane %v3199, 1
        %v3316 = vrot.slane %v3200, 1
        %v3317 = vsel %vm1782, %v3315, %v3316
        %v3318 = vrot.slane %v3201, 1
        %v3319 = vsel %vm1782, %v3316, %v3318
        %v3320 = vrot.slane %v3202, 1
        %v3321 = vrot.slane %v3203, 1
        %v3322 = vsel %vm1782, %v3320, %v3321
        %v3323 = vrot.slane %v3204, 1
        %v3324 = vsel %vm1782, %v3321, %v3323
        %v3325 = vrot.slane %v3205, 1
        %v3326 = vrot.slane %v3206, 1
        %v3327 = vsel %vm1782, %v3325, %v3326
        %v3328 = vrot.slane %v3207, 1
        %v3329 = vsel %vm1782, %v3326, %v3328
        %v3330 = vrot.slane %v3208, 1
        %v3331 = vrot.slane %v3209, 1
        %v3332 = vsel %vm1782, %v3330, %v3331
        %v3333 = vrot.slane %v3210, 1
        %v3334 = vsel %vm1782, %v3331, %v3333
        %v3335 = vrot.slane %v3211, 1
        %v3336 = vrot.slane %v3212, 1
        %v3337 = vsel %vm1782, %v3335, %v3336
        %v3338 = vrot.slane %v3213, 1
        %v3339 = vsel %vm1782, %v3336, %v3338
        %v3340 = vrot.slane %v3214, 1
        %v3341 = vrot.slane %v3215, 1
        %v3342 = vsel %vm1782, %v3340, %v3341
        %v3343 = vrot.slane %v3216, 1
        %v3344 = vsel %vm1782, %v3341, %v3343
        %v3345 = vrot.slane %v3217, 1
        %v3346 = vrot.slane %v3218, 1
        %v3347 = vsel %vm1782, %v3345, %v3346
        %v3348 = vrot.slane %v3219, 1
        %v3349 = vsel %vm1782, %v3346, %v3348
        %v3350 = vrot.slane %v3220, 1
        %v3351 = vrot.slane %v3221, 1
        %v3352 = vsel %vm1782, %v3350, %v3351
        %v3353 = vrot.slane %v3222, 1
        %v3354 = vsel %vm1782, %v3351, %v3353
        %v3355 = vrot.slane %v3223, 1
        %v3356 = vrot.slane %v3224, 1
        %v3357 = vsel %vm1782, %v3355, %v3356
        %v3358 = vrot.slane %v3225, 1
        %v3359 = vsel %vm1782, %v3356, %v3358
        %v3360 = vrot.slane %v3226, 1
        %v3361 = vrot.slane %v3227, 1
        %v3362 = vsel %vm1782, %v3360, %v3361
        %v3363 = vrot.slane %v3228, 1
        %v3364 = vsel %vm1782, %v3361, %v3363
        %v3365 = vrot.slane %v3229, 1
        %v3366 = vrot.slane %v3230, 1
        %v3367 = vsel %vm1782, %v3365, %v3366
        %v3368 = vrot.slane %v3231, 1
        %v3369 = vsel %vm1782, %v3366, %v3368
        %v3370 = vrot.slane %v3232, 1
        %v3371 = vrot.slane %v3233, 1
        %v3372 = vsel %vm1782, %v3370, %v3371
        %v3373 = vrot.slane %v3234, 1
        %v3374 = vsel %vm1782, %v3371, %v3373
        %v3375 = vrot.slane %v3187, 2
        %v3376 = vrot.slane %v3188, 2
        %v3377 = vsel %vm1863, %v3375, %v3376
        %v3378 = vrot.slane %v3189, 2
        %v3379 = vsel %vm1863, %v3376, %v3378
        %v3380 = vrot.slane %v3190, 2
        %v3381 = vrot.slane %v3191, 2
        %v3382 = vsel %vm1863, %v3380, %v3381
        %v3383 = vrot.slane %v3192, 2
        %v3384 = vsel %vm1863, %v3381, %v3383
        %v3385 = vrot.slane %v3193, 2
        %v3386 = vrot.slane %v3194, 2
        %v3387 = vsel %vm1863, %v3385, %v3386
        %v3388 = vrot.slane %v3195, 2
        %v3389 = vsel %vm1863, %v3386, %v3388
        %v3390 = vrot.slane %v3196, 2
        %v3391 = vrot.slane %v3197, 2
        %v3392 = vsel %vm1863, %v3390, %v3391
        %v3393 = vrot.slane %v3198, 2
        %v3394 = vsel %vm1863, %v3391, %v3393
        %v3395 = vrot.slane %v3199, 2
        %v3396 = vrot.slane %v3200, 2
        %v3397 = vsel %vm1863, %v3395, %v3396
        %v3398 = vrot.slane %v3201, 2
        %v3399 = vsel %vm1863, %v3396, %v3398
        %v3400 = vrot.slane %v3202, 2
        %v3401 = vrot.slane %v3203, 2
        %v3402 = vsel %vm1863, %v3400, %v3401
        %v3403 = vrot.slane %v3204, 2
        %v3404 = vsel %vm1863, %v3401, %v3403
        %v3405 = vrot.slane %v3205, 2
        %v3406 = vrot.slane %v3206, 2
        %v3407 = vsel %vm1863, %v3405, %v3406
        %v3408 = vrot.slane %v3207, 2
        %v3409 = vsel %vm1863, %v3406, %v3408
        %v3410 = vrot.slane %v3208, 2
        %v3411 = vrot.slane %v3209, 2
        %v3412 = vsel %vm1863, %v3410, %v3411
        %v3413 = vrot.slane %v3210, 2
        %v3414 = vsel %vm1863, %v3411, %v3413
        %v3415 = vrot.slane %v3211, 2
        %v3416 = vrot.slane %v3212, 2
        %v3417 = vsel %vm1863, %v3415, %v3416
        %v3418 = vrot.slane %v3213, 2
        %v3419 = vsel %vm1863, %v3416, %v3418
        %v3420 = vrot.slane %v3214, 2
        %v3421 = vrot.slane %v3215, 2
        %v3422 = vsel %vm1863, %v3420, %v3421
        %v3423 = vrot.slane %v3216, 2
        %v3424 = vsel %vm1863, %v3421, %v3423
        %v3425 = vrot.slane %v3217, 2
        %v3426 = vrot.slane %v3218, 2
        %v3427 = vsel %vm1863, %v3425, %v3426
        %v3428 = vrot.slane %v3219, 2
        %v3429 = vsel %vm1863, %v3426, %v3428
        %v3430 = vrot.slane %v3220, 2
        %v3431 = vrot.slane %v3221, 2
        %v3432 = vsel %vm1863, %v3430, %v3431
        %v3433 = vrot.slane %v3222, 2
        %v3434 = vsel %vm1863, %v3431, %v3433
        %v3435 = vrot.slane %v3223, 2
        %v3436 = vrot.slane %v3224, 2
        %v3437 = vsel %vm1863, %v3435, %v3436
        %v3438 = vrot.slane %v3225, 2
        %v3439 = vsel %vm1863, %v3436, %v3438
        %v3440 = vrot.slane %v3226, 2
        %v3441 = vrot.slane %v3227, 2
        %v3442 = vsel %vm1863, %v3440, %v3441
        %v3443 = vrot.slane %v3228, 2
        %v3444 = vsel %vm1863, %v3441, %v3443
        %v3445 = vrot.slane %v3229, 2
        %v3446 = vrot.slane %v3230, 2
        %v3447 = vsel %vm1863, %v3445, %v3446
        %v3448 = vrot.slane %v3231, 2
        %v3449 = vsel %vm1863, %v3446, %v3448
        %v3450 = vrot.slane %v3232, 2
        %v3451 = vrot.slane %v3233, 2
        %v3452 = vsel %vm1863, %v3450, %v3451
        %v3453 = vrot.slane %v3234, 2
        %v3454 = vsel %vm1863, %v3451, %v3453
        %3455 = vrot.lane.b32.xlu0 %v3297, 4
        %v3456 = vpop.permute.xlu0 %3455
        %3457 = vrot.lane.b32.xlu0 %v3299, 4
        %v3458 = vpop.permute.xlu0 %3457
        %3459 = vrot.lane.b32.xlu0 %v3302, 4
        %v3460 = vpop.permute.xlu0 %3459
        %3461 = vrot.lane.b32.xlu0 %v3304, 4
        %v3462 = vpop.permute.xlu0 %3461
        %3463 = vrot.lane.b32.xlu0 %v3307, 4
        %v3464 = vpop.permute.xlu0 %3463
        %3465 = vrot.lane.b32.xlu0 %v3309, 4
        %v3466 = vpop.permute.xlu0 %3465
        %3467 = vrot.lane.b32.xlu0 %v3312, 4
        %v3468 = vpop.permute.xlu0 %3467
        %3469 = vrot.lane.b32.xlu0 %v3314, 4
        %v3470 = vpop.permute.xlu0 %3469
        %3471 = vrot.lane.b32.xlu0 %v3317, 4
        %v3472 = vpop.permute.xlu0 %3471
        %3473 = vrot.lane.b32.xlu0 %v3319, 4
        %v3474 = vpop.permute.xlu0 %3473
        %3475 = vrot.lane.b32.xlu0 %v3322, 4
        %v3476 = vpop.permute.xlu0 %3475
        %3477 = vrot.lane.b32.xlu0 %v3324, 4
        %v3478 = vpop.permute.xlu0 %3477
        %3479 = vrot.lane.b32.xlu0 %v3327, 4
        %v3480 = vpop.permute.xlu0 %3479
        %3481 = vrot.lane.b32.xlu0 %v3329, 4
        %v3482 = vpop.permute.xlu0 %3481
        %3483 = vrot.lane.b32.xlu0 %v3332, 4
        %v3484 = vpop.permute.xlu0 %3483
        %3485 = vrot.lane.b32.xlu0 %v3334, 4
        %v3486 = vpop.permute.xlu0 %3485
        %3487 = vrot.lane.b32.xlu0 %v3337, 4
        %v3488 = vpop.permute.xlu0 %3487
        %3489 = vrot.lane.b32.xlu0 %v3339, 4
        %v3490 = vpop.permute.xlu0 %3489
        %3491 = vrot.lane.b32.xlu0 %v3342, 4
        %v3492 = vpop.permute.xlu0 %3491
        %3493 = vrot.lane.b32.xlu0 %v3344, 4
        %v3494 = vpop.permute.xlu0 %3493
        %3495 = vrot.lane.b32.xlu0 %v3347, 4
        %v3496 = vpop.permute.xlu0 %3495
        %3497 = vrot.lane.b32.xlu0 %v3349, 4
        %v3498 = vpop.permute.xlu0 %3497
        %3499 = vrot.lane.b32.xlu0 %v3352, 4
        %v3500 = vpop.permute.xlu0 %3499
        %3501 = vrot.lane.b32.xlu0 %v3354, 4
        %v3502 = vpop.permute.xlu0 %3501
        %3503 = vrot.lane.b32.xlu0 %v3357, 4
        %v3504 = vpop.permute.xlu0 %3503
        %3505 = vrot.lane.b32.xlu0 %v3359, 4
        %v3506 = vpop.permute.xlu0 %3505
        %3507 = vrot.lane.b32.xlu0 %v3362, 4
        %v3508 = vpop.permute.xlu0 %3507
        %3509 = vrot.lane.b32.xlu0 %v3364, 4
        %v3510 = vpop.permute.xlu0 %3509
        %3511 = vrot.lane.b32.xlu0 %v3367, 4
        %v3512 = vpop.permute.xlu0 %3511
        %3513 = vrot.lane.b32.xlu0 %v3369, 4
        %v3514 = vpop.permute.xlu0 %3513
        %3515 = vrot.lane.b32.xlu0 %v3372, 4
        %v3516 = vpop.permute.xlu0 %3515
        %3517 = vrot.lane.b32.xlu0 %v3374, 4
        %v3518 = vpop.permute.xlu0 %3517
        %3551 = vrot.lane.b32.xlu0 %v3377, 8
        %v3552 = vpop.permute.xlu0 %3551
        %3553 = vrot.lane.b32.xlu0 %v3379, 8
        %v3554 = vpop.permute.xlu0 %3553
        %3555 = vrot.lane.b32.xlu0 %v3382, 8
        %v3556 = vpop.permute.xlu0 %3555
        %3557 = vrot.lane.b32.xlu0 %v3384, 8
        %v3558 = vpop.permute.xlu0 %3557
        %3559 = vrot.lane.b32.xlu0 %v3387, 8
        %v3560 = vpop.permute.xlu0 %3559
        %3561 = vrot.lane.b32.xlu0 %v3389, 8
        %v3562 = vpop.permute.xlu0 %3561
        %3563 = vrot.lane.b32.xlu0 %v3392, 8
        %v3564 = vpop.permute.xlu0 %3563
        %3565 = vrot.lane.b32.xlu0 %v3394, 8
        %v3566 = vpop.permute.xlu0 %3565
        %3567 = vrot.lane.b32.xlu0 %v3397, 8
        %v3568 = vpop.permute.xlu0 %3567
        %3569 = vrot.lane.b32.xlu0 %v3399, 8
        %v3570 = vpop.permute.xlu0 %3569
        %3571 = vrot.lane.b32.xlu0 %v3402, 8
        %v3572 = vpop.permute.xlu0 %3571
        %3573 = vrot.lane.b32.xlu0 %v3404, 8
        %v3574 = vpop.permute.xlu0 %3573
        %3575 = vrot.lane.b32.xlu0 %v3407, 8
        %v3576 = vpop.permute.xlu0 %3575
        %3577 = vrot.lane.b32.xlu0 %v3409, 8
        %v3578 = vpop.permute.xlu0 %3577
        %3579 = vrot.lane.b32.xlu0 %v3412, 8
        %v3580 = vpop.permute.xlu0 %3579
        %3581 = vrot.lane.b32.xlu0 %v3414, 8
        %v3582 = vpop.permute.xlu0 %3581
        %3583 = vrot.lane.b32.xlu0 %v3417, 8
        %v3584 = vpop.permute.xlu0 %3583
        %3585 = vrot.lane.b32.xlu0 %v3419, 8
        %v3586 = vpop.permute.xlu0 %3585
        %3587 = vrot.lane.b32.xlu0 %v3422, 8
        %v3588 = vpop.permute.xlu0 %3587
        %3589 = vrot.lane.b32.xlu0 %v3424, 8
        %v3590 = vpop.permute.xlu0 %3589
        %3591 = vrot.lane.b32.xlu0 %v3427, 8
        %v3592 = vpop.permute.xlu0 %3591
        %3593 = vrot.lane.b32.xlu0 %v3429, 8
        %v3594 = vpop.permute.xlu0 %3593
        %3595 = vrot.lane.b32.xlu0 %v3432, 8
        %v3596 = vpop.permute.xlu0 %3595
        %3597 = vrot.lane.b32.xlu0 %v3434, 8
        %v3598 = vpop.permute.xlu0 %3597
        %3599 = vrot.lane.b32.xlu0 %v3437, 8
        %v3600 = vpop.permute.xlu0 %3599
        %3601 = vrot.lane.b32.xlu0 %v3439, 8
        %v3602 = vpop.permute.xlu0 %3601
        %3603 = vrot.lane.b32.xlu0 %v3442, 8
        %v3604 = vpop.permute.xlu0 %3603
        %3605 = vrot.lane.b32.xlu0 %v3444, 8
        %v3606 = vpop.permute.xlu0 %3605
        %3607 = vrot.lane.b32.xlu0 %v3447, 8
        %v3608 = vpop.permute.xlu0 %3607
        %3609 = vrot.lane.b32.xlu0 %v3449, 8
        %v3610 = vpop.permute.xlu0 %3609
        %3611 = vrot.lane.b32.xlu0 %v3452, 8
        %v3612 = vpop.permute.xlu0 %3611
        %3613 = vrot.lane.b32.xlu0 %v3454, 8
        %v3614 = vpop.permute.xlu0 %3613
        %v3647 = vsel %vm299, %v3187, %v3456
        %v3648 = vsel %vm299, %v3188, %v3458
        %v3649 = vsel %vm299, %v3190, %v3460
        %v3650 = vsel %vm299, %v3191, %v3462
        %v3651 = vsel %vm299, %v3193, %v3464
        %v3652 = vsel %vm299, %v3194, %v3466
        %v3653 = vsel %vm299, %v3196, %v3468
        %v3654 = vsel %vm299, %v3197, %v3470
        %v3655 = vsel %vm299, %v3199, %v3472
        %v3656 = vsel %vm299, %v3200, %v3474
        %v3657 = vsel %vm299, %v3202, %v3476
        %v3658 = vsel %vm299, %v3203, %v3478
        %v3659 = vsel %vm299, %v3205, %v3480
        %v3660 = vsel %vm299, %v3206, %v3482
        %v3661 = vsel %vm299, %v3208, %v3484
        %v3662 = vsel %vm299, %v3209, %v3486
        %v3663 = vsel %vm299, %v3211, %v3488
        %v3664 = vsel %vm299, %v3212, %v3490
        %v3665 = vsel %vm299, %v3214, %v3492
        %v3666 = vsel %vm299, %v3215, %v3494
        %v3667 = vsel %vm299, %v3217, %v3496
        %v3668 = vsel %vm299, %v3218, %v3498
        %v3669 = vsel %vm299, %v3220, %v3500
        %v3670 = vsel %vm299, %v3221, %v3502
        %v3671 = vsel %vm299, %v3223, %v3504
        %v3672 = vsel %vm299, %v3224, %v3506
        %v3673 = vsel %vm299, %v3226, %v3508
        %v3674 = vsel %vm299, %v3227, %v3510
        %v3675 = vsel %vm299, %v3229, %v3512
        %v3676 = vsel %vm299, %v3230, %v3514
        %v3677 = vsel %vm299, %v3232, %v3516
        %v3678 = vsel %vm299, %v3233, %v3518
        %v3679 = vsel %vm361, %v3647, %v3552
        %v3680 = vsel %vm361, %v3648, %v3554
        %v3681 = vsel %vm361, %v3649, %v3556
        %v3682 = vsel %vm361, %v3650, %v3558
        %v3683 = vsel %vm361, %v3651, %v3560
        %v3684 = vsel %vm361, %v3652, %v3562
        %v3685 = vsel %vm361, %v3653, %v3564
        %v3686 = vsel %vm361, %v3654, %v3566
        %v3687 = vsel %vm361, %v3655, %v3568
        %v3688 = vsel %vm361, %v3656, %v3570
        %v3689 = vsel %vm361, %v3657, %v3572
        %v3690 = vsel %vm361, %v3658, %v3574
        %v3691 = vsel %vm361, %v3659, %v3576
        %v3692 = vsel %vm361, %v3660, %v3578
        %v3693 = vsel %vm361, %v3661, %v3580
        %v3694 = vsel %vm361, %v3662, %v3582
        %v3695 = vsel %vm361, %v3663, %v3584
        %v3696 = vsel %vm361, %v3664, %v3586
        %v3697 = vsel %vm361, %v3665, %v3588
        %v3698 = vsel %vm361, %v3666, %v3590
        %v3699 = vsel %vm361, %v3667, %v3592
        %v3700 = vsel %vm361, %v3668, %v3594
        %v3701 = vsel %vm361, %v3669, %v3596
        %v3702 = vsel %vm361, %v3670, %v3598
        %v3703 = vsel %vm361, %v3671, %v3600
        %v3704 = vsel %vm361, %v3672, %v3602
        %v3705 = vsel %vm361, %v3673, %v3604
        %v3706 = vsel %vm361, %v3674, %v3606
        %v3707 = vsel %vm361, %v3675, %v3608
        %v3708 = vsel %vm361, %v3676, %v3610
        %v3709 = vsel %vm361, %v3677, %v3612
        %v3710 = vsel %vm361, %v3678, %v3614
        %v3714 = vrot.slane %v3235, 1
        %v3715 = vrot.slane %v3236, 1
        %v3716 = vsel %vm1782, %v3714, %v3715
        %v3717 = vrot.slane %v3237, 1
        %v3718 = vsel %vm1782, %v3715, %v3717
        %v3719 = vrot.slane %v3235, 2
        %v3720 = vrot.slane %v3236, 2
        %v3721 = vsel %vm1863, %v3719, %v3720
        %v3722 = vrot.slane %v3237, 2
        %v3723 = vsel %vm1863, %v3720, %v3722
        %3724 = vrot.lane.b32.xlu0 %v3716, 4
        %v3725 = vpop.permute.xlu0 %3724
        %3726 = vrot.lane.b32.xlu0 %v3718, 4
        %v3727 = vpop.permute.xlu0 %3726
        %3730 = vrot.lane.b32.xlu0 %v3721, 8
        %v3731 = vpop.permute.xlu0 %3730
        %3732 = vrot.lane.b32.xlu0 %v3723, 8
        %v3733 = vpop.permute.xlu0 %3732
        %v3736 = vsel %vm299, %v3235, %v3725
        %v3737 = vsel %vm299, %v3236, %v3727
        %v3738 = vsel %vm361, %v3736, %v3731
        %v3739 = vsel %vm361, %v3737, %v3733
        %v3741 = vsel %vm2229, %v3681, 0
        %v3744 = vsel %vm2229, %v3682, 0
        %v3747 = vsel %vm2229, %v3683, 0
        %v3750 = vsel %vm2229, %v3684, 0
        %v3753 = vsel %vm2229, %v3685, 0
        %v3756 = vsel %vm2229, %v3686, 0
        %v3759 = vsel %vm2229, %v3687, 0
        %v3762 = vsel %vm2229, %v3688, 0
        %v3765 = vsel %vm2229, %v3689, 0
        %v3768 = vsel %vm2229, %v3690, 0
        %v3771 = vsel %vm2229, %v3691, 0
        %v3774 = vsel %vm2229, %v3692, 0
        %v3777 = vsel %vm2229, %v3693, 0
        %v3780 = vsel %vm2229, %v3694, 0
        %v3783 = vsel %vm2229, %v3695, 0
        %v3786 = vsel %vm2229, %v3696, 0
        %v3789 = vsel %vm2229, %v3697, 0
        %v3792 = vsel %vm2229, %v3698, 0
        %v3795 = vsel %vm2229, %v3699, 0
        %v3798 = vsel %vm2229, %v3700, 0
        %v3801 = vsel %vm2229, %v3701, 0
        %v3804 = vsel %vm2229, %v3702, 0
        %v3807 = vsel %vm2229, %v3703, 0
        %v3810 = vsel %vm2229, %v3704, 0
        %v3813 = vsel %vm2229, %v3705, 0
        %v3816 = vsel %vm2229, %v3706, 0
        %v3819 = vsel %vm2229, %v3707, 0
        %v3822 = vsel %vm2229, %v3708, 0
        %v3825 = vsel %vm2229, %v3709, 0
        %v3828 = vsel %vm2229, %v3710, 0
        %v3831 = vsel %vm2229, %v3738, 0
        %v3834 = vsel %vm2229, %v3739, 0
        %v3837 = vsel %vm2326, %v3244, 0
        %3839 = vmatprep.subr.mxu0 0.0
        %3840 = vmatpush1.msra.mxu0 0.0
        %3841 = vmatprep.subr.mxu0 0.0
        %3842 = vmatpush1.msra.mxu0 0.0
        %3843 = vmatprep.subr.mxu0 0.0
        %3844 = vmatpush1.msra.mxu0 0.0
        %3845 = vmatprep.subr.mxu0 0.0
        %3846 = vmatpush1.msra.mxu0 0.0
        %3847 = vmatprep.subr.mxu0 0.0
        %3848 = vmatpush1.msra.mxu0 0.0
        %3849 = vmatprep.subr.mxu0 0.0
        %3850 = vmatpush1.msra.mxu0 0.0
        %3851 = vmatprep.subr.mxu0 0.0
        %3852 = vmatpush1.msra.mxu0 0.0
        %3853 = vmatprep.subr.mxu0 0.0
        %3854 = vmatpush1.msra.mxu0 0.0
        %3855 = vmatprep.subr.mxu0 0.0
        %3856 = vmatpush1.msra.mxu0 0.0
        %3857 = vmatprep.subr.mxu0 0.0
        %3858 = vmatpush1.msra.mxu0 0.0
        %3859 = vmatprep.subr.mxu0 0.0
        %3860 = vmatpush1.msra.mxu0 0.0
        %3861 = vmatprep.subr.mxu0 0.0
        %3862 = vmatpush1.msra.mxu0 0.0
        %3863 = vmatprep.subr.mxu0 0.0
        %3864 = vmatpush1.msra.mxu0 0.0
        %3865 = vmatprep.subr.mxu0 0.0
        %3866 = vmatpush1.msra.mxu0 0.0
        %3867 = vmatprep.subr.mxu0 0.0
        %3868 = vmatpush1.msra.mxu0 %v3837
        %3869 = vmatprep.subr.mxu0 0.0
        %3870 = vmatpush1.msra.mxu0 %v3243
        %3871 = vmatprep.subr.mxu0 0.0
        %3872 = vmatpush2.msra.mxu0 0.0
        %3873 = vmatprep.subr.mxu0 0.0
        %3874 = vmatpush2.msra.mxu0 0.0
        %3875 = vmatprep.subr.mxu0 0.0
        %3876 = vmatpush2.msra.mxu0 0.0
        %3877 = vmatprep.subr.mxu0 0.0
        %3878 = vmatpush2.msra.mxu0 0.0
        %3879 = vmatprep.subr.mxu0 0.0
        %3880 = vmatpush2.msra.mxu0 0.0
        %3881 = vmatprep.subr.mxu0 0.0
        %3882 = vmatpush2.msra.mxu0 0.0
        %3883 = vmatprep.subr.mxu0 0.0
        %3884 = vmatpush2.msra.mxu0 0.0
        %3885 = vmatprep.subr.mxu0 0.0
        %3886 = vmatpush2.msra.mxu0 0.0
        %3887 = vmatprep.subr.mxu0 0.0
        %3888 = vmatpush2.msra.mxu0 0.0
        %3889 = vmatprep.subr.mxu0 0.0
        %3890 = vmatpush2.msra.mxu0 0.0
        %3891 = vmatprep.subr.mxu0 0.0
        %3892 = vmatpush2.msra.mxu0 0.0
        %3893 = vmatprep.subr.mxu0 0.0
        %3894 = vmatpush2.msra.mxu0 0.0
        %3895 = vmatprep.subr.mxu0 0.0
        %3896 = vmatpush2.msra.mxu0 0.0
        %3897 = vmatprep.subr.mxu0 0.0
        %3898 = vmatpush2.msra.mxu0 0.0
        %3899 = vmatprep.subr.mxu0 0.0
        %3900 = vmatpush2.msra.mxu0 0.0
        %3901 = vmatprep.subr.mxu0 0.0
        %3902 = vmatpush2.msra.mxu0 0.0
        %3903 = vmatprep.mubr.f32.mxu0 0.0
        %3904 = vmatmul.mubr.f32.gmra.mxu0 %v3741
        %v3905 = vpop.f32.mrf.mxu0
        %v3906 = vadd.f32 0.0, %v3905
        %v3907 = vpop.f32.mrf.mxu0
        %3908 = vmatprep.mubr.f32.mxu0 0.0
        %3909 = vmatmul.mubr.f32.gmra.mxu0 %v3744
        %v3910 = vpop.f32.mrf.mxu0
        %v3911 = vadd.f32 0.0, %v3910
        %v3912 = vpop.f32.mrf.mxu0
        %3913 = vmatprep.mubr.f32.mxu0 0.0
        %3914 = vmatmul.mubr.f32.gmra.mxu0 %v3747
        %v3915 = vpop.f32.mrf.mxu0
        %v3916 = vadd.f32 0.0, %v3915
        %v3917 = vpop.f32.mrf.mxu0
        %3918 = vmatprep.mubr.f32.mxu0 0.0
        %3919 = vmatmul.mubr.f32.gmra.mxu0 %v3750
        %v3920 = vpop.f32.mrf.mxu0
        %v3921 = vadd.f32 0.0, %v3920
        %v3922 = vpop.f32.mrf.mxu0
        %3923 = vmatprep.mubr.f32.mxu0 0.0
        %3924 = vmatmul.mubr.f32.gmra.mxu0 %v3753
        %v3925 = vpop.f32.mrf.mxu0
        %v3926 = vadd.f32 0.0, %v3925
        %v3927 = vpop.f32.mrf.mxu0
        %3928 = vmatprep.mubr.f32.mxu0 0.0
        %3929 = vmatmul.mubr.f32.gmra.mxu0 %v3756
        %v3930 = vpop.f32.mrf.mxu0
        %v3931 = vadd.f32 0.0, %v3930
        %v3932 = vpop.f32.mrf.mxu0
        %3933 = vmatprep.mubr.f32.mxu0 0.0
        %3934 = vmatmul.mubr.f32.gmra.mxu0 %v3759
        %v3935 = vpop.f32.mrf.mxu0
        %v3936 = vadd.f32 0.0, %v3935
        %v3937 = vpop.f32.mrf.mxu0
        %3938 = vmatprep.mubr.f32.mxu0 0.0
        %3939 = vmatmul.mubr.f32.gmra.mxu0 %v3762
        %v3940 = vpop.f32.mrf.mxu0
        %v3941 = vadd.f32 0.0, %v3940
        %v3942 = vpop.f32.mrf.mxu0
        %3943 = vmatprep.mubr.f32.mxu0 0.0
        %3944 = vmatmul.mubr.f32.gmra.mxu0 %v3765
        %v3945 = vpop.f32.mrf.mxu0
        %v3946 = vadd.f32 0.0, %v3945
        %v3947 = vpop.f32.mrf.mxu0
        %3948 = vmatprep.mubr.f32.mxu0 0.0
        %3949 = vmatmul.mubr.f32.gmra.mxu0 %v3768
        %v3950 = vpop.f32.mrf.mxu0
        %v3951 = vadd.f32 0.0, %v3950
        %v3952 = vpop.f32.mrf.mxu0
        %3953 = vmatprep.mubr.f32.mxu0 0.0
        %3954 = vmatmul.mubr.f32.gmra.mxu0 %v3771
        %v3955 = vpop.f32.mrf.mxu0
        %v3956 = vadd.f32 0.0, %v3955
        %v3957 = vpop.f32.mrf.mxu0
        %3958 = vmatprep.mubr.f32.mxu0 0.0
        %3959 = vmatmul.mubr.f32.gmra.mxu0 %v3774
        %v3960 = vpop.f32.mrf.mxu0
        %v3961 = vadd.f32 0.0, %v3960
        %v3962 = vpop.f32.mrf.mxu0
        %3963 = vmatprep.mubr.f32.mxu0 0.0
        %3964 = vmatmul.mubr.f32.gmra.mxu0 %v3777
        %v3965 = vpop.f32.mrf.mxu0
        %v3966 = vadd.f32 0.0, %v3965
        %v3967 = vpop.f32.mrf.mxu0
        %3968 = vmatprep.mubr.f32.mxu0 0.0
        %3969 = vmatmul.mubr.f32.gmra.mxu0 %v3780
        %v3970 = vpop.f32.mrf.mxu0
        %v3971 = vadd.f32 0.0, %v3970
        %v3972 = vpop.f32.mrf.mxu0
        %3973 = vmatprep.mubr.f32.mxu0 0.0
        %3974 = vmatmul.mubr.f32.gmra.mxu0 %v3783
        %v3975 = vpop.f32.mrf.mxu0
        %v3976 = vadd.f32 0.0, %v3975
        %v3977 = vpop.f32.mrf.mxu0
        %3978 = vmatprep.mubr.f32.mxu0 0.0
        %3979 = vmatmul.mubr.f32.gmra.mxu0 %v3786
        %v3980 = vpop.f32.mrf.mxu0
        %v3981 = vadd.f32 0.0, %v3980
        %v3982 = vpop.f32.mrf.mxu0
        %3983 = vmatprep.mubr.f32.mxu0 0.0
        %3984 = vmatmul.mubr.f32.gmra.mxu0 %v3789
        %v3985 = vpop.f32.mrf.mxu0
        %v3986 = vadd.f32 0.0, %v3985
        %v3987 = vpop.f32.mrf.mxu0
        %3988 = vmatprep.mubr.f32.mxu0 0.0
        %3989 = vmatmul.mubr.f32.gmra.mxu0 %v3792
        %v3990 = vpop.f32.mrf.mxu0
        %v3991 = vadd.f32 0.0, %v3990
        %v3992 = vpop.f32.mrf.mxu0
        %3993 = vmatprep.mubr.f32.mxu0 0.0
        %3994 = vmatmul.mubr.f32.gmra.mxu0 %v3795
        %v3995 = vpop.f32.mrf.mxu0
        %v3996 = vadd.f32 0.0, %v3995
        %v3997 = vpop.f32.mrf.mxu0
        %3998 = vmatprep.mubr.f32.mxu0 0.0
        %3999 = vmatmul.mubr.f32.gmra.mxu0 %v3798
        %v4000 = vpop.f32.mrf.mxu0
        %v4001 = vadd.f32 0.0, %v4000
        %v4002 = vpop.f32.mrf.mxu0
        %4003 = vmatprep.mubr.f32.mxu0 0.0
        %4004 = vmatmul.mubr.f32.gmra.mxu0 %v3801
        %v4005 = vpop.f32.mrf.mxu0
        %v4006 = vadd.f32 0.0, %v4005
        %v4007 = vpop.f32.mrf.mxu0
        %4008 = vmatprep.mubr.f32.mxu0 0.0
        %4009 = vmatmul.mubr.f32.gmra.mxu0 %v3804
        %v4010 = vpop.f32.mrf.mxu0
        %v4011 = vadd.f32 0.0, %v4010
        %v4012 = vpop.f32.mrf.mxu0
        %4013 = vmatprep.mubr.f32.mxu0 0.0
        %4014 = vmatmul.mubr.f32.gmra.mxu0 %v3807
        %v4015 = vpop.f32.mrf.mxu0
        %v4016 = vadd.f32 0.0, %v4015
        %v4017 = vpop.f32.mrf.mxu0
        %4018 = vmatprep.mubr.f32.mxu0 0.0
        %4019 = vmatmul.mubr.f32.gmra.mxu0 %v3810
        %v4020 = vpop.f32.mrf.mxu0
        %v4021 = vadd.f32 0.0, %v4020
        %v4022 = vpop.f32.mrf.mxu0
        %4023 = vmatprep.mubr.f32.mxu0 0.0
        %4024 = vmatmul.mubr.f32.gmra.mxu0 %v3813
        %v4025 = vpop.f32.mrf.mxu0
        %v4026 = vadd.f32 0.0, %v4025
        %v4027 = vpop.f32.mrf.mxu0
        %4028 = vmatprep.mubr.f32.mxu0 0.0
        %4029 = vmatmul.mubr.f32.gmra.mxu0 %v3816
        %v4030 = vpop.f32.mrf.mxu0
        %v4031 = vadd.f32 0.0, %v4030
        %v4032 = vpop.f32.mrf.mxu0
        %4033 = vmatprep.mubr.f32.mxu0 0.0
        %4034 = vmatmul.mubr.f32.gmra.mxu0 %v3819
        %v4035 = vpop.f32.mrf.mxu0
        %v4036 = vadd.f32 0.0, %v4035
        %v4037 = vpop.f32.mrf.mxu0
        %4038 = vmatprep.mubr.f32.mxu0 0.0
        %4039 = vmatmul.mubr.f32.gmra.mxu0 %v3822
        %v4040 = vpop.f32.mrf.mxu0
        %v4041 = vadd.f32 0.0, %v4040
        %v4042 = vpop.f32.mrf.mxu0
        %4043 = vmatprep.mubr.f32.mxu0 0.0
        %4044 = vmatmul.mubr.f32.gmra.mxu0 %v3825
        %v4045 = vpop.f32.mrf.mxu0
        %v4046 = vadd.f32 0.0, %v4045
        %v4047 = vpop.f32.mrf.mxu0
        %4048 = vmatprep.mubr.f32.mxu0 0.0
        %4049 = vmatmul.mubr.f32.gmra.mxu0 %v3828
        %v4050 = vpop.f32.mrf.mxu0
        %v4051 = vadd.f32 0.0, %v4050
        %v4052 = vpop.f32.mrf.mxu0
        %4053 = vmatprep.mubr.f32.mxu0 0.0
        %4054 = vmatmul.mubr.f32.gmra.mxu0 %v3831
        %v4055 = vpop.f32.mrf.mxu0
        %v4056 = vadd.f32 0.0, %v4055
        %v4057 = vpop.f32.mrf.mxu0
        %4058 = vmatprep.mubr.f32.mxu0 0.0
        %4059 = vmatmul.mubr.f32.gmra.mxu0 %v3834
        %v4060 = vpop.f32.mrf.mxu0
        %v4061 = vadd.f32 0.0, %v4060
        %v4062 = vpop.f32.mrf.mxu0
        %4063 = vdwg.mxu0
        %v4065 = vsel %vm2229, %v3679, 0
        %v4068 = vsel %vm2229, %v3680, 0
        %v4071 = vsel %vm2326, %v3242, 0
        %4073 = vmatprep.subr.mxu0 0.0
        %4074 = vmatpush1.msra.mxu0 0.0
        %4075 = vmatprep.subr.mxu0 0.0
        %4076 = vmatpush1.msra.mxu0 0.0
        %4077 = vmatprep.subr.mxu0 0.0
        %4078 = vmatpush1.msra.mxu0 0.0
        %4079 = vmatprep.subr.mxu0 0.0
        %4080 = vmatpush1.msra.mxu0 0.0
        %4081 = vmatprep.subr.mxu0 0.0
        %4082 = vmatpush1.msra.mxu0 0.0
        %4083 = vmatprep.subr.mxu0 0.0
        %4084 = vmatpush1.msra.mxu0 0.0
        %4085 = vmatprep.subr.mxu0 0.0
        %4086 = vmatpush1.msra.mxu0 0.0
        %4087 = vmatprep.subr.mxu0 0.0
        %4088 = vmatpush1.msra.mxu0 0.0
        %4089 = vmatprep.subr.mxu0 0.0
        %4090 = vmatpush1.msra.mxu0 0.0
        %4091 = vmatprep.subr.mxu0 0.0
        %4092 = vmatpush1.msra.mxu0 0.0
        %4093 = vmatprep.subr.mxu0 0.0
        %4094 = vmatpush1.msra.mxu0 0.0
        %4095 = vmatprep.subr.mxu0 0.0
        %4096 = vmatpush1.msra.mxu0 0.0
        %4097 = vmatprep.subr.mxu0 0.0
        %4098 = vmatpush1.msra.mxu0 0.0
        %4099 = vmatprep.subr.mxu0 0.0
        %4100 = vmatpush1.msra.mxu0 0.0
        %4101 = vmatprep.subr.mxu0 0.0
        %4102 = vmatpush1.msra.mxu0 %v4071
        %4103 = vmatprep.subr.mxu0 0.0
        %4104 = vmatpush1.msra.mxu0 %v3241
        %4105 = vmatprep.subr.mxu0 0.0
        %4106 = vmatpush2.msra.mxu0 0.0
        %4107 = vmatprep.subr.mxu0 0.0
        %4108 = vmatpush2.msra.mxu0 0.0
        %4109 = vmatprep.subr.mxu0 0.0
        %4110 = vmatpush2.msra.mxu0 0.0
        %4111 = vmatprep.subr.mxu0 0.0
        %4112 = vmatpush2.msra.mxu0 0.0
        %4113 = vmatprep.subr.mxu0 0.0
        %4114 = vmatpush2.msra.mxu0 0.0
        %4115 = vmatprep.subr.mxu0 0.0
        %4116 = vmatpush2.msra.mxu0 0.0
        %4117 = vmatprep.subr.mxu0 0.0
        %4118 = vmatpush2.msra.mxu0 0.0
        %4119 = vmatprep.subr.mxu0 0.0
        %4120 = vmatpush2.msra.mxu0 0.0
        %4121 = vmatprep.subr.mxu0 0.0
        %4122 = vmatpush2.msra.mxu0 0.0
        %4123 = vmatprep.subr.mxu0 0.0
        %4124 = vmatpush2.msra.mxu0 0.0
        %4125 = vmatprep.subr.mxu0 0.0
        %4126 = vmatpush2.msra.mxu0 0.0
        %4127 = vmatprep.subr.mxu0 0.0
        %4128 = vmatpush2.msra.mxu0 0.0
        %4129 = vmatprep.subr.mxu0 0.0
        %4130 = vmatpush2.msra.mxu0 0.0
        %4131 = vmatprep.subr.mxu0 0.0
        %4132 = vmatpush2.msra.mxu0 0.0
        %4133 = vmatprep.subr.mxu0 0.0
        %4134 = vmatpush2.msra.mxu0 0.0
        %4135 = vmatprep.subr.mxu0 0.0
        %4136 = vmatpush2.msra.mxu0 0.0
        %4137 = vmatprep.mubr.f32.mxu0 0.0
        %4138 = vmatmul.mubr.f32.gmra.mxu0 %v4065
        %v4139 = vpop.f32.mrf.mxu0
        %v4140 = vadd.f32 %v3906, %v4139
        %v4141 = vpop.f32.mrf.mxu0
        %4142 = vmatprep.mubr.f32.mxu0 0.0
        %4143 = vmatmul.mubr.f32.gmra.mxu0 %v4068
        %v4144 = vpop.f32.mrf.mxu0
        %v4145 = vadd.f32 %v3911, %v4144
        %v4146 = vpop.f32.mrf.mxu0
        %4147 = vmatprep.mubr.f32.mxu0 0.0
        %4148 = vmatmul.mubr.f32.gmra.mxu0 %v3741
        %v4149 = vpop.f32.mrf.mxu0
        %v4150 = vadd.f32 %v3916, %v4149
        %v4151 = vpop.f32.mrf.mxu0
        %4152 = vmatprep.mubr.f32.mxu0 0.0
        %4153 = vmatmul.mubr.f32.gmra.mxu0 %v3744
        %v4154 = vpop.f32.mrf.mxu0
        %v4155 = vadd.f32 %v3921, %v4154
        %v4156 = vpop.f32.mrf.mxu0
        %4157 = vmatprep.mubr.f32.mxu0 0.0
        %4158 = vmatmul.mubr.f32.gmra.mxu0 %v3747
        %v4159 = vpop.f32.mrf.mxu0
        %v4160 = vadd.f32 %v3926, %v4159
        %v4161 = vpop.f32.mrf.mxu0
        %4162 = vmatprep.mubr.f32.mxu0 0.0
        %4163 = vmatmul.mubr.f32.gmra.mxu0 %v3750
        %v4164 = vpop.f32.mrf.mxu0
        %v4165 = vadd.f32 %v3931, %v4164
        %v4166 = vpop.f32.mrf.mxu0
        %4167 = vmatprep.mubr.f32.mxu0 0.0
        %4168 = vmatmul.mubr.f32.gmra.mxu0 %v3753
        %v4169 = vpop.f32.mrf.mxu0
        %v4170 = vadd.f32 %v3936, %v4169
        %v4171 = vpop.f32.mrf.mxu0
        %4172 = vmatprep.mubr.f32.mxu0 0.0
        %4173 = vmatmul.mubr.f32.gmra.mxu0 %v3756
        %v4174 = vpop.f32.mrf.mxu0
        %v4175 = vadd.f32 %v3941, %v4174
        %v4176 = vpop.f32.mrf.mxu0
        %4177 = vmatprep.mubr.f32.mxu0 0.0
        %4178 = vmatmul.mubr.f32.gmra.mxu0 %v3759
        %v4179 = vpop.f32.mrf.mxu0
        %v4180 = vadd.f32 %v3946, %v4179
        %v4181 = vpop.f32.mrf.mxu0
        %4182 = vmatprep.mubr.f32.mxu0 0.0
        %4183 = vmatmul.mubr.f32.gmra.mxu0 %v3762
        %v4184 = vpop.f32.mrf.mxu0
        %v4185 = vadd.f32 %v3951, %v4184
        %v4186 = vpop.f32.mrf.mxu0
        %4187 = vmatprep.mubr.f32.mxu0 0.0
        %4188 = vmatmul.mubr.f32.gmra.mxu0 %v3765
        %v4189 = vpop.f32.mrf.mxu0
        %v4190 = vadd.f32 %v3956, %v4189
        %v4191 = vpop.f32.mrf.mxu0
        %4192 = vmatprep.mubr.f32.mxu0 0.0
        %4193 = vmatmul.mubr.f32.gmra.mxu0 %v3768
        %v4194 = vpop.f32.mrf.mxu0
        %v4195 = vadd.f32 %v3961, %v4194
        %v4196 = vpop.f32.mrf.mxu0
        %4197 = vmatprep.mubr.f32.mxu0 0.0
        %4198 = vmatmul.mubr.f32.gmra.mxu0 %v3771
        %v4199 = vpop.f32.mrf.mxu0
        %v4200 = vadd.f32 %v3966, %v4199
        %v4201 = vpop.f32.mrf.mxu0
        %4202 = vmatprep.mubr.f32.mxu0 0.0
        %4203 = vmatmul.mubr.f32.gmra.mxu0 %v3774
        %v4204 = vpop.f32.mrf.mxu0
        %v4205 = vadd.f32 %v3971, %v4204
        %v4206 = vpop.f32.mrf.mxu0
        %4207 = vmatprep.mubr.f32.mxu0 0.0
        %4208 = vmatmul.mubr.f32.gmra.mxu0 %v3777
        %v4209 = vpop.f32.mrf.mxu0
        %v4210 = vadd.f32 %v3976, %v4209
        %v4211 = vpop.f32.mrf.mxu0
        %4212 = vmatprep.mubr.f32.mxu0 0.0
        %4213 = vmatmul.mubr.f32.gmra.mxu0 %v3780
        %v4214 = vpop.f32.mrf.mxu0
        %v4215 = vadd.f32 %v3981, %v4214
        %v4216 = vpop.f32.mrf.mxu0
        %4217 = vmatprep.mubr.f32.mxu0 0.0
        %4218 = vmatmul.mubr.f32.gmra.mxu0 %v3783
        %v4219 = vpop.f32.mrf.mxu0
        %v4220 = vadd.f32 %v3986, %v4219
        %v4221 = vpop.f32.mrf.mxu0
        %4222 = vmatprep.mubr.f32.mxu0 0.0
        %4223 = vmatmul.mubr.f32.gmra.mxu0 %v3786
        %v4224 = vpop.f32.mrf.mxu0
        %v4225 = vadd.f32 %v3991, %v4224
        %v4226 = vpop.f32.mrf.mxu0
        %4227 = vmatprep.mubr.f32.mxu0 0.0
        %4228 = vmatmul.mubr.f32.gmra.mxu0 %v3789
        %v4229 = vpop.f32.mrf.mxu0
        %v4230 = vadd.f32 %v3996, %v4229
        %v4231 = vpop.f32.mrf.mxu0
        %4232 = vmatprep.mubr.f32.mxu0 0.0
        %4233 = vmatmul.mubr.f32.gmra.mxu0 %v3792
        %v4234 = vpop.f32.mrf.mxu0
        %v4235 = vadd.f32 %v4001, %v4234
        %v4236 = vpop.f32.mrf.mxu0
        %4237 = vmatprep.mubr.f32.mxu0 0.0
        %4238 = vmatmul.mubr.f32.gmra.mxu0 %v3795
        %v4239 = vpop.f32.mrf.mxu0
        %v4240 = vadd.f32 %v4006, %v4239
        %v4241 = vpop.f32.mrf.mxu0
        %4242 = vmatprep.mubr.f32.mxu0 0.0
        %4243 = vmatmul.mubr.f32.gmra.mxu0 %v3798
        %v4244 = vpop.f32.mrf.mxu0
        %v4245 = vadd.f32 %v4011, %v4244
        %v4246 = vpop.f32.mrf.mxu0
        %4247 = vmatprep.mubr.f32.mxu0 0.0
        %4248 = vmatmul.mubr.f32.gmra.mxu0 %v3801
        %v4249 = vpop.f32.mrf.mxu0
        %v4250 = vadd.f32 %v4016, %v4249
        %v4251 = vpop.f32.mrf.mxu0
        %4252 = vmatprep.mubr.f32.mxu0 0.0
        %4253 = vmatmul.mubr.f32.gmra.mxu0 %v3804
        %v4254 = vpop.f32.mrf.mxu0
        %v4255 = vadd.f32 %v4021, %v4254
        %v4256 = vpop.f32.mrf.mxu0
        %4257 = vmatprep.mubr.f32.mxu0 0.0
        %4258 = vmatmul.mubr.f32.gmra.mxu0 %v3807
        %v4259 = vpop.f32.mrf.mxu0
        %v4260 = vadd.f32 %v4026, %v4259
        %v4261 = vpop.f32.mrf.mxu0
        %4262 = vmatprep.mubr.f32.mxu0 0.0
        %4263 = vmatmul.mubr.f32.gmra.mxu0 %v3810
        %v4264 = vpop.f32.mrf.mxu0
        %v4265 = vadd.f32 %v4031, %v4264
        %v4266 = vpop.f32.mrf.mxu0
        %4267 = vmatprep.mubr.f32.mxu0 0.0
        %4268 = vmatmul.mubr.f32.gmra.mxu0 %v3813
        %v4269 = vpop.f32.mrf.mxu0
        %v4270 = vadd.f32 %v4036, %v4269
        %v4271 = vpop.f32.mrf.mxu0
        %4272 = vmatprep.mubr.f32.mxu0 0.0
        %4273 = vmatmul.mubr.f32.gmra.mxu0 %v3816
        %v4274 = vpop.f32.mrf.mxu0
        %v4275 = vadd.f32 %v4041, %v4274
        %v4276 = vpop.f32.mrf.mxu0
        %4277 = vmatprep.mubr.f32.mxu0 0.0
        %4278 = vmatmul.mubr.f32.gmra.mxu0 %v3819
        %v4279 = vpop.f32.mrf.mxu0
        %v4280 = vadd.f32 %v4046, %v4279
        %v4281 = vpop.f32.mrf.mxu0
        %4282 = vmatprep.mubr.f32.mxu0 0.0
        %4283 = vmatmul.mubr.f32.gmra.mxu0 %v3822
        %v4284 = vpop.f32.mrf.mxu0
        %v4285 = vadd.f32 %v4051, %v4284
        %v4286 = vpop.f32.mrf.mxu0
        %4287 = vmatprep.mubr.f32.mxu0 0.0
        %4288 = vmatmul.mubr.f32.gmra.mxu0 %v3825
        %v4289 = vpop.f32.mrf.mxu0
        %v4290 = vadd.f32 %v4056, %v4289
        %v4291 = vpop.f32.mrf.mxu0
        %4292 = vmatprep.mubr.f32.mxu0 0.0
        %4293 = vmatmul.mubr.f32.gmra.mxu0 %v3828
        %v4294 = vpop.f32.mrf.mxu0
        %v4295 = vadd.f32 %v4061, %v4294
        %v4296 = vpop.f32.mrf.mxu0
        %4297 = vdwg.mxu0
        %v4301 = vrot.slane %v3238, 1
        %v4302 = vrot.slane %v3239, 1
        %v4303 = vsel %vm1782, %v4301, %v4302
        %v4304 = vrot.slane %v3240, 1
        %v4305 = vsel %vm1782, %v4302, %v4304
        %v4306 = vrot.slane %v3238, 2
        %v4307 = vrot.slane %v3239, 2
        %v4308 = vsel %vm1863, %v4306, %v4307
        %v4309 = vrot.slane %v3240, 2
        %v4310 = vsel %vm1863, %v4307, %v4309
        %4311 = vrot.lane.b32.xlu0 %v4303, 4
        %v4312 = vpop.permute.xlu0 %4311
        %4313 = vrot.lane.b32.xlu0 %v4305, 4
        %v4314 = vpop.permute.xlu0 %4313
        %4317 = vrot.lane.b32.xlu0 %v4308, 8
        %v4318 = vpop.permute.xlu0 %4317
        %4319 = vrot.lane.b32.xlu0 %v4310, 8
        %v4320 = vpop.permute.xlu0 %4319
        %v4323 = vsel %vm299, %v3238, %v4312
        %v4324 = vsel %vm299, %v3239, %v4314
        %v4325 = vsel %vm361, %v4323, %v4318
        %v4326 = vsel %vm361, %v4324, %v4320
        %v4328 = vsel %vm2229, %v4325, 0
        %v4331 = vsel %vm2229, %v4326, 0
        %v4334 = vsel %vm2326, %v3246, 0
        %4336 = vmatprep.subr.mxu0 0.0
        %4337 = vmatpush1.msra.mxu0 0.0
        %4338 = vmatprep.subr.mxu0 0.0
        %4339 = vmatpush1.msra.mxu0 0.0
        %4340 = vmatprep.subr.mxu0 0.0
        %4341 = vmatpush1.msra.mxu0 0.0
        %4342 = vmatprep.subr.mxu0 0.0
        %4343 = vmatpush1.msra.mxu0 0.0
        %4344 = vmatprep.subr.mxu0 0.0
        %4345 = vmatpush1.msra.mxu0 0.0
        %4346 = vmatprep.subr.mxu0 0.0
        %4347 = vmatpush1.msra.mxu0 0.0
        %4348 = vmatprep.subr.mxu0 0.0
        %4349 = vmatpush1.msra.mxu0 0.0
        %4350 = vmatprep.subr.mxu0 0.0
        %4351 = vmatpush1.msra.mxu0 0.0
        %4352 = vmatprep.subr.mxu0 0.0
        %4353 = vmatpush1.msra.mxu0 0.0
        %4354 = vmatprep.subr.mxu0 0.0
        %4355 = vmatpush1.msra.mxu0 0.0
        %4356 = vmatprep.subr.mxu0 0.0
        %4357 = vmatpush1.msra.mxu0 0.0
        %4358 = vmatprep.subr.mxu0 0.0
        %4359 = vmatpush1.msra.mxu0 0.0
        %4360 = vmatprep.subr.mxu0 0.0
        %4361 = vmatpush1.msra.mxu0 0.0
        %4362 = vmatprep.subr.mxu0 0.0
        %4363 = vmatpush1.msra.mxu0 0.0
        %4364 = vmatprep.subr.mxu0 0.0
        %4365 = vmatpush1.msra.mxu0 %v4334
        %4366 = vmatprep.subr.mxu0 0.0
        %4367 = vmatpush1.msra.mxu0 %v3245
        %4368 = vmatprep.subr.mxu0 0.0
        %4369 = vmatpush2.msra.mxu0 0.0
        %4370 = vmatprep.subr.mxu0 0.0
        %4371 = vmatpush2.msra.mxu0 0.0
        %4372 = vmatprep.subr.mxu0 0.0
        %4373 = vmatpush2.msra.mxu0 0.0
        %4374 = vmatprep.subr.mxu0 0.0
        %4375 = vmatpush2.msra.mxu0 0.0
        %4376 = vmatprep.subr.mxu0 0.0
        %4377 = vmatpush2.msra.mxu0 0.0
        %4378 = vmatprep.subr.mxu0 0.0
        %4379 = vmatpush2.msra.mxu0 0.0
        %4380 = vmatprep.subr.mxu0 0.0
        %4381 = vmatpush2.msra.mxu0 0.0
        %4382 = vmatprep.subr.mxu0 0.0
        %4383 = vmatpush2.msra.mxu0 0.0
        %4384 = vmatprep.subr.mxu0 0.0
        %4385 = vmatpush2.msra.mxu0 0.0
        %4386 = vmatprep.subr.mxu0 0.0
        %4387 = vmatpush2.msra.mxu0 0.0
        %4388 = vmatprep.subr.mxu0 0.0
        %4389 = vmatpush2.msra.mxu0 0.0
        %4390 = vmatprep.subr.mxu0 0.0
        %4391 = vmatpush2.msra.mxu0 0.0
        %4392 = vmatprep.subr.mxu0 0.0
        %4393 = vmatpush2.msra.mxu0 0.0
        %4394 = vmatprep.subr.mxu0 0.0
        %4395 = vmatpush2.msra.mxu0 0.0
        %4396 = vmatprep.subr.mxu0 0.0
        %4397 = vmatpush2.msra.mxu0 0.0
        %4398 = vmatprep.subr.mxu0 0.0
        %4399 = vmatpush2.msra.mxu0 0.0
        %4400 = vmatprep.mubr.f32.mxu0 0.0
        %4401 = vmatmul.mubr.f32.gmra.mxu0 %v3747
        %v4402 = vpop.f32.mrf.mxu0
        %v4403 = vadd.f32 0.0, %v4402
        %v4404 = vpop.f32.mrf.mxu0
        %4405 = vmatprep.mubr.f32.mxu0 0.0
        %4406 = vmatmul.mubr.f32.gmra.mxu0 %v3750
        %v4407 = vpop.f32.mrf.mxu0
        %v4408 = vadd.f32 0.0, %v4407
        %v4409 = vpop.f32.mrf.mxu0
        %4410 = vmatprep.mubr.f32.mxu0 0.0
        %4411 = vmatmul.mubr.f32.gmra.mxu0 %v3753
        %v4412 = vpop.f32.mrf.mxu0
        %v4413 = vadd.f32 0.0, %v4412
        %v4414 = vpop.f32.mrf.mxu0
        %4415 = vmatprep.mubr.f32.mxu0 0.0
        %4416 = vmatmul.mubr.f32.gmra.mxu0 %v3756
        %v4417 = vpop.f32.mrf.mxu0
        %v4418 = vadd.f32 0.0, %v4417
        %v4419 = vpop.f32.mrf.mxu0
        %4420 = vmatprep.mubr.f32.mxu0 0.0
        %4421 = vmatmul.mubr.f32.gmra.mxu0 %v3759
        %v4422 = vpop.f32.mrf.mxu0
        %v4423 = vadd.f32 0.0, %v4422
        %v4424 = vpop.f32.mrf.mxu0
        %4425 = vmatprep.mubr.f32.mxu0 0.0
        %4426 = vmatmul.mubr.f32.gmra.mxu0 %v3762
        %v4427 = vpop.f32.mrf.mxu0
        %v4428 = vadd.f32 0.0, %v4427
        %v4429 = vpop.f32.mrf.mxu0
        %4430 = vmatprep.mubr.f32.mxu0 0.0
        %4431 = vmatmul.mubr.f32.gmra.mxu0 %v3765
        %v4432 = vpop.f32.mrf.mxu0
        %v4433 = vadd.f32 0.0, %v4432
        %v4434 = vpop.f32.mrf.mxu0
        %4435 = vmatprep.mubr.f32.mxu0 0.0
        %4436 = vmatmul.mubr.f32.gmra.mxu0 %v3768
        %v4437 = vpop.f32.mrf.mxu0
        %v4438 = vadd.f32 0.0, %v4437
        %v4439 = vpop.f32.mrf.mxu0
        %4440 = vmatprep.mubr.f32.mxu0 0.0
        %4441 = vmatmul.mubr.f32.gmra.mxu0 %v3771
        %v4442 = vpop.f32.mrf.mxu0
        %v4443 = vadd.f32 0.0, %v4442
        %v4444 = vpop.f32.mrf.mxu0
        %4445 = vmatprep.mubr.f32.mxu0 0.0
        %4446 = vmatmul.mubr.f32.gmra.mxu0 %v3774
        %v4447 = vpop.f32.mrf.mxu0
        %v4448 = vadd.f32 0.0, %v4447
        %v4449 = vpop.f32.mrf.mxu0
        %4450 = vmatprep.mubr.f32.mxu0 0.0
        %4451 = vmatmul.mubr.f32.gmra.mxu0 %v3777
        %v4452 = vpop.f32.mrf.mxu0
        %v4453 = vadd.f32 0.0, %v4452
        %v4454 = vpop.f32.mrf.mxu0
        %4455 = vmatprep.mubr.f32.mxu0 0.0
        %4456 = vmatmul.mubr.f32.gmra.mxu0 %v3780
        %v4457 = vpop.f32.mrf.mxu0
        %v4458 = vadd.f32 0.0, %v4457
        %v4459 = vpop.f32.mrf.mxu0
        %4460 = vmatprep.mubr.f32.mxu0 0.0
        %4461 = vmatmul.mubr.f32.gmra.mxu0 %v3783
        %v4462 = vpop.f32.mrf.mxu0
        %v4463 = vadd.f32 0.0, %v4462
        %v4464 = vpop.f32.mrf.mxu0
        %4465 = vmatprep.mubr.f32.mxu0 0.0
        %4466 = vmatmul.mubr.f32.gmra.mxu0 %v3786
        %v4467 = vpop.f32.mrf.mxu0
        %v4468 = vadd.f32 0.0, %v4467
        %v4469 = vpop.f32.mrf.mxu0
        %4470 = vmatprep.mubr.f32.mxu0 0.0
        %4471 = vmatmul.mubr.f32.gmra.mxu0 %v3789
        %v4472 = vpop.f32.mrf.mxu0
        %v4473 = vadd.f32 0.0, %v4472
        %v4474 = vpop.f32.mrf.mxu0
        %4475 = vmatprep.mubr.f32.mxu0 0.0
        %4476 = vmatmul.mubr.f32.gmra.mxu0 %v3792
        %v4477 = vpop.f32.mrf.mxu0
        %v4478 = vadd.f32 0.0, %v4477
        %v4479 = vpop.f32.mrf.mxu0
        %4480 = vmatprep.mubr.f32.mxu0 0.0
        %4481 = vmatmul.mubr.f32.gmra.mxu0 %v3795
        %v4482 = vpop.f32.mrf.mxu0
        %v4483 = vadd.f32 0.0, %v4482
        %v4484 = vpop.f32.mrf.mxu0
        %4485 = vmatprep.mubr.f32.mxu0 0.0
        %4486 = vmatmul.mubr.f32.gmra.mxu0 %v3798
        %v4487 = vpop.f32.mrf.mxu0
        %v4488 = vadd.f32 0.0, %v4487
        %v4489 = vpop.f32.mrf.mxu0
        %4490 = vmatprep.mubr.f32.mxu0 0.0
        %4491 = vmatmul.mubr.f32.gmra.mxu0 %v3801
        %v4492 = vpop.f32.mrf.mxu0
        %v4493 = vadd.f32 0.0, %v4492
        %v4494 = vpop.f32.mrf.mxu0
        %4495 = vmatprep.mubr.f32.mxu0 0.0
        %4496 = vmatmul.mubr.f32.gmra.mxu0 %v3804
        %v4497 = vpop.f32.mrf.mxu0
        %v4498 = vadd.f32 0.0, %v4497
        %v4499 = vpop.f32.mrf.mxu0
        %4500 = vmatprep.mubr.f32.mxu0 0.0
        %4501 = vmatmul.mubr.f32.gmra.mxu0 %v3807
        %v4502 = vpop.f32.mrf.mxu0
        %v4503 = vadd.f32 0.0, %v4502
        %v4504 = vpop.f32.mrf.mxu0
        %4505 = vmatprep.mubr.f32.mxu0 0.0
        %4506 = vmatmul.mubr.f32.gmra.mxu0 %v3810
        %v4507 = vpop.f32.mrf.mxu0
        %v4508 = vadd.f32 0.0, %v4507
        %v4509 = vpop.f32.mrf.mxu0
        %4510 = vmatprep.mubr.f32.mxu0 0.0
        %4511 = vmatmul.mubr.f32.gmra.mxu0 %v3813
        %v4512 = vpop.f32.mrf.mxu0
        %v4513 = vadd.f32 0.0, %v4512
        %v4514 = vpop.f32.mrf.mxu0
        %4515 = vmatprep.mubr.f32.mxu0 0.0
        %4516 = vmatmul.mubr.f32.gmra.mxu0 %v3816
        %v4517 = vpop.f32.mrf.mxu0
        %v4518 = vadd.f32 0.0, %v4517
        %v4519 = vpop.f32.mrf.mxu0
        %4520 = vmatprep.mubr.f32.mxu0 0.0
        %4521 = vmatmul.mubr.f32.gmra.mxu0 %v3819
        %v4522 = vpop.f32.mrf.mxu0
        %v4523 = vadd.f32 0.0, %v4522
        %v4524 = vpop.f32.mrf.mxu0
        %4525 = vmatprep.mubr.f32.mxu0 0.0
        %4526 = vmatmul.mubr.f32.gmra.mxu0 %v3822
        %v4527 = vpop.f32.mrf.mxu0
        %v4528 = vadd.f32 0.0, %v4527
        %v4529 = vpop.f32.mrf.mxu0
        %4530 = vmatprep.mubr.f32.mxu0 0.0
        %4531 = vmatmul.mubr.f32.gmra.mxu0 %v3825
        %v4532 = vpop.f32.mrf.mxu0
        %v4533 = vadd.f32 0.0, %v4532
        %v4534 = vpop.f32.mrf.mxu0
        %4535 = vmatprep.mubr.f32.mxu0 0.0
        %4536 = vmatmul.mubr.f32.gmra.mxu0 %v3828
        %v4537 = vpop.f32.mrf.mxu0
        %v4538 = vadd.f32 0.0, %v4537
        %v4539 = vpop.f32.mrf.mxu0
        %4540 = vmatprep.mubr.f32.mxu0 0.0
        %4541 = vmatmul.mubr.f32.gmra.mxu0 %v3831
        %v4542 = vpop.f32.mrf.mxu0
        %v4543 = vadd.f32 0.0, %v4542
        %v4544 = vpop.f32.mrf.mxu0
        %4545 = vmatprep.mubr.f32.mxu0 0.0
        %4546 = vmatmul.mubr.f32.gmra.mxu0 %v3834
        %v4547 = vpop.f32.mrf.mxu0
        %v4548 = vadd.f32 0.0, %v4547
        %v4549 = vpop.f32.mrf.mxu0
        %4550 = vmatprep.mubr.f32.mxu0 0.0
        %4551 = vmatmul.mubr.f32.gmra.mxu0 %v4328
        %v4552 = vpop.f32.mrf.mxu0
        %v4553 = vadd.f32 0.0, %v4552
        %v4554 = vpop.f32.mrf.mxu0
        %4555 = vmatprep.mubr.f32.mxu0 0.0
        %4556 = vmatmul.mubr.f32.gmra.mxu0 %v4331
        %v4557 = vpop.f32.mrf.mxu0
        %v4558 = vadd.f32 0.0, %v4557
        %v4559 = vpop.f32.mrf.mxu0
        %4560 = vdwg.mxu0
        %v4561 = vadd.f32 %v4140, %v4403
        %v4562 = vadd.f32 %v4145, %v4408
        %v4563 = vadd.f32 %v4150, %v4413
        %v4564 = vadd.f32 %v4155, %v4418
        %v4565 = vadd.f32 %v4160, %v4423
        %v4566 = vadd.f32 %v4165, %v4428
        %v4567 = vadd.f32 %v4170, %v4433
        %v4568 = vadd.f32 %v4175, %v4438
        %v4569 = vadd.f32 %v4180, %v4443
        %v4570 = vadd.f32 %v4185, %v4448
        %v4571 = vadd.f32 %v4190, %v4453
        %v4572 = vadd.f32 %v4195, %v4458
        %v4573 = vadd.f32 %v4200, %v4463
        %v4574 = vadd.f32 %v4205, %v4468
        %v4575 = vadd.f32 %v4210, %v4473
        %v4576 = vadd.f32 %v4215, %v4478
        %v4577 = vadd.f32 %v4220, %v4483
        %v4578 = vadd.f32 %v4225, %v4488
        %v4579 = vadd.f32 %v4230, %v4493
        %v4580 = vadd.f32 %v4235, %v4498
        %v4581 = vadd.f32 %v4240, %v4503
        %v4582 = vadd.f32 %v4245, %v4508
        %v4583 = vadd.f32 %v4250, %v4513
        %v4584 = vadd.f32 %v4255, %v4518
        %v4585 = vadd.f32 %v4260, %v4523
        %v4586 = vadd.f32 %v4265, %v4528
        %v4587 = vadd.f32 %v4270, %v4533
        %v4588 = vadd.f32 %v4275, %v4538
        %v4589 = vadd.f32 %v4280, %v4543
        %v4590 = vadd.f32 %v4285, %v4548
        %v4591 = vadd.f32 %v4290, %v4553
        %v4592 = vadd.f32 %v4295, %v4558
        %v4593 = vld [vmem:[%s6] sm:$0x1]
        %v4595 = vlaneseq
        %v4596 = vshrl.u32 %v4595, 7
        %v4597 = vsub.s32 0, %v4596
        %v4598 = vrot.slane %v4593, %v4597
        %v4600 = vadd.f32 %v4561, %v4598
        %v4601 = vadd.f32 %v4562, %v4598
        %v4602 = vadd.f32 %v4563, %v4598
        %v4603 = vadd.f32 %v4564, %v4598
        %v4604 = vadd.f32 %v4565, %v4598
        %v4605 = vadd.f32 %v4566, %v4598
        %v4606 = vadd.f32 %v4567, %v4598
        %v4607 = vadd.f32 %v4568, %v4598
        %v4608 = vadd.f32 %v4569, %v4598
        %v4609 = vadd.f32 %v4570, %v4598
        %v4610 = vadd.f32 %v4571, %v4598
        %v4611 = vadd.f32 %v4572, %v4598
        %v4612 = vadd.f32 %v4573, %v4598
        %v4613 = vadd.f32 %v4574, %v4598
        %v4614 = vadd.f32 %v4575, %v4598
        %v4615 = vadd.f32 %v4576, %v4598
        %v4616 = vadd.f32 %v4577, %v4598
        %v4617 = vadd.f32 %v4578, %v4598
        %v4618 = vadd.f32 %v4579, %v4598
        %v4619 = vadd.f32 %v4580, %v4598
        %v4620 = vadd.f32 %v4581, %v4598
        %v4621 = vadd.f32 %v4582, %v4598
        %v4622 = vadd.f32 %v4583, %v4598
        %v4623 = vadd.f32 %v4584, %v4598
        %v4624 = vadd.f32 %v4585, %v4598
        %v4625 = vadd.f32 %v4586, %v4598
        %v4626 = vadd.f32 %v4587, %v4598
        %v4627 = vadd.f32 %v4588, %v4598
        %v4628 = vadd.f32 %v4589, %v4598
        %v4629 = vadd.f32 %v4590, %v4598
        %v4630 = vadd.f32 %v4591, %v4598
        %v4631 = vadd.f32 %v4592, %v4598
        %v4632 = vmax.f32 %v4600, 0.0
        %v4633 = vmax.f32 %v4601, 0.0
        %v4634 = vmax.f32 %v4602, 0.0
        %v4635 = vmax.f32 %v4603, 0.0
        %v4636 = vmax.f32 %v4604, 0.0
        %v4637 = vmax.f32 %v4605, 0.0
        %v4638 = vmax.f32 %v4606, 0.0
        %v4639 = vmax.f32 %v4607, 0.0
        %v4640 = vmax.f32 %v4608, 0.0
        %v4641 = vmax.f32 %v4609, 0.0
        %v4642 = vmax.f32 %v4610, 0.0
        %v4643 = vmax.f32 %v4611, 0.0
        %v4644 = vmax.f32 %v4612, 0.0
        %v4645 = vmax.f32 %v4613, 0.0
        %v4646 = vmax.f32 %v4614, 0.0
        %v4647 = vmax.f32 %v4615, 0.0
        %v4648 = vmax.f32 %v4616, 0.0
        %v4649 = vmax.f32 %v4617, 0.0
        %v4650 = vmax.f32 %v4618, 0.0
        %v4651 = vmax.f32 %v4619, 0.0
        %v4652 = vmax.f32 %v4620, 0.0
        %v4653 = vmax.f32 %v4621, 0.0
        %v4654 = vmax.f32 %v4622, 0.0
        %v4655 = vmax.f32 %v4623, 0.0
        %v4656 = vmax.f32 %v4624, 0.0
        %v4657 = vmax.f32 %v4625, 0.0
        %v4658 = vmax.f32 %v4626, 0.0
        %v4659 = vmax.f32 %v4627, 0.0
        %v4660 = vmax.f32 %v4628, 0.0
        %v4661 = vmax.f32 %v4629, 0.0
        %v4662 = vmax.f32 %v4630, 0.0
        %v4663 = vmax.f32 %v4631, 0.0
        %4664 = vst.msk [vmem:[%s298] sm:$0xff] %vm299, %v4632
        %4665 = vst.msk [vmem:[%s298 + $0x8] sm:$0xff] %vm299, %v4633
        %4666 = vst.msk [vmem:[%s298 + $0x10] sm:$0xff] %vm299, %v4634
        %4667 = vst.msk [vmem:[%s298 + $0x18] sm:$0xff] %vm299, %v4635
        %4668 = vst.msk [vmem:[%s298 + $0x20] sm:$0xff] %vm299, %v4636
        %4669 = vst.msk [vmem:[%s298 + $0x28] sm:$0xff] %vm299, %v4637
        %4670 = vst.msk [vmem:[%s298 + $0x30] sm:$0xff] %vm299, %v4638
        %4671 = vst.msk [vmem:[%s298 + $0x38] sm:$0xff] %vm299, %v4639
        %4672 = vst.msk [vmem:[%s298 + $0x40] sm:$0xff] %vm299, %v4640
        %4673 = vst.msk [vmem:[%s298 + $0x48] sm:$0xff] %vm299, %v4641
        %4674 = vst.msk [vmem:[%s298 + $0x50] sm:$0xff] %vm299, %v4642
        %4675 = vst.msk [vmem:[%s298 + $0x58] sm:$0xff] %vm299, %v4643
        %4676 = vst.msk [vmem:[%s298 + $0x60] sm:$0xff] %vm299, %v4644
        %4677 = vst.msk [vmem:[%s298 + $0x68] sm:$0xff] %vm299, %v4645
        %4678 = vst.msk [vmem:[%s298 + $0x70] sm:$0xff] %vm299, %v4646
        %4679 = vst.msk [vmem:[%s298 + $0x78] sm:$0xff] %vm299, %v4647
        %4680 = vst.msk [vmem:[%s298 + $0x80] sm:$0xff] %vm299, %v4648
        %4681 = vst.msk [vmem:[%s298 + $0x88] sm:$0xff] %vm299, %v4649
        %4682 = vst.msk [vmem:[%s298 + $0x90] sm:$0xff] %vm299, %v4650
        %4683 = vst.msk [vmem:[%s298 + $0x98] sm:$0xff] %vm299, %v4651
        %4684 = vst.msk [vmem:[%s298 + $0xa0] sm:$0xff] %vm299, %v4652
        %4685 = vst.msk [vmem:[%s298 + $0xa8] sm:$0xff] %vm299, %v4653
        %4686 = vst.msk [vmem:[%s298 + $0xb0] sm:$0xff] %vm299, %v4654
        %4687 = vst.msk [vmem:[%s298 + $0xb8] sm:$0xff] %vm299, %v4655
        %4688 = vst.msk [vmem:[%s298 + $0xc0] sm:$0xff] %vm299, %v4656
        %4689 = vst.msk [vmem:[%s298 + $0xc8] sm:$0xff] %vm299, %v4657
        %4690 = vst.msk [vmem:[%s298 + $0xd0] sm:$0xff] %vm299, %v4658
        %4691 = vst.msk [vmem:[%s298 + $0xd8] sm:$0xff] %vm299, %v4659
        %4692 = vst.msk [vmem:[%s298 + $0xe0] sm:$0xff] %vm299, %v4660
        %4693 = vst.msk [vmem:[%s298 + $0xe8] sm:$0xff] %vm299, %v4661
        %4694 = vst.msk [vmem:[%s298 + $0xf0] sm:$0xff] %vm299, %v4662
        %4695 = vst.msk [vmem:[%s298 + $0xf8] sm:$0xff] %vm299, %v4663
        %p4696 = scmp.lt.s32.totalorder %s21, 1
        %s4697 = scalar_select %p4696, %s21, 1
        %s4698 = smul.addr %s4697, 32
        %s4699 = smul.addr %s4698, 8
        %s4700 = scalar_lea.vmem %s7, %s4699
        // Predicated region
        $region53: #{tpu_custom_call.1} parent=47 // pred_check
          %p4701 = pneg %p191
        $region54: #{tpu_custom_call.1} parent=47 // pred_check_branch
          %4703 = sbr.rel (%p4701) target = $region56
        $region55: #{tpu_custom_call.1} parent=47 // pred_region
          _
        $region56: #{tpu_custom_call.1} parent=47 // pred_fallthru
          _
      $region48: #{tpu_custom_call.1} parent=5 // pred_fallthru
        _
      %p4704 = scmp.le.s32.totalorder 2, %s16
      // Predicated region
      $region57: #{tpu_custom_call.1} parent=5 // pred_check
        %p4705 = pneg %p4704
      $region58: #{tpu_custom_call.1} parent=5 // pred_check_branch
        %4707 = sbr.rel (%p4705) target = $region60
      $region59: #{tpu_custom_call.1} parent=5 // pred_region
        %s4708 = ssub.s32 %s16, 2
        // Predicated region
        $region61: #{tpu_custom_call.1} parent=59 // pred_check
          %p4709 = pneg %p197
        $region62: #{tpu_custom_call.1} parent=59 // pred_check_branch
          %4711 = sbr.rel (%p4709) target = $region64
        $region63: #{tpu_custom_call.1} parent=59 // pred_region
          %p4712 = scmp.lt.s32.totalorder %s22, 1
          %s4713 = scalar_select %p4712, %s22, 1
          %s4714 = smul.addr %s4713, 32
          %s4715 = smul.addr %s4714, 8
          %s4716 = scalar_lea.vmem %s7, %s4715
        $region64: #{tpu_custom_call.1} parent=59 // pred_fallthru
          _
      $region60: #{tpu_custom_call.1} parent=5 // pred_fallthru
        _
    $region6: #{tpu_custom_call.1} parent=1 // loop_footer
      %s20 = sadd.s32 1, %s16
    $region7: #{tpu_custom_call.1} parent=1 // loop_footer_branch
      %15 = sbr.rel target = $region3
    $region8: #{tpu_custom_call.1} parent=1 // loop_exit
      _
    %4717 = vsyncpa [#allocation4], 1
    %s4718 = scalar_lea.sflag [#allocation4], 1
    %4719 = vsyncpa %s4718, 1

</llo_original>
